<compile_context>
chip_gen: v5e
topology: v5e:2x2
jax: 0.10.0
libtpu: 0.0.40
codegen_flags: <defaults>
</compile_context>

<pallas_src>
import math
import jax
import jax.numpy as jnp
from jax import lax
from jax.experimental import pallas as pl
from jax.experimental.pallas import tpu as pltpu

# ---------------- config (small, consistent with the forward) ----------------
B = 2          # batch
M = 8          # target sequence length = prod(resolut)   (e.g. resolut = (2, 4))
N = 4          # number of slots
C = 32         # embed_dim
H = 4          # nhead
DH = C // H    # head dim
FF = 64        # dim_feedforward
L = 2          # num decoder layers
V = 16         # readout vocabulary size
VP = 128       # lane-dense padded readout width (V columns are real, rest zero)
EPS = 1e-5     # layer_norm_eps (PyTorch default)

# 128-lane-aligned column offsets inside the packed per-layer weight / bias arrays.
SA_IN = 0 * 128    # width 3C = 96   self-attn in_proj  (q|k|v)
SA_OUT = 1 * 128   # width C  = 32   self-attn out_proj
CA_Q = 2 * 128     # width C  = 32   cross-attn q proj
CA_KV = 3 * 128    # width 2C = 64   cross-attn k|v proj
CA_OUT = 4 * 128   # width C  = 32   cross-attn out_proj
FF1 = 5 * 128      # width FF = 64   FFN linear1
FF2 = 6 * 128      # width C  = 32   FFN linear2 (uses FF rows)
WCOLS = 7 * 128
WROWS = max(C, FF)

# MXU operand dtype.  bf16 -> single-pass MXU matmuls (v6e/v7x), f32 accumulation.
# Set to jnp.float32 for exact f32 parity with the reference (test tolerance adapts).
MM_DTYPE = jnp.bfloat16


# ---------------- in-kernel helpers ----------------
def _mm(a, b):
    return jnp.dot(a.astype(MM_DTYPE), b.astype(MM_DTYPE),
                   preferred_element_type=jnp.float32)


def _ln(x, g, b):
    # x: (rows, C); g/b: (1, C)
    mu = jnp.mean(x, axis=-1, keepdims=True)
    xc = x - mu
    var = jnp.mean(xc * xc, axis=-1, keepdims=True)
    return xc * lax.rsqrt(var + EPS) * g + b


def _mha(q, k, v, w_out, b_out, hmask, amask, rows):
    """All-head attention in 3 MXU pushes.

    q: (rows, C)   k, v: (S, C)   w_out: (C, C) = W_o^T   b_out: (1, C)
    hmask: (H*rows, C) 0/1 head-lane mask (head h's block of rows keeps lanes h*DH..)
    amask: (H*rows, S) additive mask (0 / -1e30), causal + batch-block-diagonal.
    """
    # Stack heads along sublanes: block h holds q masked to head h's lanes.
    qbd = jnp.concatenate([q] * H, axis=0) * hmask                      # (H*rows, C)
    # All-head scores in ONE push (zeros outside head h's lanes drop out of the dot).
    sc = jnp.einsum('mc,sc->ms', qbd.astype(MM_DTYPE), k.astype(MM_DTYPE),
                    preferred_element_type=jnp.float32) * (DH ** -0.5)  # (H*rows, S)
    sc = sc + amask                                                     # additive mask
    sc = sc - jnp.max(sc, axis=-1, keepdims=True)
    p = jnp.exp(sc)
    p = p * pl.reciprocal(jnp.sum(p, axis=-1, keepdims=True), approx=True)
    # All-head context in ONE push; keep head h's lane slice from block h (VPU adds).
    ctx_all = _mm(p, v) * hmask                                         # (H*rows, C)
    ctx = ctx_all[0:rows]
    for h in range(1, H):
        ctx = ctx + ctx_all[h * rows:(h + 1) * rows]                    # (rows, C)
    # Heads are now concatenated along lanes -> one out-projection push.
    return _mm(ctx, w_out) + b_out


# ---------------- Pallas kernel: whole batch in one grid step ----------------
def _decoder_kernel(inp_ref, slot_ref, w_ref, b_ref, ln_ref, g_ref,
                    row_ref, rob_ref, hm_ref, ams_ref, amc_ref,
                    sh_ref, qadd_ref, out_ref):
    bb, m, c = inp_ref.shape
    n = slot_ref.shape[1]
    bbm, bbn = bb * m, bb * n
    nl = w_ref.shape[0]

    # batch stacked along sublanes (tile-aligned leading-dim merge, no data movement)
    x_raw = inp_ref[...].reshape(bbm, c)          # (B*M, C) raw target tokens
    mem = slot_ref[...].reshape(bbn, c)           # (B*N, C) slots

    hmask = hm_ref[...]                           # (H*B*M, C)   head lane mask
    am_s = ams_ref[...]                           # (H*B*M, B*M) causal + batch-block
    am_c = amc_ref[...]                           # (H*B*M, B*N) batch-block (cross)

    g = g_ref[...]                                # (4, C): norm0_w, norm0_b, fn_w, fn_b
    n0w, n0b, fnw, fnb = g[0:1], g[1:2], g[2:3], g[3:4]

    # fused bos-shift + positional embedding: query = Sshift @ inp + [pos | bos@row0]
    x = jnp.dot(sh_ref[...], x_raw, preferred_element_type=jnp.float32) + qadd_ref[...]

    # norm0 (originally layer 0's norm1, hoisted out of the backbone)
    x = _ln(x, n0w, n0b)

    for l in range(nl):                           # static loop over decoder layers
        ln = ln_ref[l]                            # (6, C): n1_w,n1_b,n2_w,n2_b,n3_w,n3_b

        # ---- self-attention (pre-norm; layer 0's in-backbone norm1 is Identity) ----
        xn = x if l == 0 else _ln(x, ln[0:1], ln[1:2])
        qkv = _mm(xn, w_ref[l, :C, SA_IN:SA_IN + 3 * C]) + b_ref[l, :, SA_IN:SA_IN + 3 * C]
        x = x + _mha(qkv[:, :C], qkv[:, C:2 * C], qkv[:, 2 * C:],
                     w_ref[l, :C, SA_OUT:SA_OUT + C], b_ref[l, :, SA_OUT:SA_OUT + C],
                     hmask, am_s, bbm)

        # ---- cross-attention over slots ----
        xn = _ln(x, ln[2:3], ln[3:4])
        q = _mm(xn, w_ref[l, :C, CA_Q:CA_Q + C]) + b_ref[l, :, CA_Q:CA_Q + C]
        kv = _mm(mem, w_ref[l, :C, CA_KV:CA_KV + 2 * C]) + b_ref[l, :, CA_KV:CA_KV + 2 * C]
        x = x + _mha(q, kv[:, :C], kv[:, C:],
                     w_ref[l, :C, CA_OUT:CA_OUT + C], b_ref[l, :, CA_OUT:CA_OUT + C],
                     hmask, am_c, bbm)

        # ---- feed-forward (ReLU) ----
        xn = _ln(x, ln[4:5], ln[5:6])
        h1 = jnp.maximum(_mm(xn, w_ref[l, :C, FF1:FF1 + FF]) + b_ref[l, :, FF1:FF1 + FF], 0.0)
        x = x + _mm(h1, w_ref[l, :FF, FF2:FF2 + C]) + b_ref[l, :, FF2:FF2 + C]

    # final decoder norm, then lane-dense padded readout (one unmasked 128-lane store)
    x = _ln(x, fnw, fnb)
    out_ref[...] = (_mm(x, row_ref[...]) + rob_ref[...]).reshape(bb, m, VP)


# ---------------- one-time packing of weights & constants ----------------
def _pack_params(p, batch):
    bbm, bbn = batch * M, batch * N

    # per-layer weights pre-transposed to (in, out), 128-lane-aligned column blocks
    wpack = jnp.zeros((L, WROWS, WCOLS), jnp.float32)
    bpack = jnp.zeros((L, 1, WCOLS), jnp.float32)
    for l in range(L):
        wpack = wpack.at[l, :C, SA_IN:SA_IN + 3 * C].set(p['sa_in_w'][l].T)
        wpack = wpack.at[l, :C, SA_OUT:SA_OUT + C].set(p['sa_out_w'][l].T)
        wpack = wpack.at[l, :C, CA_Q:CA_Q + C].set(p['ca_in_w'][l][:C].T)
        wpack = wpack.at[l, :C, CA_KV:CA_KV + 2 * C].set(p['ca_in_w'][l][C:].T)
        wpack = wpack.at[l, :C, CA_OUT:CA_OUT + C].set(p['ca_out_w'][l].T)
        wpack = wpack.at[l, :C, FF1:FF1 + FF].set(p['lin1_w'][l].T)
        wpack = wpack.at[l, :FF, FF2:FF2 + C].set(p['lin2_w'][l].T)
        bpack = bpack.at[l, :, SA_IN:SA_IN + 3 * C].set(p['sa_in_b'][l])
        bpack = bpack.at[l, :, SA_OUT:SA_OUT + C].set(p['sa_out_b'][l])
        bpack = bpack.at[l, :, CA_Q:CA_Q + C].set(p['ca_in_b'][l][:, :C])
        bpack = bpack.at[l, :, CA_KV:CA_KV + 2 * C].set(p['ca_in_b'][l][:, C:])
        bpack = bpack.at[l, :, CA_OUT:CA_OUT + C].set(p['ca_out_b'][l])
        bpack = bpack.at[l, :, FF1:FF1 + FF].set(p['lin1_b'][l])
        bpack = bpack.at[l, :, FF2:FF2 + C].set(p['lin2_b'][l])

    lnpack = jnp.concatenate([p['n1_w'], p['n1_b'], p['n2_w'], p['n2_b'],
                              p['n3_w'], p['n3_b']], axis=1)             # (L, 6, C)
    gpack = jnp.concatenate([p['norm0_w'], p['norm0_b'],
                             p['fn_w'], p['fn_b']], axis=0)              # (4, C)
    ro_w = jnp.zeros((C, VP), jnp.float32).at[:, :V].set(p['ro_w'].T)    # (C, 128)
    ro_b = jnp.zeros((1, VP), jnp.float32).at[:, :V].set(p['ro_b'])      # (1, 128)

    # head lane mask: row h*bbm+m keeps lanes [h*DH, (h+1)*DH)
    head_of_row = jnp.repeat(jnp.arange(H), bbm)                          # (H*bbm,)
    hmask = (jnp.arange(C)[None, :] // DH == head_of_row[:, None]).astype(jnp.float32)

    # additive masks (0 / -1e30): causal within batch + block-diagonal across batches
    qb = jnp.arange(bbm) // M
    qi = jnp.arange(bbm) % M
    base_s = jnp.where((qb[:, None] != qb[None, :]) | (qi[None, :] > qi[:, None]),
                       -1e30, 0.0).astype(jnp.float32)                    # (bbm, bbm)
    amask_s = jnp.tile(base_s, (H, 1))                                    # (H*bbm, bbm)
    kb = jnp.arange(bbn) // N
    base_c = jnp.where(qb[:, None] != kb[None, :], -1e30, 0.0).astype(jnp.float32)
    amask_c = jnp.tile(base_c, (H, 1))                                    # (H*bbm, bbn)

    # fused bos-shift constants: Sshift[r, r-1] = 1 within a batch, row b*M is zero;
    # qadd = pos tiled per batch with bos added on each batch's row 0.
    r = jnp.arange(bbm)
    sshift = ((r[:, None] - 1 == r[None, :]) &
              ((r % M) != 0)[:, None]).astype(jnp.float32)                # (bbm, bbm)
    per_b = p['pos'][0].at[0].add(p['bos'][0, 0])                         # (M, C)
    qadd = jnp.tile(per_b, (batch, 1))                                    # (bbm, C)

    return (wpack, bpack, lnpack, gpack, ro_w, ro_b,
            hmask, amask_s, amask_c, sshift, qadd)


# ---------------- wrapper: pack once, return a jitted forward ----------------
def make_decoder(params, batch):
    packed = _pack_params(params, batch)      # done ONCE (hoisted out of the call path)

    def _const_spec(a):
        nd = a.ndim
        return pl.BlockSpec(a.shape, lambda i, _nd=nd: (0,) * _nd)

    in_specs = ([pl.BlockSpec((batch, M, C), lambda i: (0, 0, 0)),
                 pl.BlockSpec((batch, N, C), lambda i: (0, 0, 0))]
                + [_const_spec(a) for a in packed])

    call = pl.pallas_call(
        _decoder_kernel,
        out_shape=jax.ShapeDtypeStruct((batch, M, VP), jnp.float32),
        grid=(1,),                                   # whole batch folded into one step
        in_specs=in_specs,
        out_specs=pl.BlockSpec((batch, M, VP), lambda i: (0, 0, 0)),
        compiler_params=pltpu.CompilerParams(dimension_semantics=("arbitrary",)),
    )

    @jax.jit
    def fwd(inp, slotz):
        out = call(inp, slotz, *packed)
        return out[:, :, :V]                         # drop lane padding

    return fwd


# ---------------- pure-JAX reference (for correctness check) ----------------
def reference(inp, slotz, p):
    b, m, c = inp.shape
    bos = jnp.broadcast_to(p['bos'], (b, 1, c))
    x = jnp.concatenate([bos, inp[:, :-1, :]], axis=1) + p['pos']

    def ln(x, w, bb):
        mu = x.mean(-1, keepdims=True)
        var = ((x - mu) ** 2).mean(-1, keepdims=True)
        return (x - mu) / jnp.sqrt(var + EPS) * w[0] + bb[0]

    def mha(q_in, kv_in, in_w, in_b, out_w, out_b, mask):
        q = q_in @ in_w[:C].T + in_b[0, :C]
        k = kv_in @ in_w[C:2 * C].T + in_b[0, C:2 * C]
        v = kv_in @ in_w[2 * C:].T + in_b[0, 2 * C:]
        bq, s, _ = q.shape
        sk = k.shape[1]
        q = q.reshape(bq, s, H, DH).transpose(0, 2, 1, 3)
        k = k.reshape(bq, sk, H, DH).transpose(0, 2, 1, 3)
        v = v.reshape(bq, sk, H, DH).transpose(0, 2, 1, 3)
        sc = jnp.einsum('bhmd,bhnd->bhmn', q, k) / math.sqrt(DH)
        if mask is not None:
            sc = jnp.where(mask, -jnp.inf, sc)
        pr = jax.nn.softmax(sc, axis=-1)
        o = jnp.einsum('bhmn,bhnd->bhmd', pr, v).transpose(0, 2, 1, 3).reshape(bq, s, C)
        return o @ out_w.T + out_b[0]

    x = ln(x, p['norm0_w'], p['norm0_b'])
    mask = jnp.triu(jnp.ones((M, M), bool), 1)
    mem = slotz
    for l in range(L):
        xn = x if l == 0 else ln(x, p['n1_w'][l], p['n1_b'][l])
        x = x + mha(xn, xn, p['sa_in_w'][l], p['sa_in_b'][l], p['sa_out_w'][l], p['sa_out_b'][l], mask)
        xn = ln(x, p['n2_w'][l], p['n2_b'][l])
        x = x + mha(xn, mem, p['ca_in_w'][l], p['ca_in_b'][l], p['ca_out_w'][l], p['ca_out_b'][l], None)
        xn = ln(x, p['n3_w'][l], p['n3_b'][l])
        h1 = jax.nn.relu(xn @ p['lin1_w'][l].T + p['lin1_b'][l][0])
        x = x + h1 @ p['lin2_w'][l].T + p['lin2_b'][l][0]
    x = ln(x, p['fn_w'], p['fn_b'])
    return x @ p['ro_w'].T + p['ro_b'][0]


# ---------------- deterministic parameter init ----------------
def init_params(key):
    ks = iter(jax.random.split(key, 32))

    def w(shape, scale=0.05):
        return jax.random.normal(next(ks), shape, jnp.float32) * scale

    p = {}
    p['bos'] = jax.random.normal(next(ks), (1, 1, C), jnp.float32) * C ** -0.5
    p['pos'] = w((1, M, C), 0.02)                       # posit_embed (learned)
    p['norm0_w'] = jnp.ones((1, C), jnp.float32)
    p['norm0_b'] = jnp.zeros((1, C), jnp.float32)
    p['sa_in_w'] = w((L, 3 * C, C));  p['sa_in_b'] = w((L, 1, 3 * C), 0.02)
    p['sa_out_w'] = w((L, C, C));     p['sa_out_b'] = w((L, 1, C), 0.02)
    p['ca_in_w'] = w((L, 3 * C, C));  p['ca_in_b'] = w((L, 1, 3 * C), 0.02)
    p['ca_out_w'] = w((L, C, C));     p['ca_out_b'] = w((L, 1, C), 0.02)
    p['lin1_w'] = w((L, FF, C));      p['lin1_b'] = w((L, 1, FF), 0.02)
    p['lin2_w'] = w((L, C, FF));      p['lin2_b'] = w((L, 1, C), 0.02)
    for nm in ('n1', 'n2', 'n3'):
        p[nm + '_w'] = jnp.ones((L, 1, C), jnp.float32)
        p[nm + '_b'] = jnp.zeros((L, 1, C), jnp.float32)
    p['fn_w'] = jnp.ones((1, C), jnp.float32)
    p['fn_b'] = jnp.zeros((1, C), jnp.float32)
    p['ro_w'] = w((V, C));            p['ro_b'] = w((1, V), 0.02)
    return p


if __name__ == "__main__":
    key = jax.random.PRNGKey(0)
    k_in, k_sl, k_par = jax.random.split(key, 3)
    inp = jax.random.normal(k_in, (B, M, C), jnp.float32)     # target tokens (b, m, c)
    slotz = jax.random.normal(k_sl, (B, N, C), jnp.float32)   # slots (b, n, c)
    params = init_params(k_par)

    fwd = make_decoder(params, B)                 # packs weights & constants once
    out = jax.block_until_ready(fwd(inp, slotz))

    ref = jax.block_until_ready(reference(inp, slotz, params))
    assert out.shape == (B, M, V)
    # bf16 MXU operands trade a little accuracy for single-pass MXU matmuls;
    # with MM_DTYPE = jnp.float32 the kernel matches the f32 reference to 2e-3.
    tol = 2e-2 if MM_DTYPE == jnp.bfloat16 else 2e-3
    err = float(jnp.abs(out - ref).max())
    assert jnp.allclose(out, ref, atol=tol, rtol=tol), err

    print("KERNEL_OK")
</pallas_src>

<mosaic_0001>
module attributes {stable_mosaic.version = 11 : i64} {
  func.func @_decoder_kernel(%arg0: i32, %arg1: memref<2x8x32xf32, #tpu.memory_space<vmem>>, %arg2: memref<2x4x32xf32, #tpu.memory_space<vmem>>, %arg3: memref<2x64x896xf32, #tpu.memory_space<vmem>>, %arg4: memref<2x1x896xf32, #tpu.memory_space<vmem>>, %arg5: memref<2x6x32xf32, #tpu.memory_space<vmem>>, %arg6: memref<4x32xf32, #tpu.memory_space<vmem>>, %arg7: memref<32x128xf32, #tpu.memory_space<vmem>>, %arg8: memref<1x128xf32, #tpu.memory_space<vmem>>, %arg9: memref<64x32xf32, #tpu.memory_space<vmem>>, %arg10: memref<64x16xf32, #tpu.memory_space<vmem>>, %arg11: memref<64x8xf32, #tpu.memory_space<vmem>>, %arg12: memref<16x16xf32, #tpu.memory_space<vmem>>, %arg13: memref<16x32xf32, #tpu.memory_space<vmem>>, %arg14: memref<2x8x128xf32, #tpu.memory_space<vmem>>) attributes {dimension_semantics = [#tpu.dimension_semantics<arbitrary>], iteration_bounds = array<i64: 1>, scalar_prefetch = 0 : i64, scratch_operands = 0 : i64, tpu.core_type = #tpu.core_type<tc>, window_params = [{pipeline_mode = #tpu.pipeline_mode<synchronous>, transform_indices = @transform_0, window_bounds = array<i64: 2, 8, 32>}, {pipeline_mode = #tpu.pipeline_mode<synchronous>, transform_indices = @transform_1, window_bounds = array<i64: 2, 4, 32>}, {pipeline_mode = #tpu.pipeline_mode<synchronous>, transform_indices = @transform_2, window_bounds = array<i64: 2, 64, 896>}, {pipeline_mode = #tpu.pipeline_mode<synchronous>, transform_indices = @transform_3, window_bounds = array<i64: 2, 1, 896>}, {pipeline_mode = #tpu.pipeline_mode<synchronous>, transform_indices = @transform_4, window_bounds = array<i64: 2, 6, 32>}, {pipeline_mode = #tpu.pipeline_mode<synchronous>, transform_indices = @transform_5, window_bounds = array<i64: 4, 32>}, {pipeline_mode = #tpu.pipeline_mode<synchronous>, transform_indices = @transform_6, window_bounds = array<i64: 32, 128>}, {pipeline_mode = #tpu.pipeline_mode<synchronous>, transform_indices = @transform_7, window_bounds = array<i64: 1, 128>}, {pipeline_mode = #tpu.pipeline_mode<synchronous>, transform_indices = @transform_8, window_bounds = array<i64: 64, 32>}, {pipeline_mode = #tpu.pipeline_mode<synchronous>, transform_indices = @transform_9, window_bounds = array<i64: 64, 16>}, {pipeline_mode = #tpu.pipeline_mode<synchronous>, transform_indices = @transform_10, window_bounds = array<i64: 64, 8>}, {pipeline_mode = #tpu.pipeline_mode<synchronous>, transform_indices = @transform_11, window_bounds = array<i64: 16, 16>}, {pipeline_mode = #tpu.pipeline_mode<synchronous>, transform_indices = @transform_12, window_bounds = array<i64: 16, 32>}, {pipeline_mode = #tpu.pipeline_mode<synchronous>, transform_indices = @transform_13, window_bounds = array<i64: 2, 8, 128>}]} {
    %c0 = arith.constant 0 : index
    %c0_0 = arith.constant 0 : index
    %c0_1 = arith.constant 0 : index
    %0 = vector.load %arg1[%c0, %c0_0, %c0_1] : memref<2x8x32xf32, #tpu.memory_space<vmem>>, vector<2x8x32xf32>
    %1 = vector.shape_cast %0 : vector<2x8x32xf32> to vector<16x32xf32>
    %c0_2 = arith.constant 0 : index
    %c0_3 = arith.constant 0 : index
    %c0_4 = arith.constant 0 : index
    %2 = vector.load %arg2[%c0_2, %c0_3, %c0_4] : memref<2x4x32xf32, #tpu.memory_space<vmem>>, vector<2x4x32xf32>
    %3 = vector.shape_cast %2 : vector<2x4x32xf32> to vector<8x32xf32>
    %c0_5 = arith.constant 0 : index
    %c0_6 = arith.constant 0 : index
    %4 = vector.load %arg9[%c0_5, %c0_6] : memref<64x32xf32, #tpu.memory_space<vmem>>, vector<64x32xf32>
    %c0_7 = arith.constant 0 : index
    %c0_8 = arith.constant 0 : index
    %5 = vector.load %arg10[%c0_7, %c0_8] : memref<64x16xf32, #tpu.memory_space<vmem>>, vector<64x16xf32>
    %c0_9 = arith.constant 0 : index
    %c0_10 = arith.constant 0 : index
    %6 = vector.load %arg11[%c0_9, %c0_10] : memref<64x8xf32, #tpu.memory_space<vmem>>, vector<64x8xf32>
    %c0_11 = arith.constant 0 : index
    %c0_12 = arith.constant 0 : index
    %7 = vector.load %arg6[%c0_11, %c0_12] : memref<4x32xf32, #tpu.memory_space<vmem>>, vector<4x32xf32>
    %8 = vector.extract_strided_slice %7 {offsets = [0, 0], sizes = [1, 32], strides = [1, 1]} : vector<4x32xf32> to vector<1x32xf32>
    %9 = vector.extract_strided_slice %7 {offsets = [1, 0], sizes = [1, 32], strides = [1, 1]} : vector<4x32xf32> to vector<1x32xf32>
    %10 = vector.extract_strided_slice %7 {offsets = [2, 0], sizes = [1, 32], strides = [1, 1]} : vector<4x32xf32> to vector<1x32xf32>
    %11 = vector.extract_strided_slice %7 {offsets = [3, 0], sizes = [1, 32], strides = [1, 1]} : vector<4x32xf32> to vector<1x32xf32>
    %c0_13 = arith.constant 0 : index
    %c0_14 = arith.constant 0 : index
    %12 = vector.load %arg12[%c0_13, %c0_14] : memref<16x16xf32, #tpu.memory_space<vmem>>, vector<16x16xf32>
    %cst = arith.constant dense<0.000000e+00> : vector<16x32xf32>
    %13 = tpu.matmul %12, %1, %cst {dimension_numbers = #tpu.dot_dimension_numbers<[1], [0], [0], [1], [0, 0, 1, 1], [], []>} : vector<16x16xf32>, vector<16x32xf32>, vector<16x32xf32> -> vector<16x32xf32>
    %c0_15 = arith.constant 0 : index
    %c0_16 = arith.constant 0 : index
    %14 = vector.load %arg13[%c0_15, %c0_16] : memref<16x32xf32, #tpu.memory_space<vmem>>, vector<16x32xf32>
    %15 = arith.addf %13, %14 : vector<16x32xf32>
    %cst_17 = arith.constant dense<0.000000e+00> : vector<16xf32>
    %16 = vector.multi_reduction <add>, %15, %cst_17 [1] : vector<16x32xf32> to vector<16xf32>
    %17 = vector.shape_cast %16 : vector<16xf32> to vector<16x1xf32>
    %cst_18 = arith.constant 3.200000e+01 : f32
    %18 = vector.broadcast %cst_18 : f32 to vector<16x1xf32>
    %19 = arith.divf %17, %18 : vector<16x1xf32>
    %20 = vector.broadcast %19 : vector<16x1xf32> to vector<16x32xf32>
    %21 = arith.subf %15, %20 : vector<16x32xf32>
    %22 = arith.mulf %21, %21 : vector<16x32xf32>
    %cst_19 = arith.constant dense<0.000000e+00> : vector<16xf32>
    %23 = vector.multi_reduction <add>, %22, %cst_19 [1] : vector<16x32xf32> to vector<16xf32>
    %24 = vector.shape_cast %23 : vector<16xf32> to vector<16x1xf32>
    %cst_20 = arith.constant 3.200000e+01 : f32
    %25 = vector.broadcast %cst_20 : f32 to vector<16x1xf32>
    %26 = arith.divf %24, %25 : vector<16x1xf32>
    %cst_21 = arith.constant 9.99999974E-6 : f32
    %27 = vector.broadcast %cst_21 : f32 to vector<16x1xf32>
    %28 = arith.addf %26, %27 : vector<16x1xf32>
    %29 = math.rsqrt %28 : vector<16x1xf32>
    %30 = vector.broadcast %29 : vector<16x1xf32> to vector<16x32xf32>
    %31 = arith.mulf %21, %30 : vector<16x32xf32>
    %32 = vector.broadcast %8 : vector<1x32xf32> to vector<16x32xf32>
    %33 = arith.mulf %31, %32 : vector<16x32xf32>
    %34 = vector.broadcast %9 : vector<1x32xf32> to vector<16x32xf32>
    %35 = arith.addf %33, %34 : vector<16x32xf32>
    %c0_22 = arith.constant 0 : index
    %c0_23 = arith.constant 0 : index
    %c0_24 = arith.constant 0 : index
    %36 = vector.load %arg5[%c0_22, %c0_23, %c0_24] : memref<2x6x32xf32, #tpu.memory_space<vmem>>, vector<1x6x32xf32>
    %37 = vector.shape_cast %36 : vector<1x6x32xf32> to vector<6x32xf32>
    %c0_25 = arith.constant 0 : index
    %c0_26 = arith.constant 0 : index
    %c0_27 = arith.constant 0 : index
    %38 = vector.load %arg3[%c0_25, %c0_26, %c0_27] : memref<2x64x896xf32, #tpu.memory_space<vmem>>, vector<1x32x96xf32>
    %39 = vector.shape_cast %38 : vector<1x32x96xf32> to vector<32x96xf32>
    %40 = arith.truncf %35 : vector<16x32xf32> to vector<16x32xbf16>
    %41 = arith.truncf %39 : vector<32x96xf32> to vector<32x96xbf16>
    %cst_28 = arith.constant dense<0.000000e+00> : vector<16x96xf32>
    %42 = tpu.matmul %40, %41, %cst_28 {dimension_numbers = #tpu.dot_dimension_numbers<[1], [0], [0], [1], [0, 0, 1, 1], [], []>} : vector<16x32xbf16>, vector<32x96xbf16>, vector<16x96xf32> -> vector<16x96xf32>
    %c0_29 = arith.constant 0 : index
    %c0_30 = arith.constant 0 : index
    %c0_31 = arith.constant 0 : index
    %43 = vector.load %arg4[%c0_29, %c0_30, %c0_31] : memref<2x1x896xf32, #tpu.memory_space<vmem>>, vector<1x1x96xf32>
    %44 = vector.shape_cast %43 : vector<1x1x96xf32> to vector<1x96xf32>
    %45 = vector.broadcast %44 : vector<1x96xf32> to vector<16x96xf32>
    %46 = arith.addf %42, %45 : vector<16x96xf32>
    %47 = vector.extract_strided_slice %46 {offsets = [0, 0], sizes = [16, 32], strides = [1, 1]} : vector<16x96xf32> to vector<16x32xf32>
    %48 = vector.extract_strided_slice %46 {offsets = [0, 32], sizes = [16, 32], strides = [1, 1]} : vector<16x96xf32> to vector<16x32xf32>
    %49 = vector.extract_strided_slice %46 {offsets = [0, 64], sizes = [16, 32], strides = [1, 1]} : vector<16x96xf32> to vector<16x32xf32>
    %c0_32 = arith.constant 0 : index
    %c0_33 = arith.constant 0 : index
    %c128 = arith.constant 128 : index
    %50 = vector.load %arg3[%c0_32, %c0_33, %c128] : memref<2x64x896xf32, #tpu.memory_space<vmem>>, vector<1x32x32xf32>
    %51 = vector.shape_cast %50 : vector<1x32x32xf32> to vector<32x32xf32>
    %c0_34 = arith.constant 0 : index
    %c0_35 = arith.constant 0 : index
    %c128_36 = arith.constant 128 : index
    %52 = vector.load %arg4[%c0_34, %c0_35, %c128_36] : memref<2x1x896xf32, #tpu.memory_space<vmem>>, vector<1x1x32xf32>
    %53 = vector.shape_cast %52 : vector<1x1x32xf32> to vector<1x32xf32>
    %54 = tpu.concatenate %47, %47, %47, %47 in 0 : vector<16x32xf32>, vector<16x32xf32>, vector<16x32xf32>, vector<16x32xf32> -> vector<64x32xf32>
    %55 = arith.mulf %54, %4 : vector<64x32xf32>
    %56 = arith.truncf %55 : vector<64x32xf32> to vector<64x32xbf16>
    %57 = arith.truncf %48 : vector<16x32xf32> to vector<16x32xbf16>
    "tpu.trace_start"() <{level = 10 : i32, message = "mc,sc->ms"}> : () -> ()
    %cst_37 = arith.constant dense<0.000000e+00> : vector<64x16xf32>
    %58 = tpu.matmul %56, %57, %cst_37 {dimension_numbers = #tpu.dot_dimension_numbers<[1], [1], [0], [0], [0, 0, 1, 0], [], []>} : vector<64x32xbf16>, vector<16x32xbf16>, vector<64x16xf32> -> vector<64x16xf32>
    "tpu.trace_stop"() : () -> ()
    %cst_38 = arith.constant 0.353553385 : f32
    %59 = vector.broadcast %cst_38 : f32 to vector<64x16xf32>
    %60 = arith.mulf %58, %59 : vector<64x16xf32>
    %61 = arith.addf %60, %5 : vector<64x16xf32>
    %cst_39 = arith.constant dense<0xFF800000> : vector<64xf32>
    %62 = vector.multi_reduction <maximumf>, %61, %cst_39 [1] : vector<64x16xf32> to vector<64xf32>
    %63 = vector.shape_cast %62 : vector<64xf32> to vector<64x1xf32>
    %64 = vector.broadcast %63 : vector<64x1xf32> to vector<64x16xf32>
    %65 = arith.subf %61, %64 : vector<64x16xf32>
    %66 = math.exp %65 : vector<64x16xf32>
    %cst_40 = arith.constant dense<0.000000e+00> : vector<64xf32>
    %67 = vector.multi_reduction <add>, %66, %cst_40 [1] : vector<64x16xf32> to vector<64xf32>
    %68 = vector.shape_cast %67 : vector<64xf32> to vector<64x1xf32>
    %69 = tpu.reciprocal %68 {approx = true} : vector<64x1xf32> -> vector<64x1xf32>
    %70 = vector.broadcast %69 : vector<64x1xf32> to vector<64x16xf32>
    %71 = arith.mulf %66, %70 : vector<64x16xf32>
    %72 = arith.truncf %71 : vector<64x16xf32> to vector<64x16xbf16>
    %73 = arith.truncf %49 : vector<16x32xf32> to vector<16x32xbf16>
    %cst_41 = arith.constant dense<0.000000e+00> : vector<64x32xf32>
    %74 = tpu.matmul %72, %73, %cst_41 {dimension_numbers = #tpu.dot_dimension_numbers<[1], [0], [0], [1], [0, 0, 1, 1], [], []>} : vector<64x16xbf16>, vector<16x32xbf16>, vector<64x32xf32> -> vector<64x32xf32>
    %75 = arith.mulf %74, %4 : vector<64x32xf32>
    %76 = vector.extract_strided_slice %75 {offsets = [0, 0], sizes = [16, 32], strides = [1, 1]} : vector<64x32xf32> to vector<16x32xf32>
    %77 = vector.extract_strided_slice %75 {offsets = [16, 0], sizes = [16, 32], strides = [1, 1]} : vector<64x32xf32> to vector<16x32xf32>
    %78 = arith.addf %76, %77 : vector<16x32xf32>
    %79 = vector.extract_strided_slice %75 {offsets = [32, 0], sizes = [16, 32], strides = [1, 1]} : vector<64x32xf32> to vector<16x32xf32>
    %80 = arith.addf %78, %79 : vector<16x32xf32>
    %81 = vector.extract_strided_slice %75 {offsets = [48, 0], sizes = [16, 32], strides = [1, 1]} : vector<64x32xf32> to vector<16x32xf32>
    %82 = arith.addf %80, %81 : vector<16x32xf32>
    %83 = arith.truncf %82 : vector<16x32xf32> to vector<16x32xbf16>
    %84 = arith.truncf %51 : vector<32x32xf32> to vector<32x32xbf16>
    %cst_42 = arith.constant dense<0.000000e+00> : vector<16x32xf32>
    %85 = tpu.matmul %83, %84, %cst_42 {dimension_numbers = #tpu.dot_dimension_numbers<[1], [0], [0], [1], [0, 0, 1, 1], [], []>} : vector<16x32xbf16>, vector<32x32xbf16>, vector<16x32xf32> -> vector<16x32xf32>
    %86 = vector.broadcast %53 : vector<1x32xf32> to vector<16x32xf32>
    %87 = arith.addf %85, %86 : vector<16x32xf32>
    %88 = arith.addf %35, %87 : vector<16x32xf32>
    %89 = vector.extract_strided_slice %37 {offsets = [2, 0], sizes = [1, 32], strides = [1, 1]} : vector<6x32xf32> to vector<1x32xf32>
    %90 = vector.extract_strided_slice %37 {offsets = [3, 0], sizes = [1, 32], strides = [1, 1]} : vector<6x32xf32> to vector<1x32xf32>
    %cst_43 = arith.constant dense<0.000000e+00> : vector<16xf32>
    %91 = vector.multi_reduction <add>, %88, %cst_43 [1] : vector<16x32xf32> to vector<16xf32>
    %92 = vector.shape_cast %91 : vector<16xf32> to vector<16x1xf32>
    %cst_44 = arith.constant 3.200000e+01 : f32
    %93 = vector.broadcast %cst_44 : f32 to vector<16x1xf32>
    %94 = arith.divf %92, %93 : vector<16x1xf32>
    %95 = vector.broadcast %94 : vector<16x1xf32> to vector<16x32xf32>
    %96 = arith.subf %88, %95 : vector<16x32xf32>
    %97 = arith.mulf %96, %96 : vector<16x32xf32>
    %cst_45 = arith.constant dense<0.000000e+00> : vector<16xf32>
    %98 = vector.multi_reduction <add>, %97, %cst_45 [1] : vector<16x32xf32> to vector<16xf32>
    %99 = vector.shape_cast %98 : vector<16xf32> to vector<16x1xf32>
    %cst_46 = arith.constant 3.200000e+01 : f32
    %100 = vector.broadcast %cst_46 : f32 to vector<16x1xf32>
    %101 = arith.divf %99, %100 : vector<16x1xf32>
    %cst_47 = arith.constant 9.99999974E-6 : f32
    %102 = vector.broadcast %cst_47 : f32 to vector<16x1xf32>
    %103 = arith.addf %101, %102 : vector<16x1xf32>
    %104 = math.rsqrt %103 : vector<16x1xf32>
    %105 = vector.broadcast %104 : vector<16x1xf32> to vector<16x32xf32>
    %106 = arith.mulf %96, %105 : vector<16x32xf32>
    %107 = vector.broadcast %89 : vector<1x32xf32> to vector<16x32xf32>
    %108 = arith.mulf %106, %107 : vector<16x32xf32>
    %109 = vector.broadcast %90 : vector<1x32xf32> to vector<16x32xf32>
    %110 = arith.addf %108, %109 : vector<16x32xf32>
    %c0_48 = arith.constant 0 : index
    %c0_49 = arith.constant 0 : index
    %c256 = arith.constant 256 : index
    %111 = vector.load %arg3[%c0_48, %c0_49, %c256] : memref<2x64x896xf32, #tpu.memory_space<vmem>>, vector<1x32x32xf32>
    %112 = vector.shape_cast %111 : vector<1x32x32xf32> to vector<32x32xf32>
    %113 = arith.truncf %110 : vector<16x32xf32> to vector<16x32xbf16>
    %114 = arith.truncf %112 : vector<32x32xf32> to vector<32x32xbf16>
    %cst_50 = arith.constant dense<0.000000e+00> : vector<16x32xf32>
    %115 = tpu.matmul %113, %114, %cst_50 {dimension_numbers = #tpu.dot_dimension_numbers<[1], [0], [0], [1], [0, 0, 1, 1], [], []>} : vector<16x32xbf16>, vector<32x32xbf16>, vector<16x32xf32> -> vector<16x32xf32>
    %c0_51 = arith.constant 0 : index
    %c0_52 = arith.constant 0 : index
    %c256_53 = arith.constant 256 : index
    %116 = vector.load %arg4[%c0_51, %c0_52, %c256_53] : memref<2x1x896xf32, #tpu.memory_space<vmem>>, vector<1x1x32xf32>
    %117 = vector.shape_cast %116 : vector<1x1x32xf32> to vector<1x32xf32>
    %118 = vector.broadcast %117 : vector<1x32xf32> to vector<16x32xf32>
    %119 = arith.addf %115, %118 : vector<16x32xf32>
    %c0_54 = arith.constant 0 : index
    %c0_55 = arith.constant 0 : index
    %c384 = arith.constant 384 : index
    %120 = vector.load %arg3[%c0_54, %c0_55, %c384] : memref<2x64x896xf32, #tpu.memory_space<vmem>>, vector<1x32x64xf32>
    %121 = vector.shape_cast %120 : vector<1x32x64xf32> to vector<32x64xf32>
    %122 = arith.truncf %3 : vector<8x32xf32> to vector<8x32xbf16>
    %123 = arith.truncf %121 : vector<32x64xf32> to vector<32x64xbf16>
    %cst_56 = arith.constant dense<0.000000e+00> : vector<8x64xf32>
    %124 = tpu.matmul %122, %123, %cst_56 {dimension_numbers = #tpu.dot_dimension_numbers<[1], [0], [0], [1], [0, 0, 1, 1], [], []>} : vector<8x32xbf16>, vector<32x64xbf16>, vector<8x64xf32> -> vector<8x64xf32>
    %c0_57 = arith.constant 0 : index
    %c0_58 = arith.constant 0 : index
    %c384_59 = arith.constant 384 : index
    %125 = vector.load %arg4[%c0_57, %c0_58, %c384_59] : memref<2x1x896xf32, #tpu.memory_space<vmem>>, vector<1x1x64xf32>
    %126 = vector.shape_cast %125 : vector<1x1x64xf32> to vector<1x64xf32>
    %127 = vector.broadcast %126 : vector<1x64xf32> to vector<8x64xf32>
    %128 = arith.addf %124, %127 : vector<8x64xf32>
    %129 = vector.extract_strided_slice %128 {offsets = [0, 0], sizes = [8, 32], strides = [1, 1]} : vector<8x64xf32> to vector<8x32xf32>
    %130 = vector.extract_strided_slice %128 {offsets = [0, 32], sizes = [8, 32], strides = [1, 1]} : vector<8x64xf32> to vector<8x32xf32>
    %c0_60 = arith.constant 0 : index
    %c0_61 = arith.constant 0 : index
    %c512 = arith.constant 512 : index
    %131 = vector.load %arg3[%c0_60, %c0_61, %c512] : memref<2x64x896xf32, #tpu.memory_space<vmem>>, vector<1x32x32xf32>
    %132 = vector.shape_cast %131 : vector<1x32x32xf32> to vector<32x32xf32>
    %c0_62 = arith.constant 0 : index
    %c0_63 = arith.constant 0 : index
    %c512_64 = arith.constant 512 : index
    %133 = vector.load %arg4[%c0_62, %c0_63, %c512_64] : memref<2x1x896xf32, #tpu.memory_space<vmem>>, vector<1x1x32xf32>
    %134 = vector.shape_cast %133 : vector<1x1x32xf32> to vector<1x32xf32>
    %135 = tpu.concatenate %119, %119, %119, %119 in 0 : vector<16x32xf32>, vector<16x32xf32>, vector<16x32xf32>, vector<16x32xf32> -> vector<64x32xf32>
    %136 = arith.mulf %135, %4 : vector<64x32xf32>
    %137 = arith.truncf %136 : vector<64x32xf32> to vector<64x32xbf16>
    %138 = arith.truncf %129 : vector<8x32xf32> to vector<8x32xbf16>
    "tpu.trace_start"() <{level = 10 : i32, message = "mc,sc->ms"}> : () -> ()
    %cst_65 = arith.constant dense<0.000000e+00> : vector<64x8xf32>
    %139 = tpu.matmul %137, %138, %cst_65 {dimension_numbers = #tpu.dot_dimension_numbers<[1], [1], [0], [0], [0, 0, 1, 0], [], []>} : vector<64x32xbf16>, vector<8x32xbf16>, vector<64x8xf32> -> vector<64x8xf32>
    "tpu.trace_stop"() : () -> ()
    %cst_66 = arith.constant 0.353553385 : f32
    %140 = vector.broadcast %cst_66 : f32 to vector<64x8xf32>
    %141 = arith.mulf %139, %140 : vector<64x8xf32>
    %142 = arith.addf %141, %6 : vector<64x8xf32>
    %cst_67 = arith.constant dense<0xFF800000> : vector<64xf32>
    %143 = vector.multi_reduction <maximumf>, %142, %cst_67 [1] : vector<64x8xf32> to vector<64xf32>
    %144 = vector.shape_cast %143 : vector<64xf32> to vector<64x1xf32>
    %145 = vector.broadcast %144 : vector<64x1xf32> to vector<64x8xf32>
    %146 = arith.subf %142, %145 : vector<64x8xf32>
    %147 = math.exp %146 : vector<64x8xf32>
    %cst_68 = arith.constant dense<0.000000e+00> : vector<64xf32>
    %148 = vector.multi_reduction <add>, %147, %cst_68 [1] : vector<64x8xf32> to vector<64xf32>
    %149 = vector.shape_cast %148 : vector<64xf32> to vector<64x1xf32>
    %150 = tpu.reciprocal %149 {approx = true} : vector<64x1xf32> -> vector<64x1xf32>
    %151 = vector.broadcast %150 : vector<64x1xf32> to vector<64x8xf32>
    %152 = arith.mulf %147, %151 : vector<64x8xf32>
    %153 = arith.truncf %152 : vector<64x8xf32> to vector<64x8xbf16>
    %154 = arith.truncf %130 : vector<8x32xf32> to vector<8x32xbf16>
    %cst_69 = arith.constant dense<0.000000e+00> : vector<64x32xf32>
    %155 = tpu.matmul %153, %154, %cst_69 {dimension_numbers = #tpu.dot_dimension_numbers<[1], [0], [0], [1], [0, 0, 1, 1], [], []>} : vector<64x8xbf16>, vector<8x32xbf16>, vector<64x32xf32> -> vector<64x32xf32>
    %156 = arith.mulf %155, %4 : vector<64x32xf32>
    %157 = vector.extract_strided_slice %156 {offsets = [0, 0], sizes = [16, 32], strides = [1, 1]} : vector<64x32xf32> to vector<16x32xf32>
    %158 = vector.extract_strided_slice %156 {offsets = [16, 0], sizes = [16, 32], strides = [1, 1]} : vector<64x32xf32> to vector<16x32xf32>
    %159 = arith.addf %157, %158 : vector<16x32xf32>
    %160 = vector.extract_strided_slice %156 {offsets = [32, 0], sizes = [16, 32], strides = [1, 1]} : vector<64x32xf32> to vector<16x32xf32>
    %161 = arith.addf %159, %160 : vector<16x32xf32>
    %162 = vector.extract_strided_slice %156 {offsets = [48, 0], sizes = [16, 32], strides = [1, 1]} : vector<64x32xf32> to vector<16x32xf32>
    %163 = arith.addf %161, %162 : vector<16x32xf32>
    %164 = arith.truncf %163 : vector<16x32xf32> to vector<16x32xbf16>
    %165 = arith.truncf %132 : vector<32x32xf32> to vector<32x32xbf16>
    %cst_70 = arith.constant dense<0.000000e+00> : vector<16x32xf32>
    %166 = tpu.matmul %164, %165, %cst_70 {dimension_numbers = #tpu.dot_dimension_numbers<[1], [0], [0], [1], [0, 0, 1, 1], [], []>} : vector<16x32xbf16>, vector<32x32xbf16>, vector<16x32xf32> -> vector<16x32xf32>
    %167 = vector.broadcast %134 : vector<1x32xf32> to vector<16x32xf32>
    %168 = arith.addf %166, %167 : vector<16x32xf32>
    %169 = arith.addf %88, %168 : vector<16x32xf32>
    %170 = vector.extract_strided_slice %37 {offsets = [4, 0], sizes = [1, 32], strides = [1, 1]} : vector<6x32xf32> to vector<1x32xf32>
    %171 = vector.extract_strided_slice %37 {offsets = [5, 0], sizes = [1, 32], strides = [1, 1]} : vector<6x32xf32> to vector<1x32xf32>
    %cst_71 = arith.constant dense<0.000000e+00> : vector<16xf32>
    %172 = vector.multi_reduction <add>, %169, %cst_71 [1] : vector<16x32xf32> to vector<16xf32>
    %173 = vector.shape_cast %172 : vector<16xf32> to vector<16x1xf32>
    %cst_72 = arith.constant 3.200000e+01 : f32
    %174 = vector.broadcast %cst_72 : f32 to vector<16x1xf32>
    %175 = arith.divf %173, %174 : vector<16x1xf32>
    %176 = vector.broadcast %175 : vector<16x1xf32> to vector<16x32xf32>
    %177 = arith.subf %169, %176 : vector<16x32xf32>
    %178 = arith.mulf %177, %177 : vector<16x32xf32>
    %cst_73 = arith.constant dense<0.000000e+00> : vector<16xf32>
    %179 = vector.multi_reduction <add>, %178, %cst_73 [1] : vector<16x32xf32> to vector<16xf32>
    %180 = vector.shape_cast %179 : vector<16xf32> to vector<16x1xf32>
    %cst_74 = arith.constant 3.200000e+01 : f32
    %181 = vector.broadcast %cst_74 : f32 to vector<16x1xf32>
    %182 = arith.divf %180, %181 : vector<16x1xf32>
    %cst_75 = arith.constant 9.99999974E-6 : f32
    %183 = vector.broadcast %cst_75 : f32 to vector<16x1xf32>
    %184 = arith.addf %182, %183 : vector<16x1xf32>
    %185 = math.rsqrt %184 : vector<16x1xf32>
    %186 = vector.broadcast %185 : vector<16x1xf32> to vector<16x32xf32>
    %187 = arith.mulf %177, %186 : vector<16x32xf32>
    %188 = vector.broadcast %170 : vector<1x32xf32> to vector<16x32xf32>
    %189 = arith.mulf %187, %188 : vector<16x32xf32>
    %190 = vector.broadcast %171 : vector<1x32xf32> to vector<16x32xf32>
    %191 = arith.addf %189, %190 : vector<16x32xf32>
    %c0_76 = arith.constant 0 : index
    %c0_77 = arith.constant 0 : index
    %c640 = arith.constant 640 : index
    %192 = vector.load %arg3[%c0_76, %c0_77, %c640] : memref<2x64x896xf32, #tpu.memory_space<vmem>>, vector<1x32x64xf32>
    %193 = vector.shape_cast %192 : vector<1x32x64xf32> to vector<32x64xf32>
    %194 = arith.truncf %191 : vector<16x32xf32> to vector<16x32xbf16>
    %195 = arith.truncf %193 : vector<32x64xf32> to vector<32x64xbf16>
    %cst_78 = arith.constant dense<0.000000e+00> : vector<16x64xf32>
    %196 = tpu.matmul %194, %195, %cst_78 {dimension_numbers = #tpu.dot_dimension_numbers<[1], [0], [0], [1], [0, 0, 1, 1], [], []>} : vector<16x32xbf16>, vector<32x64xbf16>, vector<16x64xf32> -> vector<16x64xf32>
    %c0_79 = arith.constant 0 : index
    %c0_80 = arith.constant 0 : index
    %c640_81 = arith.constant 640 : index
    %197 = vector.load %arg4[%c0_79, %c0_80, %c640_81] : memref<2x1x896xf32, #tpu.memory_space<vmem>>, vector<1x1x64xf32>
    %198 = vector.shape_cast %197 : vector<1x1x64xf32> to vector<1x64xf32>
    %199 = vector.broadcast %198 : vector<1x64xf32> to vector<16x64xf32>
    %200 = arith.addf %196, %199 : vector<16x64xf32>
    %cst_82 = arith.constant 0.000000e+00 : f32
    %201 = vector.broadcast %cst_82 : f32 to vector<16x64xf32>
    %202 = arith.maximumf %200, %201 : vector<16x64xf32>
    %c0_83 = arith.constant 0 : index
    %c0_84 = arith.constant 0 : index
    %c768 = arith.constant 768 : index
    %203 = vector.load %arg3[%c0_83, %c0_84, %c768] : memref<2x64x896xf32, #tpu.memory_space<vmem>>, vector<1x64x32xf32>
    %204 = vector.shape_cast %203 : vector<1x64x32xf32> to vector<64x32xf32>
    %205 = arith.truncf %202 : vector<16x64xf32> to vector<16x64xbf16>
    %206 = arith.truncf %204 : vector<64x32xf32> to vector<64x32xbf16>
    %cst_85 = arith.constant dense<0.000000e+00> : vector<16x32xf32>
    %207 = tpu.matmul %205, %206, %cst_85 {dimension_numbers = #tpu.dot_dimension_numbers<[1], [0], [0], [1], [0, 0, 1, 1], [], []>} : vector<16x64xbf16>, vector<64x32xbf16>, vector<16x32xf32> -> vector<16x32xf32>
    %208 = arith.addf %169, %207 : vector<16x32xf32>
    %c0_86 = arith.constant 0 : index
    %c0_87 = arith.constant 0 : index
    %c768_88 = arith.constant 768 : index
    %209 = vector.load %arg4[%c0_86, %c0_87, %c768_88] : memref<2x1x896xf32, #tpu.memory_space<vmem>>, vector<1x1x32xf32>
    %210 = vector.shape_cast %209 : vector<1x1x32xf32> to vector<1x32xf32>
    %211 = vector.broadcast %210 : vector<1x32xf32> to vector<16x32xf32>
    %212 = arith.addf %208, %211 : vector<16x32xf32>
    %c1 = arith.constant 1 : index
    %c0_89 = arith.constant 0 : index
    %c0_90 = arith.constant 0 : index
    %213 = vector.load %arg5[%c1, %c0_89, %c0_90] : memref<2x6x32xf32, #tpu.memory_space<vmem>>, vector<1x6x32xf32>
    %214 = vector.shape_cast %213 : vector<1x6x32xf32> to vector<6x32xf32>
    %215 = vector.extract_strided_slice %214 {offsets = [0, 0], sizes = [1, 32], strides = [1, 1]} : vector<6x32xf32> to vector<1x32xf32>
    %216 = vector.extract_strided_slice %214 {offsets = [1, 0], sizes = [1, 32], strides = [1, 1]} : vector<6x32xf32> to vector<1x32xf32>
    %cst_91 = arith.constant dense<0.000000e+00> : vector<16xf32>
    %217 = vector.multi_reduction <add>, %212, %cst_91 [1] : vector<16x32xf32> to vector<16xf32>
    %218 = vector.shape_cast %217 : vector<16xf32> to vector<16x1xf32>
    %cst_92 = arith.constant 3.200000e+01 : f32
    %219 = vector.broadcast %cst_92 : f32 to vector<16x1xf32>
    %220 = arith.divf %218, %219 : vector<16x1xf32>
    %221 = vector.broadcast %220 : vector<16x1xf32> to vector<16x32xf32>
    %222 = arith.subf %212, %221 : vector<16x32xf32>
    %223 = arith.mulf %222, %222 : vector<16x32xf32>
    %cst_93 = arith.constant dense<0.000000e+00> : vector<16xf32>
    %224 = vector.multi_reduction <add>, %223, %cst_93 [1] : vector<16x32xf32> to vector<16xf32>
    %225 = vector.shape_cast %224 : vector<16xf32> to vector<16x1xf32>
    %cst_94 = arith.constant 3.200000e+01 : f32
    %226 = vector.broadcast %cst_94 : f32 to vector<16x1xf32>
    %227 = arith.divf %225, %226 : vector<16x1xf32>
    %cst_95 = arith.constant 9.99999974E-6 : f32
    %228 = vector.broadcast %cst_95 : f32 to vector<16x1xf32>
    %229 = arith.addf %227, %228 : vector<16x1xf32>
    %230 = math.rsqrt %229 : vector<16x1xf32>
    %231 = vector.broadcast %230 : vector<16x1xf32> to vector<16x32xf32>
    %232 = arith.mulf %222, %231 : vector<16x32xf32>
    %233 = vector.broadcast %215 : vector<1x32xf32> to vector<16x32xf32>
    %234 = arith.mulf %232, %233 : vector<16x32xf32>
    %235 = vector.broadcast %216 : vector<1x32xf32> to vector<16x32xf32>
    %236 = arith.addf %234, %235 : vector<16x32xf32>
    %c1_96 = arith.constant 1 : index
    %c0_97 = arith.constant 0 : index
    %c0_98 = arith.constant 0 : index
    %237 = vector.load %arg3[%c1_96, %c0_97, %c0_98] : memref<2x64x896xf32, #tpu.memory_space<vmem>>, vector<1x32x96xf32>
    %238 = vector.shape_cast %237 : vector<1x32x96xf32> to vector<32x96xf32>
    %239 = arith.truncf %236 : vector<16x32xf32> to vector<16x32xbf16>
    %240 = arith.truncf %238 : vector<32x96xf32> to vector<32x96xbf16>
    %cst_99 = arith.constant dense<0.000000e+00> : vector<16x96xf32>
    %241 = tpu.matmul %239, %240, %cst_99 {dimension_numbers = #tpu.dot_dimension_numbers<[1], [0], [0], [1], [0, 0, 1, 1], [], []>} : vector<16x32xbf16>, vector<32x96xbf16>, vector<16x96xf32> -> vector<16x96xf32>
    %c1_100 = arith.constant 1 : index
    %c0_101 = arith.constant 0 : index
    %c0_102 = arith.constant 0 : index
    %242 = vector.load %arg4[%c1_100, %c0_101, %c0_102] : memref<2x1x896xf32, #tpu.memory_space<vmem>>, vector<1x1x96xf32>
    %243 = vector.shape_cast %242 : vector<1x1x96xf32> to vector<1x96xf32>
    %244 = vector.broadcast %243 : vector<1x96xf32> to vector<16x96xf32>
    %245 = arith.addf %241, %244 : vector<16x96xf32>
    %246 = vector.extract_strided_slice %245 {offsets = [0, 0], sizes = [16, 32], strides = [1, 1]} : vector<16x96xf32> to vector<16x32xf32>
    %247 = vector.extract_strided_slice %245 {offsets = [0, 32], sizes = [16, 32], strides = [1, 1]} : vector<16x96xf32> to vector<16x32xf32>
    %248 = vector.extract_strided_slice %245 {offsets = [0, 64], sizes = [16, 32], strides = [1, 1]} : vector<16x96xf32> to vector<16x32xf32>
    %c1_103 = arith.constant 1 : index
    %c0_104 = arith.constant 0 : index
    %c128_105 = arith.constant 128 : index
    %249 = vector.load %arg3[%c1_103, %c0_104, %c128_105] : memref<2x64x896xf32, #tpu.memory_space<vmem>>, vector<1x32x32xf32>
    %250 = vector.shape_cast %249 : vector<1x32x32xf32> to vector<32x32xf32>
    %c1_106 = arith.constant 1 : index
    %c0_107 = arith.constant 0 : index
    %c128_108 = arith.constant 128 : index
    %251 = vector.load %arg4[%c1_106, %c0_107, %c128_108] : memref<2x1x896xf32, #tpu.memory_space<vmem>>, vector<1x1x32xf32>
    %252 = vector.shape_cast %251 : vector<1x1x32xf32> to vector<1x32xf32>
    %253 = tpu.concatenate %246, %246, %246, %246 in 0 : vector<16x32xf32>, vector<16x32xf32>, vector<16x32xf32>, vector<16x32xf32> -> vector<64x32xf32>
    %254 = arith.mulf %253, %4 : vector<64x32xf32>
    %255 = arith.truncf %254 : vector<64x32xf32> to vector<64x32xbf16>
    %256 = arith.truncf %247 : vector<16x32xf32> to vector<16x32xbf16>
    "tpu.trace_start"() <{level = 10 : i32, message = "mc,sc->ms"}> : () -> ()
    %cst_109 = arith.constant dense<0.000000e+00> : vector<64x16xf32>
    %257 = tpu.matmul %255, %256, %cst_109 {dimension_numbers = #tpu.dot_dimension_numbers<[1], [1], [0], [0], [0, 0, 1, 0], [], []>} : vector<64x32xbf16>, vector<16x32xbf16>, vector<64x16xf32> -> vector<64x16xf32>
    "tpu.trace_stop"() : () -> ()
    %cst_110 = arith.constant 0.353553385 : f32
    %258 = vector.broadcast %cst_110 : f32 to vector<64x16xf32>
    %259 = arith.mulf %257, %258 : vector<64x16xf32>
    %260 = arith.addf %259, %5 : vector<64x16xf32>
    %cst_111 = arith.constant dense<0xFF800000> : vector<64xf32>
    %261 = vector.multi_reduction <maximumf>, %260, %cst_111 [1] : vector<64x16xf32> to vector<64xf32>
    %262 = vector.shape_cast %261 : vector<64xf32> to vector<64x1xf32>
    %263 = vector.broadcast %262 : vector<64x1xf32> to vector<64x16xf32>
    %264 = arith.subf %260, %263 : vector<64x16xf32>
    %265 = math.exp %264 : vector<64x16xf32>
    %cst_112 = arith.constant dense<0.000000e+00> : vector<64xf32>
    %266 = vector.multi_reduction <add>, %265, %cst_112 [1] : vector<64x16xf32> to vector<64xf32>
    %267 = vector.shape_cast %266 : vector<64xf32> to vector<64x1xf32>
    %268 = tpu.reciprocal %267 {approx = true} : vector<64x1xf32> -> vector<64x1xf32>
    %269 = vector.broadcast %268 : vector<64x1xf32> to vector<64x16xf32>
    %270 = arith.mulf %265, %269 : vector<64x16xf32>
    %271 = arith.truncf %270 : vector<64x16xf32> to vector<64x16xbf16>
    %272 = arith.truncf %248 : vector<16x32xf32> to vector<16x32xbf16>
    %cst_113 = arith.constant dense<0.000000e+00> : vector<64x32xf32>
    %273 = tpu.matmul %271, %272, %cst_113 {dimension_numbers = #tpu.dot_dimension_numbers<[1], [0], [0], [1], [0, 0, 1, 1], [], []>} : vector<64x16xbf16>, vector<16x32xbf16>, vector<64x32xf32> -> vector<64x32xf32>
    %274 = arith.mulf %273, %4 : vector<64x32xf32>
    %275 = vector.extract_strided_slice %274 {offsets = [0, 0], sizes = [16, 32], strides = [1, 1]} : vector<64x32xf32> to vector<16x32xf32>
    %276 = vector.extract_strided_slice %274 {offsets = [16, 0], sizes = [16, 32], strides = [1, 1]} : vector<64x32xf32> to vector<16x32xf32>
    %277 = arith.addf %275, %276 : vector<16x32xf32>
    %278 = vector.extract_strided_slice %274 {offsets = [32, 0], sizes = [16, 32], strides = [1, 1]} : vector<64x32xf32> to vector<16x32xf32>
    %279 = arith.addf %277, %278 : vector<16x32xf32>
    %280 = vector.extract_strided_slice %274 {offsets = [48, 0], sizes = [16, 32], strides = [1, 1]} : vector<64x32xf32> to vector<16x32xf32>
    %281 = arith.addf %279, %280 : vector<16x32xf32>
    %282 = arith.truncf %281 : vector<16x32xf32> to vector<16x32xbf16>
    %283 = arith.truncf %250 : vector<32x32xf32> to vector<32x32xbf16>
    %cst_114 = arith.constant dense<0.000000e+00> : vector<16x32xf32>
    %284 = tpu.matmul %282, %283, %cst_114 {dimension_numbers = #tpu.dot_dimension_numbers<[1], [0], [0], [1], [0, 0, 1, 1], [], []>} : vector<16x32xbf16>, vector<32x32xbf16>, vector<16x32xf32> -> vector<16x32xf32>
    %285 = vector.broadcast %252 : vector<1x32xf32> to vector<16x32xf32>
    %286 = arith.addf %284, %285 : vector<16x32xf32>
    %287 = arith.addf %212, %286 : vector<16x32xf32>
    %288 = vector.extract_strided_slice %214 {offsets = [2, 0], sizes = [1, 32], strides = [1, 1]} : vector<6x32xf32> to vector<1x32xf32>
    %289 = vector.extract_strided_slice %214 {offsets = [3, 0], sizes = [1, 32], strides = [1, 1]} : vector<6x32xf32> to vector<1x32xf32>
    %cst_115 = arith.constant dense<0.000000e+00> : vector<16xf32>
    %290 = vector.multi_reduction <add>, %287, %cst_115 [1] : vector<16x32xf32> to vector<16xf32>
    %291 = vector.shape_cast %290 : vector<16xf32> to vector<16x1xf32>
    %cst_116 = arith.constant 3.200000e+01 : f32
    %292 = vector.broadcast %cst_116 : f32 to vector<16x1xf32>
    %293 = arith.divf %291, %292 : vector<16x1xf32>
    %294 = vector.broadcast %293 : vector<16x1xf32> to vector<16x32xf32>
    %295 = arith.subf %287, %294 : vector<16x32xf32>
    %296 = arith.mulf %295, %295 : vector<16x32xf32>
    %cst_117 = arith.constant dense<0.000000e+00> : vector<16xf32>
    %297 = vector.multi_reduction <add>, %296, %cst_117 [1] : vector<16x32xf32> to vector<16xf32>
    %298 = vector.shape_cast %297 : vector<16xf32> to vector<16x1xf32>
    %cst_118 = arith.constant 3.200000e+01 : f32
    %299 = vector.broadcast %cst_118 : f32 to vector<16x1xf32>
    %300 = arith.divf %298, %299 : vector<16x1xf32>
    %cst_119 = arith.constant 9.99999974E-6 : f32
    %301 = vector.broadcast %cst_119 : f32 to vector<16x1xf32>
    %302 = arith.addf %300, %301 : vector<16x1xf32>
    %303 = math.rsqrt %302 : vector<16x1xf32>
    %304 = vector.broadcast %303 : vector<16x1xf32> to vector<16x32xf32>
    %305 = arith.mulf %295, %304 : vector<16x32xf32>
    %306 = vector.broadcast %288 : vector<1x32xf32> to vector<16x32xf32>
    %307 = arith.mulf %305, %306 : vector<16x32xf32>
    %308 = vector.broadcast %289 : vector<1x32xf32> to vector<16x32xf32>
    %309 = arith.addf %307, %308 : vector<16x32xf32>
    %c1_120 = arith.constant 1 : index
    %c0_121 = arith.constant 0 : index
    %c256_122 = arith.constant 256 : index
    %310 = vector.load %arg3[%c1_120, %c0_121, %c256_122] : memref<2x64x896xf32, #tpu.memory_space<vmem>>, vector<1x32x32xf32>
    %311 = vector.shape_cast %310 : vector<1x32x32xf32> to vector<32x32xf32>
    %312 = arith.truncf %309 : vector<16x32xf32> to vector<16x32xbf16>
    %313 = arith.truncf %311 : vector<32x32xf32> to vector<32x32xbf16>
    %cst_123 = arith.constant dense<0.000000e+00> : vector<16x32xf32>
    %314 = tpu.matmul %312, %313, %cst_123 {dimension_numbers = #tpu.dot_dimension_numbers<[1], [0], [0], [1], [0, 0, 1, 1], [], []>} : vector<16x32xbf16>, vector<32x32xbf16>, vector<16x32xf32> -> vector<16x32xf32>
    %c1_124 = arith.constant 1 : index
    %c0_125 = arith.constant 0 : index
    %c256_126 = arith.constant 256 : index
    %315 = vector.load %arg4[%c1_124, %c0_125, %c256_126] : memref<2x1x896xf32, #tpu.memory_space<vmem>>, vector<1x1x32xf32>
    %316 = vector.shape_cast %315 : vector<1x1x32xf32> to vector<1x32xf32>
    %317 = vector.broadcast %316 : vector<1x32xf32> to vector<16x32xf32>
    %318 = arith.addf %314, %317 : vector<16x32xf32>
    %c1_127 = arith.constant 1 : index
    %c0_128 = arith.constant 0 : index
    %c384_129 = arith.constant 384 : index
    %319 = vector.load %arg3[%c1_127, %c0_128, %c384_129] : memref<2x64x896xf32, #tpu.memory_space<vmem>>, vector<1x32x64xf32>
    %320 = vector.shape_cast %319 : vector<1x32x64xf32> to vector<32x64xf32>
    %321 = arith.truncf %3 : vector<8x32xf32> to vector<8x32xbf16>
    %322 = arith.truncf %320 : vector<32x64xf32> to vector<32x64xbf16>
    %cst_130 = arith.constant dense<0.000000e+00> : vector<8x64xf32>
    %323 = tpu.matmul %321, %322, %cst_130 {dimension_numbers = #tpu.dot_dimension_numbers<[1], [0], [0], [1], [0, 0, 1, 1], [], []>} : vector<8x32xbf16>, vector<32x64xbf16>, vector<8x64xf32> -> vector<8x64xf32>
    %c1_131 = arith.constant 1 : index
    %c0_132 = arith.constant 0 : index
    %c384_133 = arith.constant 384 : index
    %324 = vector.load %arg4[%c1_131, %c0_132, %c384_133] : memref<2x1x896xf32, #tpu.memory_space<vmem>>, vector<1x1x64xf32>
    %325 = vector.shape_cast %324 : vector<1x1x64xf32> to vector<1x64xf32>
    %326 = vector.broadcast %325 : vector<1x64xf32> to vector<8x64xf32>
    %327 = arith.addf %323, %326 : vector<8x64xf32>
    %328 = vector.extract_strided_slice %327 {offsets = [0, 0], sizes = [8, 32], strides = [1, 1]} : vector<8x64xf32> to vector<8x32xf32>
    %329 = vector.extract_strided_slice %327 {offsets = [0, 32], sizes = [8, 32], strides = [1, 1]} : vector<8x64xf32> to vector<8x32xf32>
    %c1_134 = arith.constant 1 : index
    %c0_135 = arith.constant 0 : index
    %c512_136 = arith.constant 512 : index
    %330 = vector.load %arg3[%c1_134, %c0_135, %c512_136] : memref<2x64x896xf32, #tpu.memory_space<vmem>>, vector<1x32x32xf32>
    %331 = vector.shape_cast %330 : vector<1x32x32xf32> to vector<32x32xf32>
    %c1_137 = arith.constant 1 : index
    %c0_138 = arith.constant 0 : index
    %c512_139 = arith.constant 512 : index
    %332 = vector.load %arg4[%c1_137, %c0_138, %c512_139] : memref<2x1x896xf32, #tpu.memory_space<vmem>>, vector<1x1x32xf32>
    %333 = vector.shape_cast %332 : vector<1x1x32xf32> to vector<1x32xf32>
    %334 = tpu.concatenate %318, %318, %318, %318 in 0 : vector<16x32xf32>, vector<16x32xf32>, vector<16x32xf32>, vector<16x32xf32> -> vector<64x32xf32>
    %335 = arith.mulf %334, %4 : vector<64x32xf32>
    %336 = arith.truncf %335 : vector<64x32xf32> to vector<64x32xbf16>
    %337 = arith.truncf %328 : vector<8x32xf32> to vector<8x32xbf16>
    "tpu.trace_start"() <{level = 10 : i32, message = "mc,sc->ms"}> : () -> ()
    %cst_140 = arith.constant dense<0.000000e+00> : vector<64x8xf32>
    %338 = tpu.matmul %336, %337, %cst_140 {dimension_numbers = #tpu.dot_dimension_numbers<[1], [1], [0], [0], [0, 0, 1, 0], [], []>} : vector<64x32xbf16>, vector<8x32xbf16>, vector<64x8xf32> -> vector<64x8xf32>
    "tpu.trace_stop"() : () -> ()
    %cst_141 = arith.constant 0.353553385 : f32
    %339 = vector.broadcast %cst_141 : f32 to vector<64x8xf32>
    %340 = arith.mulf %338, %339 : vector<64x8xf32>
    %341 = arith.addf %340, %6 : vector<64x8xf32>
    %cst_142 = arith.constant dense<0xFF800000> : vector<64xf32>
    %342 = vector.multi_reduction <maximumf>, %341, %cst_142 [1] : vector<64x8xf32> to vector<64xf32>
    %343 = vector.shape_cast %342 : vector<64xf32> to vector<64x1xf32>
    %344 = vector.broadcast %343 : vector<64x1xf32> to vector<64x8xf32>
    %345 = arith.subf %341, %344 : vector<64x8xf32>
    %346 = math.exp %345 : vector<64x8xf32>
    %cst_143 = arith.constant dense<0.000000e+00> : vector<64xf32>
    %347 = vector.multi_reduction <add>, %346, %cst_143 [1] : vector<64x8xf32> to vector<64xf32>
    %348 = vector.shape_cast %347 : vector<64xf32> to vector<64x1xf32>
    %349 = tpu.reciprocal %348 {approx = true} : vector<64x1xf32> -> vector<64x1xf32>
    %350 = vector.broadcast %349 : vector<64x1xf32> to vector<64x8xf32>
    %351 = arith.mulf %346, %350 : vector<64x8xf32>
    %352 = arith.truncf %351 : vector<64x8xf32> to vector<64x8xbf16>
    %353 = arith.truncf %329 : vector<8x32xf32> to vector<8x32xbf16>
    %cst_144 = arith.constant dense<0.000000e+00> : vector<64x32xf32>
    %354 = tpu.matmul %352, %353, %cst_144 {dimension_numbers = #tpu.dot_dimension_numbers<[1], [0], [0], [1], [0, 0, 1, 1], [], []>} : vector<64x8xbf16>, vector<8x32xbf16>, vector<64x32xf32> -> vector<64x32xf32>
    %355 = arith.mulf %354, %4 : vector<64x32xf32>
    %356 = vector.extract_strided_slice %355 {offsets = [0, 0], sizes = [16, 32], strides = [1, 1]} : vector<64x32xf32> to vector<16x32xf32>
    %357 = vector.extract_strided_slice %355 {offsets = [16, 0], sizes = [16, 32], strides = [1, 1]} : vector<64x32xf32> to vector<16x32xf32>
    %358 = arith.addf %356, %357 : vector<16x32xf32>
    %359 = vector.extract_strided_slice %355 {offsets = [32, 0], sizes = [16, 32], strides = [1, 1]} : vector<64x32xf32> to vector<16x32xf32>
    %360 = arith.addf %358, %359 : vector<16x32xf32>
    %361 = vector.extract_strided_slice %355 {offsets = [48, 0], sizes = [16, 32], strides = [1, 1]} : vector<64x32xf32> to vector<16x32xf32>
    %362 = arith.addf %360, %361 : vector<16x32xf32>
    %363 = arith.truncf %362 : vector<16x32xf32> to vector<16x32xbf16>
    %364 = arith.truncf %331 : vector<32x32xf32> to vector<32x32xbf16>
    %cst_145 = arith.constant dense<0.000000e+00> : vector<16x32xf32>
    %365 = tpu.matmul %363, %364, %cst_145 {dimension_numbers = #tpu.dot_dimension_numbers<[1], [0], [0], [1], [0, 0, 1, 1], [], []>} : vector<16x32xbf16>, vector<32x32xbf16>, vector<16x32xf32> -> vector<16x32xf32>
    %366 = vector.broadcast %333 : vector<1x32xf32> to vector<16x32xf32>
    %367 = arith.addf %365, %366 : vector<16x32xf32>
    %368 = arith.addf %287, %367 : vector<16x32xf32>
    %369 = vector.extract_strided_slice %214 {offsets = [4, 0], sizes = [1, 32], strides = [1, 1]} : vector<6x32xf32> to vector<1x32xf32>
    %370 = vector.extract_strided_slice %214 {offsets = [5, 0], sizes = [1, 32], strides = [1, 1]} : vector<6x32xf32> to vector<1x32xf32>
    %cst_146 = arith.constant dense<0.000000e+00> : vector<16xf32>
    %371 = vector.multi_reduction <add>, %368, %cst_146 [1] : vector<16x32xf32> to vector<16xf32>
    %372 = vector.shape_cast %371 : vector<16xf32> to vector<16x1xf32>
    %cst_147 = arith.constant 3.200000e+01 : f32
    %373 = vector.broadcast %cst_147 : f32 to vector<16x1xf32>
    %374 = arith.divf %372, %373 : vector<16x1xf32>
    %375 = vector.broadcast %374 : vector<16x1xf32> to vector<16x32xf32>
    %376 = arith.subf %368, %375 : vector<16x32xf32>
    %377 = arith.mulf %376, %376 : vector<16x32xf32>
    %cst_148 = arith.constant dense<0.000000e+00> : vector<16xf32>
    %378 = vector.multi_reduction <add>, %377, %cst_148 [1] : vector<16x32xf32> to vector<16xf32>
    %379 = vector.shape_cast %378 : vector<16xf32> to vector<16x1xf32>
    %cst_149 = arith.constant 3.200000e+01 : f32
    %380 = vector.broadcast %cst_149 : f32 to vector<16x1xf32>
    %381 = arith.divf %379, %380 : vector<16x1xf32>
    %cst_150 = arith.constant 9.99999974E-6 : f32
    %382 = vector.broadcast %cst_150 : f32 to vector<16x1xf32>
    %383 = arith.addf %381, %382 : vector<16x1xf32>
    %384 = math.rsqrt %383 : vector<16x1xf32>
    %385 = vector.broadcast %384 : vector<16x1xf32> to vector<16x32xf32>
    %386 = arith.mulf %376, %385 : vector<16x32xf32>
    %387 = vector.broadcast %369 : vector<1x32xf32> to vector<16x32xf32>
    %388 = arith.mulf %386, %387 : vector<16x32xf32>
    %389 = vector.broadcast %370 : vector<1x32xf32> to vector<16x32xf32>
    %390 = arith.addf %388, %389 : vector<16x32xf32>
    %c1_151 = arith.constant 1 : index
    %c0_152 = arith.constant 0 : index
    %c640_153 = arith.constant 640 : index
    %391 = vector.load %arg3[%c1_151, %c0_152, %c640_153] : memref<2x64x896xf32, #tpu.memory_space<vmem>>, vector<1x32x64xf32>
    %392 = vector.shape_cast %391 : vector<1x32x64xf32> to vector<32x64xf32>
    %393 = arith.truncf %390 : vector<16x32xf32> to vector<16x32xbf16>
    %394 = arith.truncf %392 : vector<32x64xf32> to vector<32x64xbf16>
    %cst_154 = arith.constant dense<0.000000e+00> : vector<16x64xf32>
    %395 = tpu.matmul %393, %394, %cst_154 {dimension_numbers = #tpu.dot_dimension_numbers<[1], [0], [0], [1], [0, 0, 1, 1], [], []>} : vector<16x32xbf16>, vector<32x64xbf16>, vector<16x64xf32> -> vector<16x64xf32>
    %c1_155 = arith.constant 1 : index
    %c0_156 = arith.constant 0 : index
    %c640_157 = arith.constant 640 : index
    %396 = vector.load %arg4[%c1_155, %c0_156, %c640_157] : memref<2x1x896xf32, #tpu.memory_space<vmem>>, vector<1x1x64xf32>
    %397 = vector.shape_cast %396 : vector<1x1x64xf32> to vector<1x64xf32>
    %398 = vector.broadcast %397 : vector<1x64xf32> to vector<16x64xf32>
    %399 = arith.addf %395, %398 : vector<16x64xf32>
    %cst_158 = arith.constant 0.000000e+00 : f32
    %400 = vector.broadcast %cst_158 : f32 to vector<16x64xf32>
    %401 = arith.maximumf %399, %400 : vector<16x64xf32>
    %c1_159 = arith.constant 1 : index
    %c0_160 = arith.constant 0 : index
    %c768_161 = arith.constant 768 : index
    %402 = vector.load %arg3[%c1_159, %c0_160, %c768_161] : memref<2x64x896xf32, #tpu.memory_space<vmem>>, vector<1x64x32xf32>
    %403 = vector.shape_cast %402 : vector<1x64x32xf32> to vector<64x32xf32>
    %404 = arith.truncf %401 : vector<16x64xf32> to vector<16x64xbf16>
    %405 = arith.truncf %403 : vector<64x32xf32> to vector<64x32xbf16>
    %cst_162 = arith.constant dense<0.000000e+00> : vector<16x32xf32>
    %406 = tpu.matmul %404, %405, %cst_162 {dimension_numbers = #tpu.dot_dimension_numbers<[1], [0], [0], [1], [0, 0, 1, 1], [], []>} : vector<16x64xbf16>, vector<64x32xbf16>, vector<16x32xf32> -> vector<16x32xf32>
    %407 = arith.addf %368, %406 : vector<16x32xf32>
    %c1_163 = arith.constant 1 : index
    %c0_164 = arith.constant 0 : index
    %c768_165 = arith.constant 768 : index
    %408 = vector.load %arg4[%c1_163, %c0_164, %c768_165] : memref<2x1x896xf32, #tpu.memory_space<vmem>>, vector<1x1x32xf32>
    %409 = vector.shape_cast %408 : vector<1x1x32xf32> to vector<1x32xf32>
    %410 = vector.broadcast %409 : vector<1x32xf32> to vector<16x32xf32>
    %411 = arith.addf %407, %410 : vector<16x32xf32>
    %cst_166 = arith.constant dense<0.000000e+00> : vector<16xf32>
    %412 = vector.multi_reduction <add>, %411, %cst_166 [1] : vector<16x32xf32> to vector<16xf32>
    %413 = vector.shape_cast %412 : vector<16xf32> to vector<16x1xf32>
    %cst_167 = arith.constant 3.200000e+01 : f32
    %414 = vector.broadcast %cst_167 : f32 to vector<16x1xf32>
    %415 = arith.divf %413, %414 : vector<16x1xf32>
    %416 = vector.broadcast %415 : vector<16x1xf32> to vector<16x32xf32>
    %417 = arith.subf %411, %416 : vector<16x32xf32>
    %418 = arith.mulf %417, %417 : vector<16x32xf32>
    %cst_168 = arith.constant dense<0.000000e+00> : vector<16xf32>
    %419 = vector.multi_reduction <add>, %418, %cst_168 [1] : vector<16x32xf32> to vector<16xf32>
    %420 = vector.shape_cast %419 : vector<16xf32> to vector<16x1xf32>
    %cst_169 = arith.constant 3.200000e+01 : f32
    %421 = vector.broadcast %cst_169 : f32 to vector<16x1xf32>
    %422 = arith.divf %420, %421 : vector<16x1xf32>
    %cst_170 = arith.constant 9.99999974E-6 : f32
    %423 = vector.broadcast %cst_170 : f32 to vector<16x1xf32>
    %424 = arith.addf %422, %423 : vector<16x1xf32>
    %425 = math.rsqrt %424 : vector<16x1xf32>
    %426 = vector.broadcast %425 : vector<16x1xf32> to vector<16x32xf32>
    %427 = arith.mulf %417, %426 : vector<16x32xf32>
    %428 = vector.broadcast %10 : vector<1x32xf32> to vector<16x32xf32>
    %429 = arith.mulf %427, %428 : vector<16x32xf32>
    %430 = vector.broadcast %11 : vector<1x32xf32> to vector<16x32xf32>
    %431 = arith.addf %429, %430 : vector<16x32xf32>
    %c0_171 = arith.constant 0 : index
    %c0_172 = arith.constant 0 : index
    %432 = vector.load %arg7[%c0_171, %c0_172] : memref<32x128xf32, #tpu.memory_space<vmem>>, vector<32x128xf32>
    %433 = arith.truncf %431 : vector<16x32xf32> to vector<16x32xbf16>
    %434 = arith.truncf %432 : vector<32x128xf32> to vector<32x128xbf16>
    %cst_173 = arith.constant dense<0.000000e+00> : vector<16x128xf32>
    %435 = tpu.matmul %433, %434, %cst_173 {dimension_numbers = #tpu.dot_dimension_numbers<[1], [0], [0], [1], [0, 0, 1, 1], [], []>} : vector<16x32xbf16>, vector<32x128xbf16>, vector<16x128xf32> -> vector<16x128xf32>
    %c0_174 = arith.constant 0 : index
    %c0_175 = arith.constant 0 : index
    %436 = vector.load %arg8[%c0_174, %c0_175] : memref<1x128xf32, #tpu.memory_space<vmem>>, vector<1x128xf32>
    %437 = vector.broadcast %436 : vector<1x128xf32> to vector<16x128xf32>
    %438 = arith.addf %435, %437 : vector<16x128xf32>
    %439 = vector.shape_cast %438 : vector<16x128xf32> to vector<2x8x128xf32>
    %c0_176 = arith.constant 0 : index
    %c0_177 = arith.constant 0 : index
    %c0_178 = arith.constant 0 : index
    %440 = vector.load %arg14[%c0_176, %c0_177, %c0_178] : memref<2x8x128xf32, #tpu.memory_space<vmem>>, vector<2x8x128xf32>
    tpu.vector_store %arg14[%c0_176, %c0_177, %c0_178], %439 {strides = array<i32>} : memref<2x8x128xf32, #tpu.memory_space<vmem>>, vector<2x8x128xf32>,
    return
  }
  func.func @transform_0(%arg0: i32) -> (i32, i32, i32) {
    %c0_i32 = arith.constant 0 : i32
    %c0_i32_0 = arith.constant 0 : i32
    %c0_i32_1 = arith.constant 0 : i32
    %c0_i32_2 = arith.constant 0 : i32
    return %c0_i32, %c0_i32_0, %c0_i32_1 : i32, i32, i32
  }
  func.func @transform_1(%arg0: i32) -> (i32, i32, i32) {
    %c0_i32 = arith.constant 0 : i32
    %c0_i32_0 = arith.constant 0 : i32
    %c0_i32_1 = arith.constant 0 : i32
    %c0_i32_2 = arith.constant 0 : i32
    return %c0_i32, %c0_i32_0, %c0_i32_1 : i32, i32, i32
  }
  func.func @transform_2(%arg0: i32) -> (i32, i32, i32) {
    %c0_i32 = arith.constant 0 : i32
    %c0_i32_0 = arith.constant 0 : i32
    %c0_i32_1 = arith.constant 0 : i32
    %c0_i32_2 = arith.constant 0 : i32
    return %c0_i32, %c0_i32_0, %c0_i32_1 : i32, i32, i32
  }
  func.func @transform_3(%arg0: i32) -> (i32, i32, i32) {
    %c0_i32 = arith.constant 0 : i32
    %c0_i32_0 = arith.constant 0 : i32
    %c0_i32_1 = arith.constant 0 : i32
    %c0_i32_2 = arith.constant 0 : i32
    return %c0_i32, %c0_i32_0, %c0_i32_1 : i32, i32, i32
  }
  func.func @transform_4(%arg0: i32) -> (i32, i32, i32) {
    %c0_i32 = arith.constant 0 : i32
    %c0_i32_0 = arith.constant 0 : i32
    %c0_i32_1 = arith.constant 0 : i32
    %c0_i32_2 = arith.constant 0 : i32
    return %c0_i32, %c0_i32_0, %c0_i32_1 : i32, i32, i32
  }
  func.func @transform_5(%arg0: i32) -> (i32, i32) {
    %c0_i32 = arith.constant 0 : i32
    %c0_i32_0 = arith.constant 0 : i32
    %c0_i32_1 = arith.constant 0 : i32
    return %c0_i32, %c0_i32_0 : i32, i32
  }
  func.func @transform_6(%arg0: i32) -> (i32, i32) {
    %c0_i32 = arith.constant 0 : i32
    %c0_i32_0 = arith.constant 0 : i32
    %c0_i32_1 = arith.constant 0 : i32
    return %c0_i32, %c0_i32_0 : i32, i32
  }
  func.func @transform_7(%arg0: i32) -> (i32, i32) {
    %c0_i32 = arith.constant 0 : i32
    %c0_i32_0 = arith.constant 0 : i32
    %c0_i32_1 = arith.constant 0 : i32
    return %c0_i32, %c0_i32_0 : i32, i32
  }
  func.func @transform_8(%arg0: i32) -> (i32, i32) {
    %c0_i32 = arith.constant 0 : i32
    %c0_i32_0 = arith.constant 0 : i32
    %c0_i32_1 = arith.constant 0 : i32
    return %c0_i32, %c0_i32_0 : i32, i32
  }
  func.func @transform_9(%arg0: i32) -> (i32, i32) {
    %c0_i32 = arith.constant 0 : i32
    %c0_i32_0 = arith.constant 0 : i32
    %c0_i32_1 = arith.constant 0 : i32
    return %c0_i32, %c0_i32_0 : i32, i32
  }
  func.func @transform_10(%arg0: i32) -> (i32, i32) {
    %c0_i32 = arith.constant 0 : i32
    %c0_i32_0 = arith.constant 0 : i32
    %c0_i32_1 = arith.constant 0 : i32
    return %c0_i32, %c0_i32_0 : i32, i32
  }
  func.func @transform_11(%arg0: i32) -> (i32, i32) {
    %c0_i32 = arith.constant 0 : i32
    %c0_i32_0 = arith.constant 0 : i32
    %c0_i32_1 = arith.constant 0 : i32
    return %c0_i32, %c0_i32_0 : i32, i32
  }
  func.func @transform_12(%arg0: i32) -> (i32, i32) {
    %c0_i32 = arith.constant 0 : i32
    %c0_i32_0 = arith.constant 0 : i32
    %c0_i32_1 = arith.constant 0 : i32
    return %c0_i32, %c0_i32_0 : i32, i32
  }
  func.func @transform_13(%arg0: i32) -> (i32, i32, i32) {
    %c0_i32 = arith.constant 0 : i32
    %c0_i32_0 = arith.constant 0 : i32
    %c0_i32_1 = arith.constant 0 : i32
    %c0_i32_2 = arith.constant 0 : i32
    return %c0_i32, %c0_i32_0, %c0_i32_1 : i32, i32, i32
  }
}

</mosaic_0001>

<llo_original>
// kernel: fwd.1
$region0: #{fwd.1}
  #allocation0 [shape = 'u32[]', space=smem, size = 0x4, offset = 0x4, fixed_abs, tag = 'smem constant byte address 0x4 - core index']
  #allocation1 [shape = 'u32[72,128]{1,0:T(1,128)}', space=vmem, size = 0x9000, scoped, tag = 'internal scratch']
  %s0 = inlined_call_operand.hbm [shape: f32[2,8,32], index: 0, kind: input, shape index: {}]
  %s1 = inlined_call_operand.hbm [shape: f32[2,4,32], index: 1, kind: input, shape index: {}]
  %s2 = inlined_call_operand.hbm [shape: f32[2,64,896], index: 2, kind: input, shape index: {}]
  %s3 = inlined_call_operand.hbm [shape: f32[2,1,896], index: 3, kind: input, shape index: {}]
  %s4 = inlined_call_operand.hbm [shape: f32[2,6,32], index: 4, kind: input, shape index: {}]
  %s5 = inlined_call_operand.vmem [shape: f32[4,32], index: 5, kind: input, shape index: {}]
  %s6 = inlined_call_operand.hbm [shape: f32[32,128], index: 6, kind: input, shape index: {}]
  %s7 = inlined_call_operand.vmem [shape: f32[1,128], index: 7, kind: input, shape index: {}]
  %s8 = inlined_call_operand.hbm [shape: f32[64,32], index: 8, kind: input, shape index: {}]
  %s9 = inlined_call_operand.hbm [shape: f32[64,16], index: 9, kind: input, shape index: {}]
  %s10 = inlined_call_operand.hbm [shape: f32[64,8], index: 10, kind: input, shape index: {}]
  %s11 = inlined_call_operand.hbm [shape: f32[16,16], index: 11, kind: input, shape index: {}]
  %s12 = inlined_call_operand.hbm [shape: f32[16,32], index: 12, kind: input, shape index: {}]
  %s13 = inlined_call_operand.hbm [shape: f32[2,8,128], index: 13, kind: output, shape index: {}]
  %s14 = sld [smem:[#allocation0]]
  $region106: #{fwd.1} parent=0
    _
  %s16 = ssub.s32 1, %s14
  %s17 = scalar_select 0, %s16, %s14
  $region1: #{fwd.1} parent=0
    #allocation2 [shape = 'u8[8192]{0}', space=vmem, size = 0x2000, scoped, tag = 'input window, operand 0, single buffered']
    #allocation3 [shape = 's32[1]{0}', space=sflag, size = 0x4, scoped, tag = 'scoped memory for fwd.1']
    #allocation4 [shape = 's32[1]{0}', space=sflag, size = 0x4, scoped, tag = 'scoped memory for fwd.1']
    #allocation5 [shape = 'u8[4096]{0}', space=vmem, size = 0x1000, scoped, tag = 'input window, operand 1, single buffered']
    #allocation6 [shape = 's32[1]{0}', space=sflag, size = 0x4, scoped, tag = 'scoped memory for fwd.1']
    #allocation7 [shape = 'u8[458752]{0}', space=vmem, size = 0x70000, scoped, tag = 'input window, operand 2, single buffered']
    #allocation8 [shape = 'u8[7168]{0}', space=vmem, size = 0x1c00, scoped, tag = 'input window, operand 3, single buffered']
    #allocation9 [shape = 's32[1]{0}', space=sflag, size = 0x4, scoped, tag = 'scoped memory for fwd.1']
    #allocation10 [shape = 'u8[8192]{0}', space=vmem, size = 0x2000, scoped, tag = 'input window, operand 4, single buffered']
    #allocation11 [shape = 'u8[16384]{0}', space=vmem, size = 0x4000, scoped, tag = 'input window, operand 6, single buffered']
    #allocation12 [shape = 's32[1]{0}', space=sflag, size = 0x4, scoped, tag = 'scoped memory for fwd.1']
    #allocation13 [shape = 'u8[32768]{0}', space=vmem, size = 0x8000, scoped, tag = 'input window, operand 8, single buffered']
    #allocation14 [shape = 'u8[32768]{0}', space=vmem, size = 0x8000, scoped, tag = 'input window, operand 9, single buffered']
    #allocation15 [shape = 's32[1]{0}', space=sflag, size = 0x4, scoped, tag = 'scoped memory for fwd.1']
    #allocation16 [shape = 'u8[32768]{0}', space=vmem, size = 0x8000, scoped, tag = 'input window, operand 10, single buffered']
    #allocation17 [shape = 'u8[8192]{0}', space=vmem, size = 0x2000, scoped, tag = 'input window, operand 11, single buffered']
    #allocation18 [shape = 's32[1]{0}', space=sflag, size = 0x4, scoped, tag = 'scoped memory for fwd.1']
    #allocation19 [shape = 'u8[8192]{0}', space=vmem, size = 0x2000, scoped, tag = 'input window, operand 12, single buffered']
    #allocation20 [shape = 'u8[8192]{0}', space=vmem, size = 0x2000, scoped, tag = 'output window, operand 0, single buffered']
    %18 = vsyncpa [#allocation3], 0
    %19 = vsyncpa [#allocation6], 0
    %20 = vsyncpa [#allocation9], 0
    %21 = vsyncpa [#allocation12], 0
    %22 = vsyncpa [#allocation15], 0
    %23 = vsyncpa [#allocation18], 0
    %24 = vsyncpa [#allocation4], 0
    // Predicated region
    $region2: #{fwd.1} parent=1 // pred_check
      _
    $region3: #{fwd.1} parent=1 // pred_check_branch
      %26 = sbr.rel (0) target = $region5
    $region4: #{fwd.1} parent=1 // pred_region
      %28 = vsyncadd [#allocation3], 0
      %s29 = sshll.u32 %s0, 4
      %s30 = int_to_ptr.hbm [resolvable:$true] %s29
      %s31 = sshll.u32 [#allocation2], 4
      %s32 = int_to_ptr.vmem [resolvable:$true] %s31
      %37 = dma.hbm_to_vmem [thread:$0]  %s30, 256, %s32, [#allocation3], 128, 128, 8
    $region5: #{fwd.1} parent=1 // pred_fallthru
      _
    // Predicated region
    $region6: #{fwd.1} parent=1 // pred_check
      _
    $region7: #{fwd.1} parent=1 // pred_check_branch
      %39 = sbr.rel (0) target = $region9
    $region8: #{fwd.1} parent=1 // pred_region
      %41 = vsyncadd [#allocation6], 0
      %s42 = sshll.u32 %s1, 4
      %s43 = int_to_ptr.hbm [resolvable:$true] %s42
      %s44 = sshll.u32 [#allocation5], 4
      %s45 = int_to_ptr.vmem [resolvable:$true] %s44
      %50 = dma.hbm_to_vmem [thread:$0]  %s43, 128, %s45, [#allocation6], 64, 64, 4
    $region9: #{fwd.1} parent=1 // pred_fallthru
      _
    // Predicated region
    $region10: #{fwd.1} parent=1 // pred_check
      _
    $region11: #{fwd.1} parent=1 // pred_check_branch
      %52 = sbr.rel (0) target = $region13
    $region12: #{fwd.1} parent=1 // pred_region
      %54 = vsyncadd [#allocation6], 0
      %s55 = sshll.u32 %s2, 4
      %s56 = int_to_ptr.hbm [resolvable:$true] %s55
      %s57 = sshll.u32 [#allocation7], 4
      %s58 = int_to_ptr.vmem [resolvable:$true] %s57
      %63 = dma.hbm_to_vmem [thread:$0]  %s56, 14336, %s58, [#allocation6], 896, 896, 56
    $region13: #{fwd.1} parent=1 // pred_fallthru
      _
    // Predicated region
    $region14: #{fwd.1} parent=1 // pred_check
      _
    $region15: #{fwd.1} parent=1 // pred_check_branch
      %65 = sbr.rel (0) target = $region17
    $region16: #{fwd.1} parent=1 // pred_region
      %67 = vsyncadd [#allocation9], 0
      %s68 = sshll.u32 %s3, 4
      %s69 = int_to_ptr.hbm [resolvable:$true] %s68
      %s70 = sshll.u32 [#allocation8], 4
      %s71 = int_to_ptr.vmem [resolvable:$true] %s70
      %76 = dma.hbm_to_vmem [thread:$0]  %s69, 224, %s71, [#allocation9], 112, 112, 7
    $region17: #{fwd.1} parent=1 // pred_fallthru
      _
    // Predicated region
    $region18: #{fwd.1} parent=1 // pred_check
      _
    $region19: #{fwd.1} parent=1 // pred_check_branch
      %78 = sbr.rel (0) target = $region21
    $region20: #{fwd.1} parent=1 // pred_region
      %80 = vsyncadd [#allocation9], 0
      %s81 = sshll.u32 %s4, 4
      %s82 = int_to_ptr.hbm [resolvable:$true] %s81
      %s83 = sshll.u32 [#allocation10], 4
      %s84 = int_to_ptr.vmem [resolvable:$true] %s83
      %89 = dma.hbm_to_vmem [thread:$0]  %s82, 256, %s84, [#allocation9], 128, 128, 8
    $region21: #{fwd.1} parent=1 // pred_fallthru
      _
    // Predicated region
    $region22: #{fwd.1} parent=1 // pred_check
      _
    $region23: #{fwd.1} parent=1 // pred_check_branch
      %91 = sbr.rel (0) target = $region25
    $region24: #{fwd.1} parent=1 // pred_region
      _
    $region25: #{fwd.1} parent=1 // pred_fallthru
      _
    // Predicated region
    $region26: #{fwd.1} parent=1 // pred_check
      _
    $region27: #{fwd.1} parent=1 // pred_check_branch
      %93 = sbr.rel (0) target = $region29
    $region28: #{fwd.1} parent=1 // pred_region
      %95 = vsyncadd [#allocation12], 0
      %s96 = sshll.u32 %s6, 4
      %s97 = int_to_ptr.hbm [resolvable:$true] %s96
      %s98 = sshll.u32 [#allocation11], 4
      %s99 = int_to_ptr.vmem [resolvable:$true] %s98
      %104 = dma.hbm_to_vmem [thread:$0]  %s97, 512, %s99, [#allocation12], 128, 128, 8
    $region29: #{fwd.1} parent=1 // pred_fallthru
      _
    // Predicated region
    $region30: #{fwd.1} parent=1 // pred_check
      _
    $region31: #{fwd.1} parent=1 // pred_check_branch
      %106 = sbr.rel (0) target = $region33
    $region32: #{fwd.1} parent=1 // pred_region
      _
    $region33: #{fwd.1} parent=1 // pred_fallthru
      _
    // Predicated region
    $region34: #{fwd.1} parent=1 // pred_check
      _
    $region35: #{fwd.1} parent=1 // pred_check_branch
      %108 = sbr.rel (0) target = $region37
    $region36: #{fwd.1} parent=1 // pred_region
      %110 = vsyncadd [#allocation12], 0
      %s111 = sshll.u32 %s8, 4
      %s112 = int_to_ptr.hbm [resolvable:$true] %s111
      %s113 = sshll.u32 [#allocation13], 4
      %s114 = int_to_ptr.vmem [resolvable:$true] %s113
      %119 = dma.hbm_to_vmem [thread:$0]  %s112, 1024, %s114, [#allocation12], 128, 128, 8
    $region37: #{fwd.1} parent=1 // pred_fallthru
      _
    // Predicated region
    $region38: #{fwd.1} parent=1 // pred_check
      _
    $region39: #{fwd.1} parent=1 // pred_check_branch
      %121 = sbr.rel (0) target = $region41
    $region40: #{fwd.1} parent=1 // pred_region
      %123 = vsyncadd [#allocation15], 0
      %s124 = sshll.u32 %s9, 4
      %s125 = int_to_ptr.hbm [resolvable:$true] %s124
      %s126 = sshll.u32 [#allocation14], 4
      %s127 = int_to_ptr.vmem [resolvable:$true] %s126
      %132 = dma.hbm_to_vmem [thread:$0]  %s125, 1024, %s127, [#allocation15], 128, 128, 8
    $region41: #{fwd.1} parent=1 // pred_fallthru
      _
    // Predicated region
    $region42: #{fwd.1} parent=1 // pred_check
      _
    $region43: #{fwd.1} parent=1 // pred_check_branch
      %134 = sbr.rel (0) target = $region45
    $region44: #{fwd.1} parent=1 // pred_region
      %136 = vsyncadd [#allocation15], 0
      %s137 = sshll.u32 %s10, 4
      %s138 = int_to_ptr.hbm [resolvable:$true] %s137
      %s139 = sshll.u32 [#allocation16], 4
      %s140 = int_to_ptr.vmem [resolvable:$true] %s139
      %145 = dma.hbm_to_vmem [thread:$0]  %s138, 1024, %s140, [#allocation15], 128, 128, 8
    $region45: #{fwd.1} parent=1 // pred_fallthru
      _
    // Predicated region
    $region46: #{fwd.1} parent=1 // pred_check
      _
    $region47: #{fwd.1} parent=1 // pred_check_branch
      %147 = sbr.rel (0) target = $region49
    $region48: #{fwd.1} parent=1 // pred_region
      %149 = vsyncadd [#allocation18], 0
      %s150 = sshll.u32 %s11, 4
      %s151 = int_to_ptr.hbm [resolvable:$true] %s150
      %s152 = sshll.u32 [#allocation17], 4
      %s153 = int_to_ptr.vmem [resolvable:$true] %s152
      %158 = dma.hbm_to_vmem [thread:$0]  %s151, 256, %s153, [#allocation18], 128, 128, 8
    $region49: #{fwd.1} parent=1 // pred_fallthru
      _
    // Predicated region
    $region50: #{fwd.1} parent=1 // pred_check
      _
    $region51: #{fwd.1} parent=1 // pred_check_branch
      %160 = sbr.rel (0) target = $region53
    $region52: #{fwd.1} parent=1 // pred_region
      %162 = vsyncadd [#allocation18], 0
      %s163 = sshll.u32 %s12, 4
      %s164 = int_to_ptr.hbm [resolvable:$true] %s163
      %s165 = sshll.u32 [#allocation19], 4
      %s166 = int_to_ptr.vmem [resolvable:$true] %s165
      %171 = dma.hbm_to_vmem [thread:$0]  %s164, 256, %s166, [#allocation18], 128, 128, 8
    $region53: #{fwd.1} parent=1 // pred_fallthru
      _
    // Predicated region
    $region54: #{fwd.1} parent=1 // pred_check
      _
    $region55: #{fwd.1} parent=1 // pred_check_branch
      %173 = sbr.rel (0) target = $region57
    $region56: #{fwd.1} parent=1 // pred_region
      %175 = dma.done [#allocation3], 256
    $region57: #{fwd.1} parent=1 // pred_fallthru
      _
    // Predicated region
    $region58: #{fwd.1} parent=1 // pred_check
      _
    $region59: #{fwd.1} parent=1 // pred_check_branch
      %177 = sbr.rel (0) target = $region61
    $region60: #{fwd.1} parent=1 // pred_region
      %179 = dma.done [#allocation6], 128
    $region61: #{fwd.1} parent=1 // pred_fallthru
      _
    // Predicated region
    $region62: #{fwd.1} parent=1 // pred_check
      _
    $region63: #{fwd.1} parent=1 // pred_check_branch
      %181 = sbr.rel (0) target = $region65
    $region64: #{fwd.1} parent=1 // pred_region
      %183 = dma.done [#allocation6], 14336
    $region65: #{fwd.1} parent=1 // pred_fallthru
      _
    // Predicated region
    $region66: #{fwd.1} parent=1 // pred_check
      _
    $region67: #{fwd.1} parent=1 // pred_check_branch
      %185 = sbr.rel (0) target = $region69
    $region68: #{fwd.1} parent=1 // pred_region
      %187 = dma.done [#allocation9], 224
    $region69: #{fwd.1} parent=1 // pred_fallthru
      _
    // Predicated region
    $region70: #{fwd.1} parent=1 // pred_check
      _
    $region71: #{fwd.1} parent=1 // pred_check_branch
      %189 = sbr.rel (0) target = $region73
    $region72: #{fwd.1} parent=1 // pred_region
      %191 = dma.done [#allocation9], 256
    $region73: #{fwd.1} parent=1 // pred_fallthru
      _
    // Predicated region
    $region74: #{fwd.1} parent=1 // pred_check
      _
    $region75: #{fwd.1} parent=1 // pred_check_branch
      %193 = sbr.rel (0) target = $region77
    $region76: #{fwd.1} parent=1 // pred_region
      %195 = dma.done [#allocation12], 512
    $region77: #{fwd.1} parent=1 // pred_fallthru
      _
    // Predicated region
    $region78: #{fwd.1} parent=1 // pred_check
      _
    $region79: #{fwd.1} parent=1 // pred_check_branch
      %197 = sbr.rel (0) target = $region81
    $region80: #{fwd.1} parent=1 // pred_region
      %199 = dma.done [#allocation12], 1024
    $region81: #{fwd.1} parent=1 // pred_fallthru
      _
    // Predicated region
    $region82: #{fwd.1} parent=1 // pred_check
      _
    $region83: #{fwd.1} parent=1 // pred_check_branch
      %201 = sbr.rel (0) target = $region85
    $region84: #{fwd.1} parent=1 // pred_region
      %203 = dma.done [#allocation15], 1024
    $region85: #{fwd.1} parent=1 // pred_fallthru
      _
    // Predicated region
    $region86: #{fwd.1} parent=1 // pred_check
      _
    $region87: #{fwd.1} parent=1 // pred_check_branch
      %205 = sbr.rel (0) target = $region89
    $region88: #{fwd.1} parent=1 // pred_region
      %207 = dma.done [#allocation15], 1024
    $region89: #{fwd.1} parent=1 // pred_fallthru
      _
    // Predicated region
    $region90: #{fwd.1} parent=1 // pred_check
      _
    $region91: #{fwd.1} parent=1 // pred_check_branch
      %209 = sbr.rel (0) target = $region93
    $region92: #{fwd.1} parent=1 // pred_region
      %211 = dma.done [#allocation18], 256
    $region93: #{fwd.1} parent=1 // pred_fallthru
      _
    // Predicated region
    $region94: #{fwd.1} parent=1 // pred_check
      _
    $region95: #{fwd.1} parent=1 // pred_check_branch
      %213 = sbr.rel (0) target = $region97
    $region96: #{fwd.1} parent=1 // pred_region
      %215 = dma.done [#allocation18], 256
    $region97: #{fwd.1} parent=1 // pred_fallthru
      _
    %v217 = vld [vmem:[#allocation2] sm:$0xff]
    %v218 = vld [vmem:[#allocation2 + $0x8] sm:$0xff]
    %v219 = vld [vmem:[#allocation5] sm:$0xf]
    %v220 = vld [vmem:[#allocation5 + $0x4] sm:$0xf]
    %v221 = vld [vmem:[#allocation13] sm:$0xff]
    %v222 = vld [vmem:[#allocation13 + $0x8] sm:$0xff]
    %v223 = vld [vmem:[#allocation13 + $0x10] sm:$0xff]
    %v224 = vld [vmem:[#allocation13 + $0x18] sm:$0xff]
    %v225 = vld [vmem:[#allocation13 + $0x20] sm:$0xff]
    %v226 = vld [vmem:[#allocation13 + $0x28] sm:$0xff]
    %v227 = vld [vmem:[#allocation13 + $0x30] sm:$0xff]
    %v228 = vld [vmem:[#allocation13 + $0x38] sm:$0xff]
    %v229 = vld [vmem:[#allocation14] sm:$0xff]
    %v230 = vld [vmem:[#allocation14 + $0x8] sm:$0xff]
    %v231 = vld [vmem:[#allocation14 + $0x10] sm:$0xff]
    %v232 = vld [vmem:[#allocation14 + $0x18] sm:$0xff]
    %v233 = vld [vmem:[#allocation14 + $0x20] sm:$0xff]
    %v234 = vld [vmem:[#allocation14 + $0x28] sm:$0xff]
    %v235 = vld [vmem:[#allocation14 + $0x30] sm:$0xff]
    %v236 = vld [vmem:[#allocation14 + $0x38] sm:$0xff]
    %v237 = vld [vmem:[#allocation16] sm:$0xff]
    %v238 = vld [vmem:[#allocation16 + $0x8] sm:$0xff]
    %v239 = vld [vmem:[#allocation16 + $0x10] sm:$0xff]
    %v240 = vld [vmem:[#allocation16 + $0x18] sm:$0xff]
    %v241 = vld [vmem:[#allocation16 + $0x20] sm:$0xff]
    %v242 = vld [vmem:[#allocation16 + $0x28] sm:$0xff]
    %v243 = vld [vmem:[#allocation16 + $0x30] sm:$0xff]
    %v244 = vld [vmem:[#allocation16 + $0x38] sm:$0xff]
    %v245 = vld [vmem:[%s5] sm:$0xf]
    %v246 = vld [vmem:[#allocation17] sm:$0xff]
    %v247 = vld [vmem:[#allocation17 + $0x8] sm:$0xff]
    %v248 = vld [vmem:[#allocation19] sm:$0xff]
    %v249 = vld [vmem:[#allocation19 + $0x8] sm:$0xff]
    %vm250 = vcmask 130048
    %v252 = vsel %vm250, %v246, 0
    %v255 = vsel %vm250, %v247, 0
    %257 = vmatpush.msra.mxu0 0.0
    %258 = vmatpush.msra.mxu0 0.0
    %259 = vmatpush.msra.mxu0 0.0
    %260 = vmatpush.msra.mxu0 0.0
    %261 = vmatpush.msra.mxu0 0.0
    %262 = vmatpush.msra.mxu0 0.0
    %263 = vmatpush.msra.mxu0 0.0
    %264 = vmatpush.msra.mxu0 0.0
    %265 = vmatpush.msra.mxu0 0.0
    %266 = vmatpush.msra.mxu0 0.0
    %267 = vmatpush.msra.mxu0 0.0
    %268 = vmatpush.msra.mxu0 0.0
    %269 = vmatpush.msra.mxu0 0.0
    %270 = vmatpush.msra.mxu0 0.0
    %271 = vmatpush.msra.mxu0 %v218
    %272 = vmatpush.msra.mxu0 %v217
    %273 = vmatmul.f32.gmra.mxu0 %v252
    %v274 = vpop.f32.mrf.mxu0
    %v275 = vadd.f32 %v248, %v274
    %276 = vmatmul.f32.gmra.mxu0 %v255
    %v277 = vpop.f32.mrf.mxu0
    %v278 = vadd.f32 %v249, %v277
    %279 = vdwg.mxu0
    %vm280 = vcmask 261120
    %v281 = vsel %vm280, %v275, 0.0
    %282 = vadd.xlane.f32.xlu0 %v281
    %v283 = vpop.xlane.xlu0 %282
    %v284 = vsel %vm280, %v278, 0.0
    %285 = vadd.xlane.f32.xlu0 %v284
    %v286 = vpop.xlane.xlu0 %285
    %v287 = vrcp.pop 32.0
    %v288 = vmul.f32 32.0, %v287
    %v289 = vsub.f32 1.0, %v288
    %v290 = vmul.f32 %v287, %v289
    %v291 = vadd.f32 %v287, %v290
    %vm292 = vweird.f32 %v287
    %v293 = vsel %vm292, %v287, %v291
    %v294 = vmul.f32 %v283, %v293
    %v295 = vmul.f32 %v286, %v293
    %v296 = vsub.f32 %v275, %v294
    %v297 = vsub.f32 %v278, %v295
    %v298 = vmul.f32 %v296, %v296
    %v299 = vmul.f32 %v297, %v297
    %v300 = vsel %vm280, %v298, 0.0
    %301 = vadd.xlane.f32.xlu0 %v300
    %v302 = vpop.xlane.xlu0 %301
    %v303 = vsel %vm280, %v299, 0.0
    %304 = vadd.xlane.f32.xlu0 %v303
    %v305 = vpop.xlane.xlu0 %304
    %v306 = vmul.f32 %v302, %v293
    %v307 = vmul.f32 %v305, %v293
    %v308 = vadd.f32 %v306, 1e-05
    %v309 = vadd.f32 %v307, 1e-05
    %v310 = vrsqrt.pop %v308
    %v311 = vmul.f32 %v310, %v308
    %v312 = vmul.f32 %v311, %v310
    %v313 = vmul.f32 0.5, %v312
    %v314 = vsub.f32 1.5, %v313
    %v315 = vmul.f32 %v310, %v314
    %vm316 = vweird.f32 %v308
    %vm317 = vweird.f32 %v310
    %vm318 = vmor %vm316, %vm317
    %v319 = vsel %vm318, %v310, %v315
    %v320 = vrsqrt.pop %v309
    %v321 = vmul.f32 %v320, %v309
    %v322 = vmul.f32 %v321, %v320
    %v323 = vmul.f32 0.5, %v322
    %v324 = vsub.f32 1.5, %v323
    %v325 = vmul.f32 %v320, %v324
    %vm326 = vweird.f32 %v309
    %vm327 = vweird.f32 %v320
    %vm328 = vmor %vm326, %vm327
    %v329 = vsel %vm328, %v320, %v325
    %v330 = vmul.f32 %v296, %v319
    %v331 = vmul.f32 %v297, %v329
    %v332 = vperm.slane %v245, 0
    %v333 = vmul.f32 %v330, %v332
    %v334 = vmul.f32 %v331, %v332
    %v335 = vperm.slane %v245, 1
    %v336 = vadd.f32 %v333, %v335
    %v337 = vadd.f32 %v334, %v335
    %v338 = vld [vmem:[#allocation10] sm:$0x3f]
    %v339 = vld [vmem:[#allocation7] sm:$0xff]
    %v340 = vld [vmem:[#allocation7 + $0x38] sm:$0xff]
    %v341 = vld [vmem:[#allocation7 + $0x70] sm:$0xff]
    %v342 = vld [vmem:[#allocation7 + $0xa8] sm:$0xff]
    %v343 = vpack.c.bf16 %v337, %v336
    %v344 = vpack.c.bf16 %v340, %v339
    %v345 = vpack.c.bf16 %v342, %v341
    %v346 = vld [vmem:[#allocation8] sm:$0x1]
    %v348 = vperm.slane %v346, 0
    %v351 = vsel %vm280, %v343, 0
    %353 = vmatpush.bf16.msra.mxu0 0
    %354 = vmatpush.bf16.msra.mxu0 0
    %355 = vmatpush.bf16.msra.mxu0 0
    %356 = vmatpush.bf16.msra.mxu0 0
    %357 = vmatpush.bf16.msra.mxu0 0
    %358 = vmatpush.bf16.msra.mxu0 0
    %359 = vmatpush.bf16.msra.mxu0 %v345
    %360 = vmatpush.bf16.msra.mxu0 %v344
    %361 = vmatmul.bf16.gmra.mxu0 %v351
    %v362 = vpop.f32.mrf.mxu0
    %v363 = vadd.f32 %v348, %v362
    %v364 = vpop.f32.mrf.mxu0
    %v365 = vadd.f32 %v348, %v364
    %366 = vdwg.mxu0
    %v367 = vld [vmem:[#allocation7 + $0x8] sm:$0xff]
    %v368 = vld [vmem:[#allocation7 + $0x40] sm:$0xff]
    %v369 = vld [vmem:[#allocation7 + $0x78] sm:$0xff]
    %v370 = vld [vmem:[#allocation7 + $0xb0] sm:$0xff]
    %v371 = vld [vmem:[#allocation8 + $0x1] sm:$0x1]
    %v372 = vmul.f32 %v363, %v221
    %v373 = vmul.f32 %v365, %v222
    %v374 = vmul.f32 %v363, %v223
    %v375 = vmul.f32 %v365, %v224
    %v376 = vmul.f32 %v363, %v225
    %v377 = vmul.f32 %v365, %v226
    %v378 = vmul.f32 %v363, %v227
    %v379 = vmul.f32 %v365, %v228
    %v380 = vpack.c.bf16 %v373, %v372
    %v381 = vpack.c.bf16 %v375, %v374
    %v382 = vpack.c.bf16 %v377, %v376
    %v383 = vpack.c.bf16 %v379, %v378
    %v384 = vpack.c.bf16 %v365, %v363
    %386 = vrot.lane.b32.xlu0 %v384, 96
    %v387 = vpop.permute.xlu0 %386
    %v389 = vsel %vm280, %v380, 0
    %v392 = vsel %vm280, %v381, 0
    %v395 = vsel %vm280, %v382, 0
    %v398 = vsel %vm280, %v383, 0
    %v401 = vsel %vm280, %v387, 0
    %403 = vmatpush.bf16.xpose.msra.mxu0 0
    %404 = vmatpush.bf16.xpose.msra.mxu0 0
    %405 = vmatpush.bf16.xpose.msra.mxu0 0
    %406 = vmatpush.bf16.xpose.msra.mxu0 0
    %407 = vmatpush.bf16.xpose.msra.mxu0 0
    %408 = vmatpush.bf16.xpose.msra.mxu0 0
    %409 = vmatpush.bf16.xpose.msra.mxu0 0
    %410 = vmatpush.bf16.xpose.msra.mxu0 %v401
    %411 = vmatmul.bf16.gmra.mxu0 %v389
    %v412 = vpop.f32.mrf.mxu0
    %v413 = vadd.f32 0.0, %v412
    %v414 = vpop.f32.mrf.mxu0
    %v415 = vadd.f32 0.0, %v414
    %416 = vmatmul.bf16.gmra.mxu0 %v392
    %v417 = vpop.f32.mrf.mxu0
    %v418 = vadd.f32 0.0, %v417
    %v419 = vpop.f32.mrf.mxu0
    %v420 = vadd.f32 0.0, %v419
    %421 = vmatmul.bf16.gmra.mxu0 %v395
    %v422 = vpop.f32.mrf.mxu0
    %v423 = vadd.f32 0.0, %v422
    %v424 = vpop.f32.mrf.mxu0
    %v425 = vadd.f32 0.0, %v424
    %426 = vmatmul.bf16.gmra.mxu0 %v398
    %v427 = vpop.f32.mrf.mxu0
    %v428 = vadd.f32 0.0, %v427
    %v429 = vpop.f32.mrf.mxu0
    %v430 = vadd.f32 0.0, %v429
    %431 = vdwg.mxu0
    %v432 = vmul.f32 %v413, 0.35355338
    %v433 = vmul.f32 %v415, 0.35355338
    %v434 = vmul.f32 %v418, 0.35355338
    %v435 = vmul.f32 %v420, 0.35355338
    %v436 = vmul.f32 %v423, 0.35355338
    %v437 = vmul.f32 %v425, 0.35355338
    %v438 = vmul.f32 %v428, 0.35355338
    %v439 = vmul.f32 %v430, 0.35355338
    %v440 = vadd.f32 %v432, %v229
    %v441 = vadd.f32 %v433, %v230
    %v442 = vadd.f32 %v434, %v231
    %v443 = vadd.f32 %v435, %v232
    %v444 = vadd.f32 %v436, %v233
    %v445 = vadd.f32 %v437, %v234
    %v446 = vadd.f32 %v438, %v235
    %v447 = vadd.f32 %v439, %v236
    %v448 = vsel %vm250, %v440, -inf
    %449 = vmax.xlane.f32.xlu0 %v448
    %v450 = vpop.xlane.xlu0 %449
    %v451 = vsel %vm250, %v441, -inf
    %452 = vmax.xlane.f32.xlu0 %v451
    %v453 = vpop.xlane.xlu0 %452
    %v454 = vsel %vm250, %v442, -inf
    %455 = vmax.xlane.f32.xlu0 %v454
    %v456 = vpop.xlane.xlu0 %455
    %v457 = vsel %vm250, %v443, -inf
    %458 = vmax.xlane.f32.xlu0 %v457
    %v459 = vpop.xlane.xlu0 %458
    %v460 = vsel %vm250, %v444, -inf
    %461 = vmax.xlane.f32.xlu0 %v460
    %v462 = vpop.xlane.xlu0 %461
    %v463 = vsel %vm250, %v445, -inf
    %464 = vmax.xlane.f32.xlu0 %v463
    %v465 = vpop.xlane.xlu0 %464
    %v466 = vsel %vm250, %v446, -inf
    %467 = vmax.xlane.f32.xlu0 %v466
    %v468 = vpop.xlane.xlu0 %467
    %v469 = vsel %vm250, %v447, -inf
    %470 = vmax.xlane.f32.xlu0 %v469
    %v471 = vpop.xlane.xlu0 %470
    %v472 = vsub.f32 %v440, %v450
    %v473 = vsub.f32 %v441, %v453
    %v474 = vsub.f32 %v442, %v456
    %v475 = vsub.f32 %v443, %v459
    %v476 = vsub.f32 %v444, %v462
    %v477 = vsub.f32 %v445, %v465
    %v478 = vsub.f32 %v446, %v468
    %v479 = vsub.f32 %v447, %v471
    %v480 = vmul.f32 %v472, 1.442695
    %v481 = vpow.pop %v480
    %v482 = vmul.f32 %v473, 1.442695
    %v483 = vpow.pop %v482
    %v484 = vmul.f32 %v474, 1.442695
    %v485 = vpow.pop %v484
    %v486 = vmul.f32 %v475, 1.442695
    %v487 = vpow.pop %v486
    %v488 = vmul.f32 %v476, 1.442695
    %v489 = vpow.pop %v488
    %v490 = vmul.f32 %v477, 1.442695
    %v491 = vpow.pop %v490
    %v492 = vmul.f32 %v478, 1.442695
    %v493 = vpow.pop %v492
    %v494 = vmul.f32 %v479, 1.442695
    %v495 = vpow.pop %v494
    %v496 = vsel %vm250, %v481, 0.0
    %497 = vadd.xlane.f32.xlu0 %v496
    %v498 = vpop.xlane.xlu0 %497
    %v499 = vsel %vm250, %v483, 0.0
    %500 = vadd.xlane.f32.xlu0 %v499
    %v501 = vpop.xlane.xlu0 %500
    %v502 = vsel %vm250, %v485, 0.0
    %503 = vadd.xlane.f32.xlu0 %v502
    %v504 = vpop.xlane.xlu0 %503
    %v505 = vsel %vm250, %v487, 0.0
    %506 = vadd.xlane.f32.xlu0 %v505
    %v507 = vpop.xlane.xlu0 %506
    %v508 = vsel %vm250, %v489, 0.0
    %509 = vadd.xlane.f32.xlu0 %v508
    %v510 = vpop.xlane.xlu0 %509
    %v511 = vsel %vm250, %v491, 0.0
    %512 = vadd.xlane.f32.xlu0 %v511
    %v513 = vpop.xlane.xlu0 %512
    %v514 = vsel %vm250, %v493, 0.0
    %515 = vadd.xlane.f32.xlu0 %v514
    %v516 = vpop.xlane.xlu0 %515
    %v517 = vsel %vm250, %v495, 0.0
    %518 = vadd.xlane.f32.xlu0 %v517
    %v519 = vpop.xlane.xlu0 %518
    %v520 = vrcp.pop %v498
    %v521 = vrcp.pop %v501
    %v522 = vrcp.pop %v504
    %v523 = vrcp.pop %v507
    %v524 = vrcp.pop %v510
    %v525 = vrcp.pop %v513
    %v526 = vrcp.pop %v516
    %v527 = vrcp.pop %v519
    %v528 = vmul.f32 %v481, %v520
    %v529 = vmul.f32 %v483, %v521
    %v530 = vmul.f32 %v485, %v522
    %v531 = vmul.f32 %v487, %v523
    %v532 = vmul.f32 %v489, %v524
    %v533 = vmul.f32 %v491, %v525
    %v534 = vmul.f32 %v493, %v526
    %v535 = vmul.f32 %v495, %v527
    %v536 = vpack.c.bf16 %v529, %v528
    %v537 = vpack.c.bf16 %v531, %v530
    %v538 = vpack.c.bf16 %v533, %v532
    %v539 = vpack.c.bf16 %v535, %v534
    %540 = vrot.lane.b32.xlu0 %v384, 64
    %v541 = vpop.permute.xlu0 %540
    %v544 = vsel %vm250, %v536, 0
    %v547 = vsel %vm250, %v537, 0
    %v550 = vsel %vm250, %v538, 0
    %v553 = vsel %vm250, %v539, 0
    %555 = vmatpush.bf16.msra.mxu0 0
    %556 = vmatpush.bf16.msra.mxu0 0
    %557 = vmatpush.bf16.msra.mxu0 0
    %558 = vmatpush.bf16.msra.mxu0 0
    %559 = vmatpush.bf16.msra.mxu0 0
    %560 = vmatpush.bf16.msra.mxu0 0
    %561 = vmatpush.bf16.msra.mxu0 0
    %562 = vmatpush.bf16.msra.mxu0 %v541
    %563 = vmatmul.bf16.gmra.mxu0 %v544
    %v564 = vpop.f32.mrf.mxu0
    %v565 = vadd.f32 0.0, %v564
    %v566 = vpop.f32.mrf.mxu0
    %v567 = vadd.f32 0.0, %v566
    %568 = vmatmul.bf16.gmra.mxu0 %v547
    %v569 = vpop.f32.mrf.mxu0
    %v570 = vadd.f32 0.0, %v569
    %v571 = vpop.f32.mrf.mxu0
    %v572 = vadd.f32 0.0, %v571
    %573 = vmatmul.bf16.gmra.mxu0 %v550
    %v574 = vpop.f32.mrf.mxu0
    %v575 = vadd.f32 0.0, %v574
    %v576 = vpop.f32.mrf.mxu0
    %v577 = vadd.f32 0.0, %v576
    %578 = vmatmul.bf16.gmra.mxu0 %v553
    %v579 = vpop.f32.mrf.mxu0
    %v580 = vadd.f32 0.0, %v579
    %v581 = vpop.f32.mrf.mxu0
    %v582 = vadd.f32 0.0, %v581
    %583 = vdwg.mxu0
    %v584 = vmul.f32 %v565, %v221
    %v585 = vmul.f32 %v567, %v222
    %v586 = vmul.f32 %v570, %v223
    %v587 = vmul.f32 %v572, %v224
    %v588 = vmul.f32 %v575, %v225
    %v589 = vmul.f32 %v577, %v226
    %v590 = vmul.f32 %v580, %v227
    %v591 = vmul.f32 %v582, %v228
    %v592 = vadd.f32 %v584, %v586
    %v593 = vadd.f32 %v585, %v587
    %v594 = vadd.f32 %v592, %v588
    %v595 = vadd.f32 %v593, %v589
    %v596 = vadd.f32 %v594, %v590
    %v597 = vadd.f32 %v595, %v591
    %v598 = vpack.c.bf16 %v597, %v596
    %v599 = vpack.c.bf16 %v368, %v367
    %v600 = vpack.c.bf16 %v370, %v369
    %v602 = vperm.slane %v371, 0
    %v605 = vsel %vm280, %v598, 0
    %607 = vmatpush.bf16.msra.mxu0 0
    %608 = vmatpush.bf16.msra.mxu0 0
    %609 = vmatpush.bf16.msra.mxu0 0
    %610 = vmatpush.bf16.msra.mxu0 0
    %611 = vmatpush.bf16.msra.mxu0 0
    %612 = vmatpush.bf16.msra.mxu0 0
    %613 = vmatpush.bf16.msra.mxu0 %v600
    %614 = vmatpush.bf16.msra.mxu0 %v599
    %615 = vmatmul.bf16.gmra.mxu0 %v605
    %v616 = vpop.f32.mrf.mxu0
    %v617 = vadd.f32 %v602, %v616
    %v618 = vpop.f32.mrf.mxu0
    %v619 = vadd.f32 %v602, %v618
    %620 = vdwg.mxu0
    %v621 = vadd.f32 %v336, %v617
    %v622 = vadd.f32 %v337, %v619
    %v623 = vsel %vm280, %v621, 0.0
    %624 = vadd.xlane.f32.xlu0 %v623
    %v625 = vpop.xlane.xlu0 %624
    %v626 = vsel %vm280, %v622, 0.0
    %627 = vadd.xlane.f32.xlu0 %v626
    %v628 = vpop.xlane.xlu0 %627
    %v629 = vmul.f32 %v625, %v293
    %v630 = vmul.f32 %v628, %v293
    %v631 = vsub.f32 %v621, %v629
    %v632 = vsub.f32 %v622, %v630
    %v633 = vmul.f32 %v631, %v631
    %v634 = vmul.f32 %v632, %v632
    %v635 = vsel %vm280, %v633, 0.0
    %636 = vadd.xlane.f32.xlu0 %v635
    %v637 = vpop.xlane.xlu0 %636
    %v638 = vsel %vm280, %v634, 0.0
    %639 = vadd.xlane.f32.xlu0 %v638
    %v640 = vpop.xlane.xlu0 %639
    %v641 = vmul.f32 %v637, %v293
    %v642 = vmul.f32 %v640, %v293
    %v643 = vadd.f32 %v641, 1e-05
    %v644 = vadd.f32 %v642, 1e-05
    %v645 = vrsqrt.pop %v643
    %v646 = vmul.f32 %v645, %v643
    %v647 = vmul.f32 %v646, %v645
    %v648 = vmul.f32 0.5, %v647
    %v649 = vsub.f32 1.5, %v648
    %v650 = vmul.f32 %v645, %v649
    %vm651 = vweird.f32 %v643
    %vm652 = vweird.f32 %v645
    %vm653 = vmor %vm651, %vm652
    %v654 = vsel %vm653, %v645, %v650
    %v655 = vrsqrt.pop %v644
    %v656 = vmul.f32 %v655, %v644
    %v657 = vmul.f32 %v656, %v655
    %v658 = vmul.f32 0.5, %v657
    %v659 = vsub.f32 1.5, %v658
    %v660 = vmul.f32 %v655, %v659
    %vm661 = vweird.f32 %v644
    %vm662 = vweird.f32 %v655
    %vm663 = vmor %vm661, %vm662
    %v664 = vsel %vm663, %v655, %v660
    %v665 = vmul.f32 %v631, %v654
    %v666 = vmul.f32 %v632, %v664
    %v667 = vperm.slane %v338, 2
    %v668 = vmul.f32 %v665, %v667
    %v669 = vmul.f32 %v666, %v667
    %v670 = vperm.slane %v338, 3
    %v671 = vadd.f32 %v668, %v670
    %v672 = vadd.f32 %v669, %v670
    %v673 = vld [vmem:[#allocation7 + $0x10] sm:$0xff]
    %v674 = vld [vmem:[#allocation7 + $0x48] sm:$0xff]
    %v675 = vld [vmem:[#allocation7 + $0x80] sm:$0xff]
    %v676 = vld [vmem:[#allocation7 + $0xb8] sm:$0xff]
    %v677 = vpack.c.bf16 %v672, %v671
    %v678 = vpack.c.bf16 %v674, %v673
    %v679 = vpack.c.bf16 %v676, %v675
    %v680 = vld [vmem:[#allocation8 + $0x2] sm:$0x1]
    %v682 = vperm.slane %v680, 0
    %v685 = vsel %vm280, %v677, 0
    %687 = vmatpush.bf16.msra.mxu0 0
    %688 = vmatpush.bf16.msra.mxu0 0
    %689 = vmatpush.bf16.msra.mxu0 0
    %690 = vmatpush.bf16.msra.mxu0 0
    %691 = vmatpush.bf16.msra.mxu0 0
    %692 = vmatpush.bf16.msra.mxu0 0
    %693 = vmatpush.bf16.msra.mxu0 %v679
    %694 = vmatpush.bf16.msra.mxu0 %v678
    %695 = vmatmul.bf16.gmra.mxu0 %v685
    %v696 = vpop.f32.mrf.mxu0
    %v697 = vadd.f32 %v682, %v696
    %v698 = vpop.f32.mrf.mxu0
    %v699 = vadd.f32 %v682, %v698
    %700 = vdwg.mxu0
    %v701 = vld [vmem:[#allocation7 + $0x18] sm:$0xff]
    %v702 = vld [vmem:[#allocation7 + $0x50] sm:$0xff]
    %v703 = vld [vmem:[#allocation7 + $0x88] sm:$0xff]
    %v704 = vld [vmem:[#allocation7 + $0xc0] sm:$0xff]
    %707 = vst [vmem:[#allocation1] ss:$2 sm:$0xff] %v219
    %s708 = scalar_lea.vmem [#allocation1], 1
    %709 = vst [vmem:[%s708] ss:$2 sm:$0xff] %v220
    %v710 = vld.sshfl [vmem:[#allocation1] sm:$0xff pattern:$0x75316420]
    %v712 = vpack.c.bf16 %v710, %v710
    %v713 = vpack.c.bf16 %v702, %v701
    %v714 = vpack.c.bf16 %v704, %v703
    %v715 = vld [vmem:[#allocation8 + $0x3] sm:$0x1]
    %v717 = vperm.slane %v715, 0
    %v720 = vsel %vm280, %v712, 0
    %722 = vmatpush.bf16.msra.mxu0 0
    %723 = vmatpush.bf16.msra.mxu0 0
    %724 = vmatpush.bf16.msra.mxu0 0
    %725 = vmatpush.bf16.msra.mxu0 0
    %726 = vmatpush.bf16.msra.mxu0 0
    %727 = vmatpush.bf16.msra.mxu0 0
    %728 = vmatpush.bf16.msra.mxu0 %v714
    %729 = vmatpush.bf16.msra.mxu0 %v713
    %730 = vmatmul.bf16.gmra.mxu0 %v720
    %v731 = vpop.f32.mrf.mxu0
    %v732 = vadd.f32 %v717, %v731
    %v733 = vpop.f32.mrf.mxu0
    %734 = vdwg.mxu0
    %v735 = vld [vmem:[#allocation7 + $0x20] sm:$0xff]
    %v736 = vld [vmem:[#allocation7 + $0x58] sm:$0xff]
    %v737 = vld [vmem:[#allocation7 + $0x90] sm:$0xff]
    %v738 = vld [vmem:[#allocation7 + $0xc8] sm:$0xff]
    %v739 = vld [vmem:[#allocation8 + $0x4] sm:$0x1]
    %v740 = vmul.f32 %v697, %v221
    %v741 = vmul.f32 %v699, %v222
    %v742 = vmul.f32 %v697, %v223
    %v743 = vmul.f32 %v699, %v224
    %v744 = vmul.f32 %v697, %v225
    %v745 = vmul.f32 %v699, %v226
    %v746 = vmul.f32 %v697, %v227
    %v747 = vmul.f32 %v699, %v228
    %v748 = vpack.c.bf16 %v741, %v740
    %v749 = vpack.c.bf16 %v743, %v742
    %v750 = vpack.c.bf16 %v745, %v744
    %v751 = vpack.c.bf16 %v747, %v746
    %v752 = vpack.c.bf16 %v732, %v732
    %v754 = vsel %vm280, %v748, 0
    %v757 = vsel %vm280, %v749, 0
    %v760 = vsel %vm280, %v750, 0
    %v763 = vsel %vm280, %v751, 0
    %v766 = vsel %vm280, %v752, 0
    %768 = vmatpush.bf16.xpose.msra.mxu0 0
    %769 = vmatpush.bf16.xpose.msra.mxu0 0
    %770 = vmatpush.bf16.xpose.msra.mxu0 0
    %771 = vmatpush.bf16.xpose.msra.mxu0 0
    %772 = vmatpush.bf16.xpose.msra.mxu0 0
    %773 = vmatpush.bf16.xpose.msra.mxu0 0
    %774 = vmatpush.bf16.xpose.msra.mxu0 0
    %775 = vmatpush.bf16.xpose.msra.mxu0 %v766
    %776 = vmatmul.bf16.gmra.mxu0 %v754
    %v777 = vpop.f32.mrf.mxu0
    %v778 = vadd.f32 0.0, %v777
    %v779 = vpop.f32.mrf.mxu0
    %v780 = vadd.f32 0.0, %v779
    %781 = vmatmul.bf16.gmra.mxu0 %v757
    %v782 = vpop.f32.mrf.mxu0
    %v783 = vadd.f32 0.0, %v782
    %v784 = vpop.f32.mrf.mxu0
    %v785 = vadd.f32 0.0, %v784
    %786 = vmatmul.bf16.gmra.mxu0 %v760
    %v787 = vpop.f32.mrf.mxu0
    %v788 = vadd.f32 0.0, %v787
    %v789 = vpop.f32.mrf.mxu0
    %v790 = vadd.f32 0.0, %v789
    %791 = vmatmul.bf16.gmra.mxu0 %v763
    %v792 = vpop.f32.mrf.mxu0
    %v793 = vadd.f32 0.0, %v792
    %v794 = vpop.f32.mrf.mxu0
    %v795 = vadd.f32 0.0, %v794
    %796 = vdwg.mxu0
    %v797 = vmul.f32 %v778, 0.35355338
    %v798 = vmul.f32 %v780, 0.35355338
    %v799 = vmul.f32 %v783, 0.35355338
    %v800 = vmul.f32 %v785, 0.35355338
    %v801 = vmul.f32 %v788, 0.35355338
    %v802 = vmul.f32 %v790, 0.35355338
    %v803 = vmul.f32 %v793, 0.35355338
    %v804 = vmul.f32 %v795, 0.35355338
    %v805 = vadd.f32 %v797, %v237
    %v806 = vadd.f32 %v798, %v238
    %v807 = vadd.f32 %v799, %v239
    %v808 = vadd.f32 %v800, %v240
    %v809 = vadd.f32 %v801, %v241
    %v810 = vadd.f32 %v802, %v242
    %v811 = vadd.f32 %v803, %v243
    %v812 = vadd.f32 %v804, %v244
    %vm813 = vcmask 64512
    %v814 = vsel %vm813, %v805, -inf
    %815 = vmax.xlane.f32.xlu0 %v814
    %v816 = vpop.xlane.xlu0 %815
    %v817 = vsel %vm813, %v806, -inf
    %818 = vmax.xlane.f32.xlu0 %v817
    %v819 = vpop.xlane.xlu0 %818
    %v820 = vsel %vm813, %v807, -inf
    %821 = vmax.xlane.f32.xlu0 %v820
    %v822 = vpop.xlane.xlu0 %821
    %v823 = vsel %vm813, %v808, -inf
    %824 = vmax.xlane.f32.xlu0 %v823
    %v825 = vpop.xlane.xlu0 %824
    %v826 = vsel %vm813, %v809, -inf
    %827 = vmax.xlane.f32.xlu0 %v826
    %v828 = vpop.xlane.xlu0 %827
    %v829 = vsel %vm813, %v810, -inf
    %830 = vmax.xlane.f32.xlu0 %v829
    %v831 = vpop.xlane.xlu0 %830
    %v832 = vsel %vm813, %v811, -inf
    %833 = vmax.xlane.f32.xlu0 %v832
    %v834 = vpop.xlane.xlu0 %833
    %v835 = vsel %vm813, %v812, -inf
    %836 = vmax.xlane.f32.xlu0 %v835
    %v837 = vpop.xlane.xlu0 %836
    %v838 = vsub.f32 %v805, %v816
    %v839 = vsub.f32 %v806, %v819
    %v840 = vsub.f32 %v807, %v822
    %v841 = vsub.f32 %v808, %v825
    %v842 = vsub.f32 %v809, %v828
    %v843 = vsub.f32 %v810, %v831
    %v844 = vsub.f32 %v811, %v834
    %v845 = vsub.f32 %v812, %v837
    %v846 = vmul.f32 %v838, 1.442695
    %v847 = vpow.pop %v846
    %v848 = vmul.f32 %v839, 1.442695
    %v849 = vpow.pop %v848
    %v850 = vmul.f32 %v840, 1.442695
    %v851 = vpow.pop %v850
    %v852 = vmul.f32 %v841, 1.442695
    %v853 = vpow.pop %v852
    %v854 = vmul.f32 %v842, 1.442695
    %v855 = vpow.pop %v854
    %v856 = vmul.f32 %v843, 1.442695
    %v857 = vpow.pop %v856
    %v858 = vmul.f32 %v844, 1.442695
    %v859 = vpow.pop %v858
    %v860 = vmul.f32 %v845, 1.442695
    %v861 = vpow.pop %v860
    %v862 = vsel %vm813, %v847, 0.0
    %863 = vadd.xlane.f32.xlu0 %v862
    %v864 = vpop.xlane.xlu0 %863
    %v865 = vsel %vm813, %v849, 0.0
    %866 = vadd.xlane.f32.xlu0 %v865
    %v867 = vpop.xlane.xlu0 %866
    %v868 = vsel %vm813, %v851, 0.0
    %869 = vadd.xlane.f32.xlu0 %v868
    %v870 = vpop.xlane.xlu0 %869
    %v871 = vsel %vm813, %v853, 0.0
    %872 = vadd.xlane.f32.xlu0 %v871
    %v873 = vpop.xlane.xlu0 %872
    %v874 = vsel %vm813, %v855, 0.0
    %875 = vadd.xlane.f32.xlu0 %v874
    %v876 = vpop.xlane.xlu0 %875
    %v877 = vsel %vm813, %v857, 0.0
    %878 = vadd.xlane.f32.xlu0 %v877
    %v879 = vpop.xlane.xlu0 %878
    %v880 = vsel %vm813, %v859, 0.0
    %881 = vadd.xlane.f32.xlu0 %v880
    %v882 = vpop.xlane.xlu0 %881
    %v883 = vsel %vm813, %v861, 0.0
    %884 = vadd.xlane.f32.xlu0 %v883
    %v885 = vpop.xlane.xlu0 %884
    %v886 = vrcp.pop %v864
    %v887 = vrcp.pop %v867
    %v888 = vrcp.pop %v870
    %v889 = vrcp.pop %v873
    %v890 = vrcp.pop %v876
    %v891 = vrcp.pop %v879
    %v892 = vrcp.pop %v882
    %v893 = vrcp.pop %v885
    %v894 = vmul.f32 %v847, %v886
    %v895 = vmul.f32 %v849, %v887
    %v896 = vmul.f32 %v851, %v888
    %v897 = vmul.f32 %v853, %v889
    %v898 = vmul.f32 %v855, %v890
    %v899 = vmul.f32 %v857, %v891
    %v900 = vmul.f32 %v859, %v892
    %v901 = vmul.f32 %v861, %v893
    %v902 = vpack.c.bf16 %v895, %v894
    %v903 = vpack.c.bf16 %v897, %v896
    %v904 = vpack.c.bf16 %v899, %v898
    %v905 = vpack.c.bf16 %v901, %v900
    %907 = vrot.lane.b32.xlu0 %v752, 96
    %v908 = vpop.permute.xlu0 %907
    %v910 = vsel %vm813, %v902, 0
    %v913 = vsel %vm813, %v903, 0
    %v916 = vsel %vm813, %v904, 0
    %v919 = vsel %vm813, %v905, 0
    %vm921 = vcmask 1043456
    %v923 = vsel %vm921, %v908, 0
    %925 = vmatpush.bf16.msra.mxu0 0
    %926 = vmatpush.bf16.msra.mxu0 0
    %927 = vmatpush.bf16.msra.mxu0 0
    %928 = vmatpush.bf16.msra.mxu0 0
    %929 = vmatpush.bf16.msra.mxu0 0
    %930 = vmatpush.bf16.msra.mxu0 0
    %931 = vmatpush.bf16.msra.mxu0 0
    %932 = vmatpush.bf16.msra.mxu0 %v923
    %933 = vmatmul.bf16.gmra.mxu0 %v910
    %v934 = vpop.f32.mrf.mxu0
    %v935 = vadd.f32 0.0, %v934
    %v936 = vpop.f32.mrf.mxu0
    %v937 = vadd.f32 0.0, %v936
    %938 = vmatmul.bf16.gmra.mxu0 %v913
    %v939 = vpop.f32.mrf.mxu0
    %v940 = vadd.f32 0.0, %v939
    %v941 = vpop.f32.mrf.mxu0
    %v942 = vadd.f32 0.0, %v941
    %943 = vmatmul.bf16.gmra.mxu0 %v916
    %v944 = vpop.f32.mrf.mxu0
    %v945 = vadd.f32 0.0, %v944
    %v946 = vpop.f32.mrf.mxu0
    %v947 = vadd.f32 0.0, %v946
    %948 = vmatmul.bf16.gmra.mxu0 %v919
    %v949 = vpop.f32.mrf.mxu0
    %v950 = vadd.f32 0.0, %v949
    %v951 = vpop.f32.mrf.mxu0
    %v952 = vadd.f32 0.0, %v951
    %953 = vdwg.mxu0
    %v954 = vmul.f32 %v935, %v221
    %v955 = vmul.f32 %v937, %v222
    %v956 = vmul.f32 %v940, %v223
    %v957 = vmul.f32 %v942, %v224
    %v958 = vmul.f32 %v945, %v225
    %v959 = vmul.f32 %v947, %v226
    %v960 = vmul.f32 %v950, %v227
    %v961 = vmul.f32 %v952, %v228
    %v962 = vadd.f32 %v954, %v956
    %v963 = vadd.f32 %v955, %v957
    %v964 = vadd.f32 %v962, %v958
    %v965 = vadd.f32 %v963, %v959
    %v966 = vadd.f32 %v964, %v960
    %v967 = vadd.f32 %v965, %v961
    %v968 = vpack.c.bf16 %v967, %v966
    %v969 = vpack.c.bf16 %v736, %v735
    %v970 = vpack.c.bf16 %v738, %v737
    %v972 = vperm.slane %v739, 0
    %v975 = vsel %vm280, %v968, 0
    %977 = vmatpush.bf16.msra.mxu0 0
    %978 = vmatpush.bf16.msra.mxu0 0
    %979 = vmatpush.bf16.msra.mxu0 0
    %980 = vmatpush.bf16.msra.mxu0 0
    %981 = vmatpush.bf16.msra.mxu0 0
    %982 = vmatpush.bf16.msra.mxu0 0
    %983 = vmatpush.bf16.msra.mxu0 %v970
    %984 = vmatpush.bf16.msra.mxu0 %v969
    %985 = vmatmul.bf16.gmra.mxu0 %v975
    %v986 = vpop.f32.mrf.mxu0
    %v987 = vadd.f32 %v972, %v986
    %v988 = vpop.f32.mrf.mxu0
    %v989 = vadd.f32 %v972, %v988
    %990 = vdwg.mxu0
    %v991 = vadd.f32 %v621, %v987
    %v992 = vadd.f32 %v622, %v989
    %v993 = vsel %vm280, %v991, 0.0
    %994 = vadd.xlane.f32.xlu0 %v993
    %v995 = vpop.xlane.xlu0 %994
    %v996 = vsel %vm280, %v992, 0.0
    %997 = vadd.xlane.f32.xlu0 %v996
    %v998 = vpop.xlane.xlu0 %997
    %v999 = vmul.f32 %v995, %v293
    %v1000 = vmul.f32 %v998, %v293
    %v1001 = vsub.f32 %v991, %v999
    %v1002 = vsub.f32 %v992, %v1000
    %v1003 = vmul.f32 %v1001, %v1001
    %v1004 = vmul.f32 %v1002, %v1002
    %v1005 = vsel %vm280, %v1003, 0.0
    %1006 = vadd.xlane.f32.xlu0 %v1005
    %v1007 = vpop.xlane.xlu0 %1006
    %v1008 = vsel %vm280, %v1004, 0.0
    %1009 = vadd.xlane.f32.xlu0 %v1008
    %v1010 = vpop.xlane.xlu0 %1009
    %v1011 = vmul.f32 %v1007, %v293
    %v1012 = vmul.f32 %v1010, %v293
    %v1013 = vadd.f32 %v1011, 1e-05
    %v1014 = vadd.f32 %v1012, 1e-05
    %v1015 = vrsqrt.pop %v1013
    %v1016 = vmul.f32 %v1015, %v1013
    %v1017 = vmul.f32 %v1016, %v1015
    %v1018 = vmul.f32 0.5, %v1017
    %v1019 = vsub.f32 1.5, %v1018
    %v1020 = vmul.f32 %v1015, %v1019
    %vm1021 = vweird.f32 %v1013
    %vm1022 = vweird.f32 %v1015
    %vm1023 = vmor %vm1021, %vm1022
    %v1024 = vsel %vm1023, %v1015, %v1020
    %v1025 = vrsqrt.pop %v1014
    %v1026 = vmul.f32 %v1025, %v1014
    %v1027 = vmul.f32 %v1026, %v1025
    %v1028 = vmul.f32 0.5, %v1027
    %v1029 = vsub.f32 1.5, %v1028
    %v1030 = vmul.f32 %v1025, %v1029
    %vm1031 = vweird.f32 %v1014
    %vm1032 = vweird.f32 %v1025
    %vm1033 = vmor %vm1031, %vm1032
    %v1034 = vsel %vm1033, %v1025, %v1030
    %v1035 = vmul.f32 %v1001, %v1024
    %v1036 = vmul.f32 %v1002, %v1034
    %v1037 = vperm.slane %v338, 4
    %v1038 = vmul.f32 %v1035, %v1037
    %v1039 = vmul.f32 %v1036, %v1037
    %v1040 = vperm.slane %v338, 5
    %v1041 = vadd.f32 %v1038, %v1040
    %v1042 = vadd.f32 %v1039, %v1040
    %v1043 = vld [vmem:[#allocation7 + $0x28] sm:$0xff]
    %v1044 = vld [vmem:[#allocation7 + $0x60] sm:$0xff]
    %v1045 = vld [vmem:[#allocation7 + $0x98] sm:$0xff]
    %v1046 = vld [vmem:[#allocation7 + $0xd0] sm:$0xff]
    %v1047 = vpack.c.bf16 %v1042, %v1041
    %v1048 = vpack.c.bf16 %v1044, %v1043
    %v1049 = vpack.c.bf16 %v1046, %v1045
    %v1050 = vld [vmem:[#allocation8 + $0x5] sm:$0x1]
    %v1052 = vperm.slane %v1050, 0
    %v1055 = vsel %vm280, %v1047, 0
    %1057 = vmatpush.bf16.msra.mxu0 0
    %1058 = vmatpush.bf16.msra.mxu0 0
    %1059 = vmatpush.bf16.msra.mxu0 0
    %1060 = vmatpush.bf16.msra.mxu0 0
    %1061 = vmatpush.bf16.msra.mxu0 0
    %1062 = vmatpush.bf16.msra.mxu0 0
    %1063 = vmatpush.bf16.msra.mxu0 %v1049
    %1064 = vmatpush.bf16.msra.mxu0 %v1048
    %1065 = vmatmul.bf16.gmra.mxu0 %v1055
    %v1066 = vpop.f32.mrf.mxu0
    %v1067 = vadd.f32 %v1052, %v1066
    %v1068 = vpop.f32.mrf.mxu0
    %v1069 = vadd.f32 %v1052, %v1068
    %1070 = vdwg.mxu0
    %v1071 = vmax.f32 %v1067, 0.0
    %v1072 = vmax.f32 %v1069, 0.0
    %v1073 = vld [vmem:[#allocation7 + $0x30] sm:$0xff]
    %v1074 = vld [vmem:[#allocation7 + $0x68] sm:$0xff]
    %v1075 = vld [vmem:[#allocation7 + $0xa0] sm:$0xff]
    %v1076 = vld [vmem:[#allocation7 + $0xd8] sm:$0xff]
    %v1077 = vld [vmem:[#allocation7 + $0x110] sm:$0xff]
    %v1078 = vld [vmem:[#allocation7 + $0x148] sm:$0xff]
    %v1079 = vld [vmem:[#allocation7 + $0x180] sm:$0xff]
    %v1080 = vld [vmem:[#allocation7 + $0x1b8] sm:$0xff]
    %v1081 = vpack.c.bf16 %v1072, %v1071
    %v1082 = vpack.c.bf16 %v1074, %v1073
    %v1083 = vpack.c.bf16 %v1076, %v1075
    %v1084 = vpack.c.bf16 %v1078, %v1077
    %v1085 = vpack.c.bf16 %v1080, %v1079
    %vm1086 = vcmask 523264
    %v1088 = vsel %vm1086, %v1081, 0
    %1090 = vmatpush.bf16.msra.mxu0 0
    %1091 = vmatpush.bf16.msra.mxu0 0
    %1092 = vmatpush.bf16.msra.mxu0 0
    %1093 = vmatpush.bf16.msra.mxu0 0
    %1094 = vmatpush.bf16.msra.mxu0 %v1085
    %1095 = vmatpush.bf16.msra.mxu0 %v1084
    %1096 = vmatpush.bf16.msra.mxu0 %v1083
    %1097 = vmatpush.bf16.msra.mxu0 %v1082
    %1098 = vmatmul.bf16.gmra.mxu0 %v1088
    %v1099 = vpop.f32.mrf.mxu0
    %v1100 = vadd.f32 0.0, %v1099
    %v1101 = vpop.f32.mrf.mxu0
    %v1102 = vadd.f32 0.0, %v1101
    %1103 = vdwg.mxu0
    %v1104 = vadd.f32 %v991, %v1100
    %v1105 = vadd.f32 %v992, %v1102
    %v1106 = vld [vmem:[#allocation8 + $0x6] sm:$0x1]
    %v1108 = vperm.slane %v1106, 0
    %v1110 = vadd.f32 %v1104, %v1108
    %v1111 = vadd.f32 %v1105, %v1108
    %s1112 = scalar_lea.vmem [#allocation10], 8
    %v1113 = vld [vmem:[%s1112] sm:$0x3f]
    %v1114 = vsel %vm280, %v1110, 0.0
    %1115 = vadd.xlane.f32.xlu0 %v1114
    %v1116 = vpop.xlane.xlu0 %1115
    %v1117 = vsel %vm280, %v1111, 0.0
    %1118 = vadd.xlane.f32.xlu0 %v1117
    %v1119 = vpop.xlane.xlu0 %1118
    %v1120 = vmul.f32 %v1116, %v293
    %v1121 = vmul.f32 %v1119, %v293
    %v1122 = vsub.f32 %v1110, %v1120
    %v1123 = vsub.f32 %v1111, %v1121
    %v1124 = vmul.f32 %v1122, %v1122
    %v1125 = vmul.f32 %v1123, %v1123
    %v1126 = vsel %vm280, %v1124, 0.0
    %1127 = vadd.xlane.f32.xlu0 %v1126
    %v1128 = vpop.xlane.xlu0 %1127
    %v1129 = vsel %vm280, %v1125, 0.0
    %1130 = vadd.xlane.f32.xlu0 %v1129
    %v1131 = vpop.xlane.xlu0 %1130
    %v1132 = vmul.f32 %v1128, %v293
    %v1133 = vmul.f32 %v1131, %v293
    %v1134 = vadd.f32 %v1132, 1e-05
    %v1135 = vadd.f32 %v1133, 1e-05
    %v1136 = vrsqrt.pop %v1134
    %v1137 = vmul.f32 %v1136, %v1134
    %v1138 = vmul.f32 %v1137, %v1136
    %v1139 = vmul.f32 0.5, %v1138
    %v1140 = vsub.f32 1.5, %v1139
    %v1141 = vmul.f32 %v1136, %v1140
    %vm1142 = vweird.f32 %v1134
    %vm1143 = vweird.f32 %v1136
    %vm1144 = vmor %vm1142, %vm1143
    %v1145 = vsel %vm1144, %v1136, %v1141
    %v1146 = vrsqrt.pop %v1135
    %v1147 = vmul.f32 %v1146, %v1135
    %v1148 = vmul.f32 %v1147, %v1146
    %v1149 = vmul.f32 0.5, %v1148
    %v1150 = vsub.f32 1.5, %v1149
    %v1151 = vmul.f32 %v1146, %v1150
    %vm1152 = vweird.f32 %v1135
    %vm1153 = vweird.f32 %v1146
    %vm1154 = vmor %vm1152, %vm1153
    %v1155 = vsel %vm1154, %v1146, %v1151
    %v1156 = vmul.f32 %v1122, %v1145
    %v1157 = vmul.f32 %v1123, %v1155
    %v1158 = vperm.slane %v1113, 0
    %v1159 = vmul.f32 %v1156, %v1158
    %v1160 = vmul.f32 %v1157, %v1158
    %v1161 = vperm.slane %v1113, 1
    %v1162 = vadd.f32 %v1159, %v1161
    %v1163 = vadd.f32 %v1160, %v1161
    %s1164 = scalar_lea.vmem [#allocation7], 448
    %v1165 = vld [vmem:[%s1164] sm:$0xff]
    %v1166 = vld [vmem:[%s1164 + $0x38] sm:$0xff]
    %v1167 = vld [vmem:[%s1164 + $0x70] sm:$0xff]
    %v1168 = vld [vmem:[%s1164 + $0xa8] sm:$0xff]
    %v1169 = vpack.c.bf16 %v1163, %v1162
    %v1170 = vpack.c.bf16 %v1166, %v1165
    %v1171 = vpack.c.bf16 %v1168, %v1167
    %s1172 = scalar_lea.vmem [#allocation8], 7
    %v1173 = vld [vmem:[%s1172] sm:$0x1]
    %v1175 = vperm.slane %v1173, 0
    %v1178 = vsel %vm280, %v1169, 0
    %1180 = vmatpush.bf16.msra.mxu0 0
    %1181 = vmatpush.bf16.msra.mxu0 0
    %1182 = vmatpush.bf16.msra.mxu0 0
    %1183 = vmatpush.bf16.msra.mxu0 0
    %1184 = vmatpush.bf16.msra.mxu0 0
    %1185 = vmatpush.bf16.msra.mxu0 0
    %1186 = vmatpush.bf16.msra.mxu0 %v1171
    %1187 = vmatpush.bf16.msra.mxu0 %v1170
    %1188 = vmatmul.bf16.gmra.mxu0 %v1178
    %v1189 = vpop.f32.mrf.mxu0
    %v1190 = vadd.f32 %v1175, %v1189
    %v1191 = vpop.f32.mrf.mxu0
    %v1192 = vadd.f32 %v1175, %v1191
    %1193 = vdwg.mxu0
    %v1194 = vld [vmem:[%s1164 + $0x8] sm:$0xff]
    %v1195 = vld [vmem:[%s1164 + $0x40] sm:$0xff]
    %v1196 = vld [vmem:[%s1164 + $0x78] sm:$0xff]
    %v1197 = vld [vmem:[%s1164 + $0xb0] sm:$0xff]
    %v1198 = vld [vmem:[%s1172 + $0x1] sm:$0x1]
    %v1199 = vmul.f32 %v1190, %v221
    %v1200 = vmul.f32 %v1192, %v222
    %v1201 = vmul.f32 %v1190, %v223
    %v1202 = vmul.f32 %v1192, %v224
    %v1203 = vmul.f32 %v1190, %v225
    %v1204 = vmul.f32 %v1192, %v226
    %v1205 = vmul.f32 %v1190, %v227
    %v1206 = vmul.f32 %v1192, %v228
    %v1207 = vpack.c.bf16 %v1200, %v1199
    %v1208 = vpack.c.bf16 %v1202, %v1201
    %v1209 = vpack.c.bf16 %v1204, %v1203
    %v1210 = vpack.c.bf16 %v1206, %v1205
    %v1211 = vpack.c.bf16 %v1192, %v1190
    %1213 = vrot.lane.b32.xlu0 %v1211, 96
    %v1214 = vpop.permute.xlu0 %1213
    %v1216 = vsel %vm280, %v1207, 0
    %v1219 = vsel %vm280, %v1208, 0
    %v1222 = vsel %vm280, %v1209, 0
    %v1225 = vsel %vm280, %v1210, 0
    %v1228 = vsel %vm280, %v1214, 0
    %1230 = vmatpush.bf16.xpose.msra.mxu0 0
    %1231 = vmatpush.bf16.xpose.msra.mxu0 0
    %1232 = vmatpush.bf16.xpose.msra.mxu0 0
    %1233 = vmatpush.bf16.xpose.msra.mxu0 0
    %1234 = vmatpush.bf16.xpose.msra.mxu0 0
    %1235 = vmatpush.bf16.xpose.msra.mxu0 0
    %1236 = vmatpush.bf16.xpose.msra.mxu0 0
    %1237 = vmatpush.bf16.xpose.msra.mxu0 %v1228
    %1238 = vmatmul.bf16.gmra.mxu0 %v1216
    %v1239 = vpop.f32.mrf.mxu0
    %v1240 = vadd.f32 0.0, %v1239
    %v1241 = vpop.f32.mrf.mxu0
    %v1242 = vadd.f32 0.0, %v1241
    %1243 = vmatmul.bf16.gmra.mxu0 %v1219
    %v1244 = vpop.f32.mrf.mxu0
    %v1245 = vadd.f32 0.0, %v1244
    %v1246 = vpop.f32.mrf.mxu0
    %v1247 = vadd.f32 0.0, %v1246
    %1248 = vmatmul.bf16.gmra.mxu0 %v1222
    %v1249 = vpop.f32.mrf.mxu0
    %v1250 = vadd.f32 0.0, %v1249
    %v1251 = vpop.f32.mrf.mxu0
    %v1252 = vadd.f32 0.0, %v1251
    %1253 = vmatmul.bf16.gmra.mxu0 %v1225
    %v1254 = vpop.f32.mrf.mxu0
    %v1255 = vadd.f32 0.0, %v1254
    %v1256 = vpop.f32.mrf.mxu0
    %v1257 = vadd.f32 0.0, %v1256
    %1258 = vdwg.mxu0
    %v1259 = vmul.f32 %v1240, 0.35355338
    %v1260 = vmul.f32 %v1242, 0.35355338
    %v1261 = vmul.f32 %v1245, 0.35355338
    %v1262 = vmul.f32 %v1247, 0.35355338
    %v1263 = vmul.f32 %v1250, 0.35355338
    %v1264 = vmul.f32 %v1252, 0.35355338
    %v1265 = vmul.f32 %v1255, 0.35355338
    %v1266 = vmul.f32 %v1257, 0.35355338
    %v1267 = vadd.f32 %v1259, %v229
    %v1268 = vadd.f32 %v1260, %v230
    %v1269 = vadd.f32 %v1261, %v231
    %v1270 = vadd.f32 %v1262, %v232
    %v1271 = vadd.f32 %v1263, %v233
    %v1272 = vadd.f32 %v1264, %v234
    %v1273 = vadd.f32 %v1265, %v235
    %v1274 = vadd.f32 %v1266, %v236
    %v1275 = vsel %vm250, %v1267, -inf
    %1276 = vmax.xlane.f32.xlu0 %v1275
    %v1277 = vpop.xlane.xlu0 %1276
    %v1278 = vsel %vm250, %v1268, -inf
    %1279 = vmax.xlane.f32.xlu0 %v1278
    %v1280 = vpop.xlane.xlu0 %1279
    %v1281 = vsel %vm250, %v1269, -inf
    %1282 = vmax.xlane.f32.xlu0 %v1281
    %v1283 = vpop.xlane.xlu0 %1282
    %v1284 = vsel %vm250, %v1270, -inf
    %1285 = vmax.xlane.f32.xlu0 %v1284
    %v1286 = vpop.xlane.xlu0 %1285
    %v1287 = vsel %vm250, %v1271, -inf
    %1288 = vmax.xlane.f32.xlu0 %v1287
    %v1289 = vpop.xlane.xlu0 %1288
    %v1290 = vsel %vm250, %v1272, -inf
    %1291 = vmax.xlane.f32.xlu0 %v1290
    %v1292 = vpop.xlane.xlu0 %1291
    %v1293 = vsel %vm250, %v1273, -inf
    %1294 = vmax.xlane.f32.xlu0 %v1293
    %v1295 = vpop.xlane.xlu0 %1294
    %v1296 = vsel %vm250, %v1274, -inf
    %1297 = vmax.xlane.f32.xlu0 %v1296
    %v1298 = vpop.xlane.xlu0 %1297
    %v1299 = vsub.f32 %v1267, %v1277
    %v1300 = vsub.f32 %v1268, %v1280
    %v1301 = vsub.f32 %v1269, %v1283
    %v1302 = vsub.f32 %v1270, %v1286
    %v1303 = vsub.f32 %v1271, %v1289
    %v1304 = vsub.f32 %v1272, %v1292
    %v1305 = vsub.f32 %v1273, %v1295
    %v1306 = vsub.f32 %v1274, %v1298
    %v1307 = vmul.f32 %v1299, 1.442695
    %v1308 = vpow.pop %v1307
    %v1309 = vmul.f32 %v1300, 1.442695
    %v1310 = vpow.pop %v1309
    %v1311 = vmul.f32 %v1301, 1.442695
    %v1312 = vpow.pop %v1311
    %v1313 = vmul.f32 %v1302, 1.442695
    %v1314 = vpow.pop %v1313
    %v1315 = vmul.f32 %v1303, 1.442695
    %v1316 = vpow.pop %v1315
    %v1317 = vmul.f32 %v1304, 1.442695
    %v1318 = vpow.pop %v1317
    %v1319 = vmul.f32 %v1305, 1.442695
    %v1320 = vpow.pop %v1319
    %v1321 = vmul.f32 %v1306, 1.442695
    %v1322 = vpow.pop %v1321
    %v1323 = vsel %vm250, %v1308, 0.0
    %1324 = vadd.xlane.f32.xlu0 %v1323
    %v1325 = vpop.xlane.xlu0 %1324
    %v1326 = vsel %vm250, %v1310, 0.0
    %1327 = vadd.xlane.f32.xlu0 %v1326
    %v1328 = vpop.xlane.xlu0 %1327
    %v1329 = vsel %vm250, %v1312, 0.0
    %1330 = vadd.xlane.f32.xlu0 %v1329
    %v1331 = vpop.xlane.xlu0 %1330
    %v1332 = vsel %vm250, %v1314, 0.0
    %1333 = vadd.xlane.f32.xlu0 %v1332
    %v1334 = vpop.xlane.xlu0 %1333
    %v1335 = vsel %vm250, %v1316, 0.0
    %1336 = vadd.xlane.f32.xlu0 %v1335
    %v1337 = vpop.xlane.xlu0 %1336
    %v1338 = vsel %vm250, %v1318, 0.0
    %1339 = vadd.xlane.f32.xlu0 %v1338
    %v1340 = vpop.xlane.xlu0 %1339
    %v1341 = vsel %vm250, %v1320, 0.0
    %1342 = vadd.xlane.f32.xlu0 %v1341
    %v1343 = vpop.xlane.xlu0 %1342
    %v1344 = vsel %vm250, %v1322, 0.0
    %1345 = vadd.xlane.f32.xlu0 %v1344
    %v1346 = vpop.xlane.xlu0 %1345
    %v1347 = vrcp.pop %v1325
    %v1348 = vrcp.pop %v1328
    %v1349 = vrcp.pop %v1331
    %v1350 = vrcp.pop %v1334
    %v1351 = vrcp.pop %v1337
    %v1352 = vrcp.pop %v1340
    %v1353 = vrcp.pop %v1343
    %v1354 = vrcp.pop %v1346
    %v1355 = vmul.f32 %v1308, %v1347
    %v1356 = vmul.f32 %v1310, %v1348
    %v1357 = vmul.f32 %v1312, %v1349
    %v1358 = vmul.f32 %v1314, %v1350
    %v1359 = vmul.f32 %v1316, %v1351
    %v1360 = vmul.f32 %v1318, %v1352
    %v1361 = vmul.f32 %v1320, %v1353
    %v1362 = vmul.f32 %v1322, %v1354
    %v1363 = vpack.c.bf16 %v1356, %v1355
    %v1364 = vpack.c.bf16 %v1358, %v1357
    %v1365 = vpack.c.bf16 %v1360, %v1359
    %v1366 = vpack.c.bf16 %v1362, %v1361
    %1367 = vrot.lane.b32.xlu0 %v1211, 64
    %v1368 = vpop.permute.xlu0 %1367
    %v1371 = vsel %vm250, %v1363, 0
    %v1374 = vsel %vm250, %v1364, 0
    %v1377 = vsel %vm250, %v1365, 0
    %v1380 = vsel %vm250, %v1366, 0
    %1382 = vmatpush.bf16.msra.mxu0 0
    %1383 = vmatpush.bf16.msra.mxu0 0
    %1384 = vmatpush.bf16.msra.mxu0 0
    %1385 = vmatpush.bf16.msra.mxu0 0
    %1386 = vmatpush.bf16.msra.mxu0 0
    %1387 = vmatpush.bf16.msra.mxu0 0
    %1388 = vmatpush.bf16.msra.mxu0 0
    %1389 = vmatpush.bf16.msra.mxu0 %v1368
    %1390 = vmatmul.bf16.gmra.mxu0 %v1371
    %v1391 = vpop.f32.mrf.mxu0
    %v1392 = vadd.f32 0.0, %v1391
    %v1393 = vpop.f32.mrf.mxu0
    %v1394 = vadd.f32 0.0, %v1393
    %1395 = vmatmul.bf16.gmra.mxu0 %v1374
    %v1396 = vpop.f32.mrf.mxu0
    %v1397 = vadd.f32 0.0, %v1396
    %v1398 = vpop.f32.mrf.mxu0
    %v1399 = vadd.f32 0.0, %v1398
    %1400 = vmatmul.bf16.gmra.mxu0 %v1377
    %v1401 = vpop.f32.mrf.mxu0
    %v1402 = vadd.f32 0.0, %v1401
    %v1403 = vpop.f32.mrf.mxu0
    %v1404 = vadd.f32 0.0, %v1403
    %1405 = vmatmul.bf16.gmra.mxu0 %v1380
    %v1406 = vpop.f32.mrf.mxu0
    %v1407 = vadd.f32 0.0, %v1406
    %v1408 = vpop.f32.mrf.mxu0
    %v1409 = vadd.f32 0.0, %v1408
    %1410 = vdwg.mxu0
    %v1411 = vmul.f32 %v1392, %v221
    %v1412 = vmul.f32 %v1394, %v222
    %v1413 = vmul.f32 %v1397, %v223
    %v1414 = vmul.f32 %v1399, %v224
    %v1415 = vmul.f32 %v1402, %v225
    %v1416 = vmul.f32 %v1404, %v226
    %v1417 = vmul.f32 %v1407, %v227
    %v1418 = vmul.f32 %v1409, %v228
    %v1419 = vadd.f32 %v1411, %v1413
    %v1420 = vadd.f32 %v1412, %v1414
    %v1421 = vadd.f32 %v1419, %v1415
    %v1422 = vadd.f32 %v1420, %v1416
    %v1423 = vadd.f32 %v1421, %v1417
    %v1424 = vadd.f32 %v1422, %v1418
    %v1425 = vpack.c.bf16 %v1424, %v1423
    %v1426 = vpack.c.bf16 %v1195, %v1194
    %v1427 = vpack.c.bf16 %v1197, %v1196
    %v1429 = vperm.slane %v1198, 0
    %v1432 = vsel %vm280, %v1425, 0
    %1434 = vmatpush.bf16.msra.mxu0 0
    %1435 = vmatpush.bf16.msra.mxu0 0
    %1436 = vmatpush.bf16.msra.mxu0 0
    %1437 = vmatpush.bf16.msra.mxu0 0
    %1438 = vmatpush.bf16.msra.mxu0 0
    %1439 = vmatpush.bf16.msra.mxu0 0
    %1440 = vmatpush.bf16.msra.mxu0 %v1427
    %1441 = vmatpush.bf16.msra.mxu0 %v1426
    %1442 = vmatmul.bf16.gmra.mxu0 %v1432
    %v1443 = vpop.f32.mrf.mxu0
    %v1444 = vadd.f32 %v1429, %v1443
    %v1445 = vpop.f32.mrf.mxu0
    %v1446 = vadd.f32 %v1429, %v1445
    %1447 = vdwg.mxu0
    %v1448 = vadd.f32 %v1110, %v1444
    %v1449 = vadd.f32 %v1111, %v1446
    %v1450 = vsel %vm280, %v1448, 0.0
    %1451 = vadd.xlane.f32.xlu0 %v1450
    %v1452 = vpop.xlane.xlu0 %1451
    %v1453 = vsel %vm280, %v1449, 0.0
    %1454 = vadd.xlane.f32.xlu0 %v1453
    %v1455 = vpop.xlane.xlu0 %1454
    %v1456 = vmul.f32 %v1452, %v293
    %v1457 = vmul.f32 %v1455, %v293
    %v1458 = vsub.f32 %v1448, %v1456
    %v1459 = vsub.f32 %v1449, %v1457
    %v1460 = vmul.f32 %v1458, %v1458
    %v1461 = vmul.f32 %v1459, %v1459
    %v1462 = vsel %vm280, %v1460, 0.0
    %1463 = vadd.xlane.f32.xlu0 %v1462
    %v1464 = vpop.xlane.xlu0 %1463
    %v1465 = vsel %vm280, %v1461, 0.0
    %1466 = vadd.xlane.f32.xlu0 %v1465
    %v1467 = vpop.xlane.xlu0 %1466
    %v1468 = vmul.f32 %v1464, %v293
    %v1469 = vmul.f32 %v1467, %v293
    %v1470 = vadd.f32 %v1468, 1e-05
    %v1471 = vadd.f32 %v1469, 1e-05
    %v1472 = vrsqrt.pop %v1470
    %v1473 = vmul.f32 %v1472, %v1470
    %v1474 = vmul.f32 %v1473, %v1472
    %v1475 = vmul.f32 0.5, %v1474
    %v1476 = vsub.f32 1.5, %v1475
    %v1477 = vmul.f32 %v1472, %v1476
    %vm1478 = vweird.f32 %v1470
    %vm1479 = vweird.f32 %v1472
    %vm1480 = vmor %vm1478, %vm1479
    %v1481 = vsel %vm1480, %v1472, %v1477
    %v1482 = vrsqrt.pop %v1471
    %v1483 = vmul.f32 %v1482, %v1471
    %v1484 = vmul.f32 %v1483, %v1482
    %v1485 = vmul.f32 0.5, %v1484
    %v1486 = vsub.f32 1.5, %v1485
    %v1487 = vmul.f32 %v1482, %v1486
    %vm1488 = vweird.f32 %v1471
    %vm1489 = vweird.f32 %v1482
    %vm1490 = vmor %vm1488, %vm1489
    %v1491 = vsel %vm1490, %v1482, %v1487
    %v1492 = vmul.f32 %v1458, %v1481
    %v1493 = vmul.f32 %v1459, %v1491
    %v1494 = vperm.slane %v1113, 2
    %v1495 = vmul.f32 %v1492, %v1494
    %v1496 = vmul.f32 %v1493, %v1494
    %v1497 = vperm.slane %v1113, 3
    %v1498 = vadd.f32 %v1495, %v1497
    %v1499 = vadd.f32 %v1496, %v1497
    %v1500 = vld [vmem:[%s1164 + $0x10] sm:$0xff]
    %v1501 = vld [vmem:[%s1164 + $0x48] sm:$0xff]
    %v1502 = vld [vmem:[%s1164 + $0x80] sm:$0xff]
    %v1503 = vld [vmem:[%s1164 + $0xb8] sm:$0xff]
    %v1504 = vpack.c.bf16 %v1499, %v1498
    %v1505 = vpack.c.bf16 %v1501, %v1500
    %v1506 = vpack.c.bf16 %v1503, %v1502
    %v1507 = vld [vmem:[%s1172 + $0x2] sm:$0x1]
    %v1509 = vperm.slane %v1507, 0
    %v1512 = vsel %vm280, %v1504, 0
    %1514 = vmatpush.bf16.msra.mxu0 0
    %1515 = vmatpush.bf16.msra.mxu0 0
    %1516 = vmatpush.bf16.msra.mxu0 0
    %1517 = vmatpush.bf16.msra.mxu0 0
    %1518 = vmatpush.bf16.msra.mxu0 0
    %1519 = vmatpush.bf16.msra.mxu0 0
    %1520 = vmatpush.bf16.msra.mxu0 %v1506
    %1521 = vmatpush.bf16.msra.mxu0 %v1505
    %1522 = vmatmul.bf16.gmra.mxu0 %v1512
    %v1523 = vpop.f32.mrf.mxu0
    %v1524 = vadd.f32 %v1509, %v1523
    %v1525 = vpop.f32.mrf.mxu0
    %v1526 = vadd.f32 %v1509, %v1525
    %1527 = vdwg.mxu0
    %v1528 = vld [vmem:[%s1164 + $0x18] sm:$0xff]
    %v1529 = vld [vmem:[%s1164 + $0x50] sm:$0xff]
    %v1530 = vld [vmem:[%s1164 + $0x88] sm:$0xff]
    %v1531 = vld [vmem:[%s1164 + $0xc0] sm:$0xff]
    %v1532 = vpack.c.bf16 %v1529, %v1528
    %v1533 = vpack.c.bf16 %v1531, %v1530
    %v1534 = vld [vmem:[%s1172 + $0x3] sm:$0x1]
    %v1536 = vperm.slane %v1534, 0
    %1538 = vmatpush.bf16.msra.mxu0 0
    %1539 = vmatpush.bf16.msra.mxu0 0
    %1540 = vmatpush.bf16.msra.mxu0 0
    %1541 = vmatpush.bf16.msra.mxu0 0
    %1542 = vmatpush.bf16.msra.mxu0 0
    %1543 = vmatpush.bf16.msra.mxu0 0
    %1544 = vmatpush.bf16.msra.mxu0 %v1533
    %1545 = vmatpush.bf16.msra.mxu0 %v1532
    %1546 = vmatmul.bf16.gmra.mxu0 %v720
    %v1547 = vpop.f32.mrf.mxu0
    %v1548 = vadd.f32 %v1536, %v1547
    %v1549 = vpop.f32.mrf.mxu0
    %1550 = vdwg.mxu0
    %v1551 = vld [vmem:[%s1164 + $0x20] sm:$0xff]
    %v1552 = vld [vmem:[%s1164 + $0x58] sm:$0xff]
    %v1553 = vld [vmem:[%s1164 + $0x90] sm:$0xff]
    %v1554 = vld [vmem:[%s1164 + $0xc8] sm:$0xff]
    %v1555 = vld [vmem:[%s1172 + $0x4] sm:$0x1]
    %v1556 = vmul.f32 %v1524, %v221
    %v1557 = vmul.f32 %v1526, %v222
    %v1558 = vmul.f32 %v1524, %v223
    %v1559 = vmul.f32 %v1526, %v224
    %v1560 = vmul.f32 %v1524, %v225
    %v1561 = vmul.f32 %v1526, %v226
    %v1562 = vmul.f32 %v1524, %v227
    %v1563 = vmul.f32 %v1526, %v228
    %v1564 = vpack.c.bf16 %v1557, %v1556
    %v1565 = vpack.c.bf16 %v1559, %v1558
    %v1566 = vpack.c.bf16 %v1561, %v1560
    %v1567 = vpack.c.bf16 %v1563, %v1562
    %v1568 = vpack.c.bf16 %v1548, %v1548
    %v1570 = vsel %vm280, %v1564, 0
    %v1573 = vsel %vm280, %v1565, 0
    %v1576 = vsel %vm280, %v1566, 0
    %v1579 = vsel %vm280, %v1567, 0
    %v1582 = vsel %vm280, %v1568, 0
    %1584 = vmatpush.bf16.xpose.msra.mxu0 0
    %1585 = vmatpush.bf16.xpose.msra.mxu0 0
    %1586 = vmatpush.bf16.xpose.msra.mxu0 0
    %1587 = vmatpush.bf16.xpose.msra.mxu0 0
    %1588 = vmatpush.bf16.xpose.msra.mxu0 0
    %1589 = vmatpush.bf16.xpose.msra.mxu0 0
    %1590 = vmatpush.bf16.xpose.msra.mxu0 0
    %1591 = vmatpush.bf16.xpose.msra.mxu0 %v1582
    %1592 = vmatmul.bf16.gmra.mxu0 %v1570
    %v1593 = vpop.f32.mrf.mxu0
    %v1594 = vadd.f32 0.0, %v1593
    %v1595 = vpop.f32.mrf.mxu0
    %v1596 = vadd.f32 0.0, %v1595
    %1597 = vmatmul.bf16.gmra.mxu0 %v1573
    %v1598 = vpop.f32.mrf.mxu0
    %v1599 = vadd.f32 0.0, %v1598
    %v1600 = vpop.f32.mrf.mxu0
    %v1601 = vadd.f32 0.0, %v1600
    %1602 = vmatmul.bf16.gmra.mxu0 %v1576
    %v1603 = vpop.f32.mrf.mxu0
    %v1604 = vadd.f32 0.0, %v1603
    %v1605 = vpop.f32.mrf.mxu0
    %v1606 = vadd.f32 0.0, %v1605
    %1607 = vmatmul.bf16.gmra.mxu0 %v1579
    %v1608 = vpop.f32.mrf.mxu0
    %v1609 = vadd.f32 0.0, %v1608
    %v1610 = vpop.f32.mrf.mxu0
    %v1611 = vadd.f32 0.0, %v1610
    %1612 = vdwg.mxu0
    %v1613 = vmul.f32 %v1594, 0.35355338
    %v1614 = vmul.f32 %v1596, 0.35355338
    %v1615 = vmul.f32 %v1599, 0.35355338
    %v1616 = vmul.f32 %v1601, 0.35355338
    %v1617 = vmul.f32 %v1604, 0.35355338
    %v1618 = vmul.f32 %v1606, 0.35355338
    %v1619 = vmul.f32 %v1609, 0.35355338
    %v1620 = vmul.f32 %v1611, 0.35355338
    %v1621 = vadd.f32 %v1613, %v237
    %v1622 = vadd.f32 %v1614, %v238
    %v1623 = vadd.f32 %v1615, %v239
    %v1624 = vadd.f32 %v1616, %v240
    %v1625 = vadd.f32 %v1617, %v241
    %v1626 = vadd.f32 %v1618, %v242
    %v1627 = vadd.f32 %v1619, %v243
    %v1628 = vadd.f32 %v1620, %v244
    %v1629 = vsel %vm813, %v1621, -inf
    %1630 = vmax.xlane.f32.xlu0 %v1629
    %v1631 = vpop.xlane.xlu0 %1630
    %v1632 = vsel %vm813, %v1622, -inf
    %1633 = vmax.xlane.f32.xlu0 %v1632
    %v1634 = vpop.xlane.xlu0 %1633
    %v1635 = vsel %vm813, %v1623, -inf
    %1636 = vmax.xlane.f32.xlu0 %v1635
    %v1637 = vpop.xlane.xlu0 %1636
    %v1638 = vsel %vm813, %v1624, -inf
    %1639 = vmax.xlane.f32.xlu0 %v1638
    %v1640 = vpop.xlane.xlu0 %1639
    %v1641 = vsel %vm813, %v1625, -inf
    %1642 = vmax.xlane.f32.xlu0 %v1641
    %v1643 = vpop.xlane.xlu0 %1642
    %v1644 = vsel %vm813, %v1626, -inf
    %1645 = vmax.xlane.f32.xlu0 %v1644
    %v1646 = vpop.xlane.xlu0 %1645
    %v1647 = vsel %vm813, %v1627, -inf
    %1648 = vmax.xlane.f32.xlu0 %v1647
    %v1649 = vpop.xlane.xlu0 %1648
    %v1650 = vsel %vm813, %v1628, -inf
    %1651 = vmax.xlane.f32.xlu0 %v1650
    %v1652 = vpop.xlane.xlu0 %1651
    %v1653 = vsub.f32 %v1621, %v1631
    %v1654 = vsub.f32 %v1622, %v1634
    %v1655 = vsub.f32 %v1623, %v1637
    %v1656 = vsub.f32 %v1624, %v1640
    %v1657 = vsub.f32 %v1625, %v1643
    %v1658 = vsub.f32 %v1626, %v1646
    %v1659 = vsub.f32 %v1627, %v1649
    %v1660 = vsub.f32 %v1628, %v1652
    %v1661 = vmul.f32 %v1653, 1.442695
    %v1662 = vpow.pop %v1661
    %v1663 = vmul.f32 %v1654, 1.442695
    %v1664 = vpow.pop %v1663
    %v1665 = vmul.f32 %v1655, 1.442695
    %v1666 = vpow.pop %v1665
    %v1667 = vmul.f32 %v1656, 1.442695
    %v1668 = vpow.pop %v1667
    %v1669 = vmul.f32 %v1657, 1.442695
    %v1670 = vpow.pop %v1669
    %v1671 = vmul.f32 %v1658, 1.442695
    %v1672 = vpow.pop %v1671
    %v1673 = vmul.f32 %v1659, 1.442695
    %v1674 = vpow.pop %v1673
    %v1675 = vmul.f32 %v1660, 1.442695
    %v1676 = vpow.pop %v1675
    %v1677 = vsel %vm813, %v1662, 0.0
    %1678 = vadd.xlane.f32.xlu0 %v1677
    %v1679 = vpop.xlane.xlu0 %1678
    %v1680 = vsel %vm813, %v1664, 0.0
    %1681 = vadd.xlane.f32.xlu0 %v1680
    %v1682 = vpop.xlane.xlu0 %1681
    %v1683 = vsel %vm813, %v1666, 0.0
    %1684 = vadd.xlane.f32.xlu0 %v1683
    %v1685 = vpop.xlane.xlu0 %1684
    %v1686 = vsel %vm813, %v1668, 0.0
    %1687 = vadd.xlane.f32.xlu0 %v1686
    %v1688 = vpop.xlane.xlu0 %1687
    %v1689 = vsel %vm813, %v1670, 0.0
    %1690 = vadd.xlane.f32.xlu0 %v1689
    %v1691 = vpop.xlane.xlu0 %1690
    %v1692 = vsel %vm813, %v1672, 0.0
    %1693 = vadd.xlane.f32.xlu0 %v1692
    %v1694 = vpop.xlane.xlu0 %1693
    %v1695 = vsel %vm813, %v1674, 0.0
    %1696 = vadd.xlane.f32.xlu0 %v1695
    %v1697 = vpop.xlane.xlu0 %1696
    %v1698 = vsel %vm813, %v1676, 0.0
    %1699 = vadd.xlane.f32.xlu0 %v1698
    %v1700 = vpop.xlane.xlu0 %1699
    %v1701 = vrcp.pop %v1679
    %v1702 = vrcp.pop %v1682
    %v1703 = vrcp.pop %v1685
    %v1704 = vrcp.pop %v1688
    %v1705 = vrcp.pop %v1691
    %v1706 = vrcp.pop %v1694
    %v1707 = vrcp.pop %v1697
    %v1708 = vrcp.pop %v1700
    %v1709 = vmul.f32 %v1662, %v1701
    %v1710 = vmul.f32 %v1664, %v1702
    %v1711 = vmul.f32 %v1666, %v1703
    %v1712 = vmul.f32 %v1668, %v1704
    %v1713 = vmul.f32 %v1670, %v1705
    %v1714 = vmul.f32 %v1672, %v1706
    %v1715 = vmul.f32 %v1674, %v1707
    %v1716 = vmul.f32 %v1676, %v1708
    %v1717 = vpack.c.bf16 %v1710, %v1709
    %v1718 = vpack.c.bf16 %v1712, %v1711
    %v1719 = vpack.c.bf16 %v1714, %v1713
    %v1720 = vpack.c.bf16 %v1716, %v1715
    %1722 = vrot.lane.b32.xlu0 %v1568, 96
    %v1723 = vpop.permute.xlu0 %1722
    %v1725 = vsel %vm813, %v1717, 0
    %v1728 = vsel %vm813, %v1718, 0
    %v1731 = vsel %vm813, %v1719, 0
    %v1734 = vsel %vm813, %v1720, 0
    %v1737 = vsel %vm921, %v1723, 0
    %1739 = vmatpush.bf16.msra.mxu0 0
    %1740 = vmatpush.bf16.msra.mxu0 0
    %1741 = vmatpush.bf16.msra.mxu0 0
    %1742 = vmatpush.bf16.msra.mxu0 0
    %1743 = vmatpush.bf16.msra.mxu0 0
    %1744 = vmatpush.bf16.msra.mxu0 0
    %1745 = vmatpush.bf16.msra.mxu0 0
    %1746 = vmatpush.bf16.msra.mxu0 %v1737
    %1747 = vmatmul.bf16.gmra.mxu0 %v1725
    %v1748 = vpop.f32.mrf.mxu0
    %v1749 = vadd.f32 0.0, %v1748
    %v1750 = vpop.f32.mrf.mxu0
    %v1751 = vadd.f32 0.0, %v1750
    %1752 = vmatmul.bf16.gmra.mxu0 %v1728
    %v1753 = vpop.f32.mrf.mxu0
    %v1754 = vadd.f32 0.0, %v1753
    %v1755 = vpop.f32.mrf.mxu0
    %v1756 = vadd.f32 0.0, %v1755
    %1757 = vmatmul.bf16.gmra.mxu0 %v1731
    %v1758 = vpop.f32.mrf.mxu0
    %v1759 = vadd.f32 0.0, %v1758
    %v1760 = vpop.f32.mrf.mxu0
    %v1761 = vadd.f32 0.0, %v1760
    %1762 = vmatmul.bf16.gmra.mxu0 %v1734
    %v1763 = vpop.f32.mrf.mxu0
    %v1764 = vadd.f32 0.0, %v1763
    %v1765 = vpop.f32.mrf.mxu0
    %v1766 = vadd.f32 0.0, %v1765
    %1767 = vdwg.mxu0
    %v1768 = vmul.f32 %v1749, %v221
    %v1769 = vmul.f32 %v1751, %v222
    %v1770 = vmul.f32 %v1754, %v223
    %v1771 = vmul.f32 %v1756, %v224
    %v1772 = vmul.f32 %v1759, %v225
    %v1773 = vmul.f32 %v1761, %v226
    %v1774 = vmul.f32 %v1764, %v227
    %v1775 = vmul.f32 %v1766, %v228
    %v1776 = vadd.f32 %v1768, %v1770
    %v1777 = vadd.f32 %v1769, %v1771
    %v1778 = vadd.f32 %v1776, %v1772
    %v1779 = vadd.f32 %v1777, %v1773
    %v1780 = vadd.f32 %v1778, %v1774
    %v1781 = vadd.f32 %v1779, %v1775
    %v1782 = vpack.c.bf16 %v1781, %v1780
    %v1783 = vpack.c.bf16 %v1552, %v1551
    %v1784 = vpack.c.bf16 %v1554, %v1553
    %v1786 = vperm.slane %v1555, 0
    %v1789 = vsel %vm280, %v1782, 0
    %1791 = vmatpush.bf16.msra.mxu0 0
    %1792 = vmatpush.bf16.msra.mxu0 0
    %1793 = vmatpush.bf16.msra.mxu0 0
    %1794 = vmatpush.bf16.msra.mxu0 0
    %1795 = vmatpush.bf16.msra.mxu0 0
    %1796 = vmatpush.bf16.msra.mxu0 0
    %1797 = vmatpush.bf16.msra.mxu0 %v1784
    %1798 = vmatpush.bf16.msra.mxu0 %v1783
    %1799 = vmatmul.bf16.gmra.mxu0 %v1789
    %v1800 = vpop.f32.mrf.mxu0
    %v1801 = vadd.f32 %v1786, %v1800
    %v1802 = vpop.f32.mrf.mxu0
    %v1803 = vadd.f32 %v1786, %v1802
    %1804 = vdwg.mxu0
    %v1805 = vadd.f32 %v1448, %v1801
    %v1806 = vadd.f32 %v1449, %v1803
    %v1807 = vsel %vm280, %v1805, 0.0
    %1808 = vadd.xlane.f32.xlu0 %v1807
    %v1809 = vpop.xlane.xlu0 %1808
    %v1810 = vsel %vm280, %v1806, 0.0
    %1811 = vadd.xlane.f32.xlu0 %v1810
    %v1812 = vpop.xlane.xlu0 %1811
    %v1813 = vmul.f32 %v1809, %v293
    %v1814 = vmul.f32 %v1812, %v293
    %v1815 = vsub.f32 %v1805, %v1813
    %v1816 = vsub.f32 %v1806, %v1814
    %v1817 = vmul.f32 %v1815, %v1815
    %v1818 = vmul.f32 %v1816, %v1816
    %v1819 = vsel %vm280, %v1817, 0.0
    %1820 = vadd.xlane.f32.xlu0 %v1819
    %v1821 = vpop.xlane.xlu0 %1820
    %v1822 = vsel %vm280, %v1818, 0.0
    %1823 = vadd.xlane.f32.xlu0 %v1822
    %v1824 = vpop.xlane.xlu0 %1823
    %v1825 = vmul.f32 %v1821, %v293
    %v1826 = vmul.f32 %v1824, %v293
    %v1827 = vadd.f32 %v1825, 1e-05
    %v1828 = vadd.f32 %v1826, 1e-05
    %v1829 = vrsqrt.pop %v1827
    %v1830 = vmul.f32 %v1829, %v1827
    %v1831 = vmul.f32 %v1830, %v1829
    %v1832 = vmul.f32 0.5, %v1831
    %v1833 = vsub.f32 1.5, %v1832
    %v1834 = vmul.f32 %v1829, %v1833
    %vm1835 = vweird.f32 %v1827
    %vm1836 = vweird.f32 %v1829
    %vm1837 = vmor %vm1835, %vm1836
    %v1838 = vsel %vm1837, %v1829, %v1834
    %v1839 = vrsqrt.pop %v1828
    %v1840 = vmul.f32 %v1839, %v1828
    %v1841 = vmul.f32 %v1840, %v1839
    %v1842 = vmul.f32 0.5, %v1841
    %v1843 = vsub.f32 1.5, %v1842
    %v1844 = vmul.f32 %v1839, %v1843
    %vm1845 = vweird.f32 %v1828
    %vm1846 = vweird.f32 %v1839
    %vm1847 = vmor %vm1845, %vm1846
    %v1848 = vsel %vm1847, %v1839, %v1844
    %v1849 = vmul.f32 %v1815, %v1838
    %v1850 = vmul.f32 %v1816, %v1848
    %v1851 = vperm.slane %v1113, 4
    %v1852 = vmul.f32 %v1849, %v1851
    %v1853 = vmul.f32 %v1850, %v1851
    %v1854 = vperm.slane %v1113, 5
    %v1855 = vadd.f32 %v1852, %v1854
    %v1856 = vadd.f32 %v1853, %v1854
    %v1857 = vld [vmem:[%s1164 + $0x28] sm:$0xff]
    %v1858 = vld [vmem:[%s1164 + $0x60] sm:$0xff]
    %v1859 = vld [vmem:[%s1164 + $0x98] sm:$0xff]
    %v1860 = vld [vmem:[%s1164 + $0xd0] sm:$0xff]
    %v1861 = vpack.c.bf16 %v1856, %v1855
    %v1862 = vpack.c.bf16 %v1858, %v1857
    %v1863 = vpack.c.bf16 %v1860, %v1859
    %v1864 = vld [vmem:[%s1172 + $0x5] sm:$0x1]
    %v1866 = vperm.slane %v1864, 0
    %v1869 = vsel %vm280, %v1861, 0
    %1871 = vmatpush.bf16.msra.mxu0 0
    %1872 = vmatpush.bf16.msra.mxu0 0
    %1873 = vmatpush.bf16.msra.mxu0 0
    %1874 = vmatpush.bf16.msra.mxu0 0
    %1875 = vmatpush.bf16.msra.mxu0 0
    %1876 = vmatpush.bf16.msra.mxu0 0
    %1877 = vmatpush.bf16.msra.mxu0 %v1863
    %1878 = vmatpush.bf16.msra.mxu0 %v1862
    %1879 = vmatmul.bf16.gmra.mxu0 %v1869
    %v1880 = vpop.f32.mrf.mxu0
    %v1881 = vadd.f32 %v1866, %v1880
    %v1882 = vpop.f32.mrf.mxu0
    %v1883 = vadd.f32 %v1866, %v1882
    %1884 = vdwg.mxu0
    %v1885 = vmax.f32 %v1881, 0.0
    %v1886 = vmax.f32 %v1883, 0.0
    %v1887 = vld [vmem:[%s1164 + $0x30] sm:$0xff]
    %v1888 = vld [vmem:[%s1164 + $0x68] sm:$0xff]
    %v1889 = vld [vmem:[%s1164 + $0xa0] sm:$0xff]
    %v1890 = vld [vmem:[%s1164 + $0xd8] sm:$0xff]
    %v1891 = vld [vmem:[%s1164 + $0x110] sm:$0xff]
    %v1892 = vld [vmem:[%s1164 + $0x148] sm:$0xff]
    %v1893 = vld [vmem:[%s1164 + $0x180] sm:$0xff]
    %v1894 = vld [vmem:[%s1164 + $0x1b8] sm:$0xff]
    %v1895 = vpack.c.bf16 %v1886, %v1885
    %v1896 = vpack.c.bf16 %v1888, %v1887
    %v1897 = vpack.c.bf16 %v1890, %v1889
    %v1898 = vpack.c.bf16 %v1892, %v1891
    %v1899 = vpack.c.bf16 %v1894, %v1893
    %v1901 = vsel %vm1086, %v1895, 0
    %1903 = vmatpush.bf16.msra.mxu0 0
    %1904 = vmatpush.bf16.msra.mxu0 0
    %1905 = vmatpush.bf16.msra.mxu0 0
    %1906 = vmatpush.bf16.msra.mxu0 0
    %1907 = vmatpush.bf16.msra.mxu0 %v1899
    %1908 = vmatpush.bf16.msra.mxu0 %v1898
    %1909 = vmatpush.bf16.msra.mxu0 %v1897
    %1910 = vmatpush.bf16.msra.mxu0 %v1896
    %1911 = vmatmul.bf16.gmra.mxu0 %v1901
    %v1912 = vpop.f32.mrf.mxu0
    %v1913 = vadd.f32 0.0, %v1912
    %v1914 = vpop.f32.mrf.mxu0
    %v1915 = vadd.f32 0.0, %v1914
    %1916 = vdwg.mxu0
    %v1917 = vadd.f32 %v1805, %v1913
    %v1918 = vadd.f32 %v1806, %v1915
    %v1919 = vld [vmem:[%s1172 + $0x6] sm:$0x1]
    %v1921 = vperm.slane %v1919, 0
    %v1923 = vadd.f32 %v1917, %v1921
    %v1924 = vadd.f32 %v1918, %v1921
    %v1925 = vsel %vm280, %v1923, 0.0
    %1926 = vadd.xlane.f32.xlu0 %v1925
    %v1927 = vpop.xlane.xlu0 %1926
    %v1928 = vsel %vm280, %v1924, 0.0
    %1929 = vadd.xlane.f32.xlu0 %v1928
    %v1930 = vpop.xlane.xlu0 %1929
    %v1931 = vmul.f32 %v1927, %v293
    %v1932 = vmul.f32 %v1930, %v293
    %v1933 = vsub.f32 %v1923, %v1931
    %v1934 = vsub.f32 %v1924, %v1932
    %v1935 = vmul.f32 %v1933, %v1933
    %v1936 = vmul.f32 %v1934, %v1934
    %v1937 = vsel %vm280, %v1935, 0.0
    %1938 = vadd.xlane.f32.xlu0 %v1937
    %v1939 = vpop.xlane.xlu0 %1938
    %v1940 = vsel %vm280, %v1936, 0.0
    %1941 = vadd.xlane.f32.xlu0 %v1940
    %v1942 = vpop.xlane.xlu0 %1941
    %v1943 = vmul.f32 %v1939, %v293
    %v1944 = vmul.f32 %v1942, %v293
    %v1945 = vadd.f32 %v1943, 1e-05
    %v1946 = vadd.f32 %v1944, 1e-05
    %v1947 = vrsqrt.pop %v1945
    %v1948 = vmul.f32 %v1947, %v1945
    %v1949 = vmul.f32 %v1948, %v1947
    %v1950 = vmul.f32 0.5, %v1949
    %v1951 = vsub.f32 1.5, %v1950
    %v1952 = vmul.f32 %v1947, %v1951
    %vm1953 = vweird.f32 %v1945
    %vm1954 = vweird.f32 %v1947
    %vm1955 = vmor %vm1953, %vm1954
    %v1956 = vsel %vm1955, %v1947, %v1952
    %v1957 = vrsqrt.pop %v1946
    %v1958 = vmul.f32 %v1957, %v1946
    %v1959 = vmul.f32 %v1958, %v1957
    %v1960 = vmul.f32 0.5, %v1959
    %v1961 = vsub.f32 1.5, %v1960
    %v1962 = vmul.f32 %v1957, %v1961
    %vm1963 = vweird.f32 %v1946
    %vm1964 = vweird.f32 %v1957
    %vm1965 = vmor %vm1963, %vm1964
    %v1966 = vsel %vm1965, %v1957, %v1962
    %v1967 = vmul.f32 %v1933, %v1956
    %v1968 = vmul.f32 %v1934, %v1966
    %v1969 = vperm.slane %v245, 2
    %v1970 = vmul.f32 %v1967, %v1969
    %v1971 = vmul.f32 %v1968, %v1969
    %v1972 = vperm.slane %v245, 3
    %v1973 = vadd.f32 %v1970, %v1972
    %v1974 = vadd.f32 %v1971, %v1972
    %v1975 = vld [vmem:[#allocation11] sm:$0xff]
    %v1976 = vld [vmem:[#allocation11 + $0x8] sm:$0xff]
    %v1977 = vld [vmem:[#allocation11 + $0x10] sm:$0xff]
    %v1978 = vld [vmem:[#allocation11 + $0x18] sm:$0xff]
    %v1979 = vpack.c.bf16 %v1974, %v1973
    %v1980 = vpack.c.bf16 %v1976, %v1975
    %v1981 = vpack.c.bf16 %v1978, %v1977
    %v1982 = vld [vmem:[%s7] sm:$0x1]
    %v1984 = vperm.slane %v1982, 0
    %v1987 = vsel %vm280, %v1979, 0
    %1989 = vmatpush.bf16.msra.mxu0 0
    %1990 = vmatpush.bf16.msra.mxu0 0
    %1991 = vmatpush.bf16.msra.mxu0 0
    %1992 = vmatpush.bf16.msra.mxu0 0
    %1993 = vmatpush.bf16.msra.mxu0 0
    %1994 = vmatpush.bf16.msra.mxu0 0
    %1995 = vmatpush.bf16.msra.mxu0 %v1981
    %1996 = vmatpush.bf16.msra.mxu0 %v1980
    %1997 = vmatmul.bf16.gmra.mxu0 %v1987
    %v1998 = vpop.f32.mrf.mxu0
    %v1999 = vadd.f32 %v1984, %v1998
    %v2000 = vpop.f32.mrf.mxu0
    %v2001 = vadd.f32 %v1984, %v2000
    %2002 = vdwg.mxu0
    %2003 = vst [vmem:[#allocation20] sm:$0xff] %v1999
    %2004 = vst [vmem:[#allocation20 + $0x8] sm:$0xff] %v2001
    // Predicated region
    $region98: #{fwd.1} parent=1 // pred_check
      _
    $region99: #{fwd.1} parent=1 // pred_check_branch
      %2006 = sbr.rel (0) target = $region101
    $region100: #{fwd.1} parent=1 // pred_region
      %2008 = vsyncadd [#allocation4], 0
      %s2009 = sshll.u32 [#allocation20], 4
      %s2010 = int_to_ptr.vmem [resolvable:$true] %s2009
      %s2011 = sshll.u32 %s13, 4
      %s2012 = int_to_ptr.hbm [resolvable:$true] %s2011
      %2017 = dma.vmem_to_hbm [thread:$0]  %s2010, 256, %s2012, [#allocation4], 128, 128, 8
    $region101: #{fwd.1} parent=1 // pred_fallthru
      _
    // Predicated region
    $region102: #{fwd.1} parent=1 // pred_check
      _
    $region103: #{fwd.1} parent=1 // pred_check_branch
      %2019 = sbr.rel (0) target = $region105
    $region104: #{fwd.1} parent=1 // pred_region
      %2021 = dma.done [#allocation4], 256
    $region105: #{fwd.1} parent=1 // pred_fallthru
      _
    %2022 = vsyncpa [#allocation3], 1
    %2023 = vsyncpa [#allocation6], 1
    %2024 = vsyncpa [#allocation9], 1
    %2025 = vsyncpa [#allocation12], 1
    %2026 = vsyncpa [#allocation15], 1
    %2027 = vsyncpa [#allocation18], 1
    %2028 = vsyncpa [#allocation4], 1

</llo_original>
